<compile_context>
chip_gen: v7x
topology: tpu7x:2x2x1
jax: 0.10.0
libtpu: 0.0.40
codegen_flags: <defaults>
</compile_context>

<pallas_src>
import numpy as np
import jax
import jax.numpy as jnp
from jax.experimental import pallas as pl
from jax.experimental.pallas import tpu as pltpu

MAX_SEQUENCE_LENGTH = 256
LN_EPS = 1e-5  # torch.nn.LayerNorm default (biased variance)


# ----------------------------------------------------------------------------
# Pallas kernel: one row tile == one layer's MLP.  All weights are resident in
# VMEM; the layer is selected in-kernel with the prefetched per-tile layer id.
# ----------------------------------------------------------------------------
def _skipgram_kernel(tile_layer_ref, x_ref, w1_ref, gb_ref, w2_ref, out_ref):
    lid = tile_layer_ref[pl.program_id(0)]                 # scalar (SMEM)

    x = x_ref[...]                                         # (TN, D)  bf16
    w1 = w1_ref[lid]                                       # (D, H)   bf16
    h = jnp.dot(x, w1, preferred_element_type=jnp.float32)  # (TN, H)  f32

    # LayerNorm (fused single-pass statistics, f32 math, biased variance)
    inv_h = jnp.float32(1.0 / h.shape[-1])
    s1 = jnp.sum(h, axis=-1, keepdims=True)
    s2 = jnp.sum(h * h, axis=-1, keepdims=True)
    mean = s1 * inv_h
    var = jnp.maximum(s2 * inv_h - mean * mean, 0.0)
    hn = (h - mean) * jax.lax.rsqrt(var + LN_EPS)

    gb = gb_ref[lid]                                       # (2, H)  f32
    hn = hn * gb[0:1, :] + gb[1:2, :]

    a = jnp.maximum(hn, 0.0)                               # ReLU
    w2 = w2_ref[lid]                                       # (H, Cpad) bf16
    out = jnp.dot(a.astype(jnp.bfloat16), w2,
                  preferred_element_type=jnp.float32)
    out_ref[...] = out.astype(jnp.bfloat16)                # bf16 writeback


def skipgram_logits_pallas(x_grouped, tile_layer, w1_bf16, gb_f32, w2_bf16, *, tn):
    """x_grouped: (npad, D) bf16 rows already sorted/padded per layer group.
    tile_layer: (num_tiles,) int32 layer id per row tile (scalar prefetch).
    w1_bf16: (L, D, H) bf16; gb_f32: (L, 2, H) f32 (gamma, beta);
    w2_bf16: (L, H, Cpad) bf16 (n_labels zero-padded to 128 lanes)."""
    npad, d = x_grouped.shape
    L, _, h = w1_bf16.shape
    cpad = w2_bf16.shape[-1]
    num_tiles = tile_layer.shape[0]
    assert npad == num_tiles * tn

    grid_spec = pltpu.PrefetchScalarGridSpec(
        num_scalar_prefetch=1,
        grid=(num_tiles,),
        in_specs=[
            pl.BlockSpec((tn, d), lambda t, tl: (t, 0)),           # x tile
            pl.BlockSpec((L, d, h), lambda t, tl: (0, 0, 0)),      # w1 resident
            pl.BlockSpec((L, 2, h), lambda t, tl: (0, 0, 0)),      # gamma/beta
            pl.BlockSpec((L, h, cpad), lambda t, tl: (0, 0, 0)),   # w2 resident
        ],
        out_specs=pl.BlockSpec((tn, cpad), lambda t, tl: (t, 0)),
    )

    # VMEM sized to actual need (double/triple-buffered x + out + resident weights)
    x_blk = tn * d * 2
    out_blk = tn * cpad * 2
    w_bytes = int(w1_bf16.size) * 2 + int(gb_f32.size) * 4 + int(w2_bf16.size) * 2
    vmem_limit = int(min(max(3 * (x_blk + out_blk) + w_bytes + (4 << 20), 16 << 20),
                         48 << 20))

    return pl.pallas_call(
        _skipgram_kernel,
        out_shape=jax.ShapeDtypeStruct((npad, cpad), jnp.bfloat16),
        grid_spec=grid_spec,
        compiler_params=pltpu.CompilerParams(
            dimension_semantics=("parallel",),
            vmem_limit_bytes=vmem_limit),
    )(tile_layer, x_grouped, w1_bf16, gb_f32, w2_bf16)


# ----------------------------------------------------------------------------
# Host-side glue (dynamic-shape gathers; numpy) and hoisted weight prep.
# ----------------------------------------------------------------------------
def get_interaction_pairs(forward_window, backward_window):
    indices = np.arange(MAX_SEQUENCE_LENGTH)
    window = np.concatenate(
        [np.arange(-backward_window, 0), np.arange(1, forward_window + 1)])
    label_indices = indices[:, None] + window[None, :]
    source_indices = np.repeat(indices[:, None], window.shape[0], axis=1)
    mask = (label_indices >= 0) & (label_indices < MAX_SEQUENCE_LENGTH)
    return np.stack([source_indices[mask], label_indices[mask]])  # (2, n_pairs)


def preprocess_data(labels, embeddings, pair_indices):
    batch_size = labels.shape[0]
    labels_ = labels[:, pair_indices.T]                 # (B, n_pairs, 2)
    labels_ = labels_.reshape(-1, 2)
    padding_mask = (labels_ != 0).all(1)
    target_labels = labels_[padding_mask, 1] - 1
    emb_ = embeddings[:, pair_indices[0]]               # (B, n_pairs, D)
    emb_ = emb_.reshape(-1, embeddings.shape[2])
    emb_ = emb_[padding_mask, :]
    rel = pair_indices[0] - pair_indices[1]
    rel = np.tile(rel, (batch_size, 1)).reshape(-1)[padding_mask]
    return emb_, target_labels, rel


def rel_to_layer_id(rel, forward_window, backward_window):
    # layer i (i < fw)   handles rel == i + 1
    # layer i (i >= fw)  handles rel == -(fw + bw - i)
    lid = np.full(rel.shape, -1, dtype=np.int32)
    lid = np.where((rel >= 1) & (rel <= forward_window), rel - 1, lid)
    lid = np.where((rel <= -1) & (rel >= -backward_window),
                   forward_window + backward_window + rel, lid)
    return lid.astype(np.int32)


def group_rows_by_layer(x, lid, n_layers, tn):
    """Sort rows by layer id, pad each group to a multiple of tn, pad the tile
    count to an even number (v7x 2-TC balance).
    Returns (x_grouped_f32, tile_layer, src_rows, valid) or None."""
    n, d = x.shape
    src_chunks, tile_layer = [], []
    for l in range(n_layers):
        rows = np.nonzero(lid == l)[0]
        if rows.size == 0:
            continue
        n_tiles = (rows.size + tn - 1) // tn
        padded = np.full(n_tiles * tn, -1, np.int64)
        padded[:rows.size] = rows
        src_chunks.append(padded)
        tile_layer.extend([l] * n_tiles)
    if not tile_layer:
        return None
    if len(tile_layer) % 2 == 1:                 # even tile count for megacore
        src_chunks.append(np.full(tn, -1, np.int64))
        tile_layer.append(0)
    src_rows = np.concatenate(src_chunks)
    tile_layer = np.asarray(tile_layer, np.int32)
    valid = src_rows >= 0
    x_grouped = np.zeros((src_rows.size, d), np.float32)
    x_grouped[valid] = x[src_rows[valid]]
    return x_grouped, tile_layer, src_rows, valid


def prepare_weights(weights, params):
    """One-time (init-time) conversion/padding of the dense-layer parameters."""
    n_labels = params["n_labels"]
    cpad = ((n_labels + 127) // 128) * 128       # lane-dense output width
    w1 = np.asarray(weights["w1"], np.float32)
    w2 = np.asarray(weights["w2"], np.float32)
    gamma = np.asarray(weights["gamma"], np.float32)   # (L, 1, H)
    beta = np.asarray(weights["beta"], np.float32)     # (L, 1, H)
    L, h = w2.shape[0], w2.shape[1]
    w2_pad = np.zeros((L, h, cpad), np.float32)
    w2_pad[:, :, :n_labels] = w2
    gb = np.concatenate([gamma, beta], axis=1)          # (L, 2, H)
    return {
        "w1": jnp.asarray(w1, jnp.bfloat16),
        "gb": jnp.asarray(gb, jnp.float32),
        "w2": jnp.asarray(w2_pad, jnp.bfloat16),
        "cpad": cpad,
    }


def skipgram_forward(embeddings, labels, params, prepared, *, tn=1024):
    fw, bw = params["forward_window"], params["backward_window"]
    n_labels = params["n_labels"]
    embeddings = np.asarray(embeddings, np.float32)
    labels = np.asarray(labels)
    seq = labels.shape[1]

    pairs = get_interaction_pairs(fw, bw)
    pairs = pairs[:, (pairs < seq).all(0)]
    emb_, target_labels, rel = preprocess_data(labels, embeddings, pairs)
    lid = rel_to_layer_id(rel, fw, bw)

    n = emb_.shape[0]
    n_layers = fw + bw
    logits_np = np.zeros((n, n_labels), np.float32)

    grouped = group_rows_by_layer(emb_, lid, n_layers, tn)
    if grouped is not None:
        x_grouped, tile_layer, src_rows, valid = grouped
        out = skipgram_logits_pallas(
            jnp.asarray(x_grouped, dtype=jnp.bfloat16),    # bf16 input stream
            jnp.asarray(tile_layer),
            prepared["w1"], prepared["gb"], prepared["w2"],
            tn=tn)
        out = np.asarray(jax.block_until_ready(out)).astype(np.float32)
        # scatter back to original (un-grouped) row order; padded rows discarded
        logits_np[src_rows[valid]] = out[valid, :n_labels]

    # rows whose relative position matches no dense layer stay zero (torch behavior)
    return jnp.asarray(logits_np), jnp.asarray(target_labels)


# ----------------------------------------------------------------------------
# Pure-numpy f32 reference of _get_logits for verification
# ----------------------------------------------------------------------------
def ref_logits(emb, lid, w1, gamma, beta, w2):
    n = emb.shape[0]
    L = w1.shape[0]
    c = w2.shape[-1]
    out = np.zeros((n, c), np.float32)
    for l in range(L):
        m = lid == l
        if not m.any():
            continue
        h = emb[m] @ w1[l]
        mean = h.mean(-1, keepdims=True)
        var = ((h - mean) ** 2).mean(-1, keepdims=True)
        hn = (h - mean) / np.sqrt(var + LN_EPS) * gamma[l, 0] + beta[l, 0]
        a = np.maximum(hn, 0.0)
        out[m] = a @ w2[l]
    return out


if __name__ == "__main__":
    # Small, forward-consistent shapes
    B, S = 2, 8
    D_EMB, D_LAYER, N_LABELS = 32, 32, 16
    FW, BW = 2, 2
    L = FW + BW

    params = dict(d_embedding=D_EMB, n_labels=N_LABELS,
                  forward_window=FW, backward_window=BW, d_layer=D_LAYER)

    key = jax.random.PRNGKey(0)
    k_emb, k_lab, k_w1, k_g, k_b, k_w2 = jax.random.split(key, 6)

    embeddings = jax.random.normal(k_emb, (B, S, D_EMB), dtype=jnp.float32)
    labels = jax.random.randint(k_lab, (B, S), 1, N_LABELS + 1, dtype=jnp.int32)
    labels = labels.at[1, -2:].set(0)  # some padding positions (label == 0)

    # Deterministic synthetic parameters for the L dense layers
    weights = {
        "w1": jax.random.normal(k_w1, (L, D_EMB, D_LAYER), jnp.float32) / np.sqrt(D_EMB),
        "gamma": 1.0 + 0.1 * jax.random.normal(k_g, (L, 1, D_LAYER), jnp.float32),
        "beta": 0.1 * jax.random.normal(k_b, (L, 1, D_LAYER), jnp.float32),
        "w2": jax.random.normal(k_w2, (L, D_LAYER, N_LABELS), jnp.float32) / np.sqrt(D_LAYER),
    }

    # Hoisted (init-time) weight conversion/padding
    prepared = prepare_weights(weights, params)

    logits, target_labels = skipgram_forward(embeddings, labels, params, prepared, tn=1024)
    logits = jax.block_until_ready(logits)
    target_labels = jax.block_until_ready(target_labels)

    # Verify against an f32 numpy reference of the same forward
    pairs = get_interaction_pairs(FW, BW)
    pairs = pairs[:, (pairs < S).all(0)]
    emb_, tgt_ref, rel = preprocess_data(np.asarray(labels), np.asarray(embeddings), pairs)
    lid = rel_to_layer_id(rel, FW, BW)
    ref = ref_logits(emb_, lid,
                     np.asarray(weights["w1"]), np.asarray(weights["gamma"]),
                     np.asarray(weights["beta"]), np.asarray(weights["w2"]))
    assert logits.shape == ref.shape and logits.dtype == jnp.float32
    assert np.array_equal(np.asarray(target_labels), tgt_ref)
    assert np.allclose(np.asarray(logits), ref, atol=7.5e-2, rtol=7.5e-2), \
        np.max(np.abs(np.asarray(logits) - ref))

    print("KERNEL_OK")
</pallas_src>

<mosaic_0001>
module attributes {stable_mosaic.version = 11 : i64} {
  func.func @_skipgram_kernel(%arg0: i32, %arg1: memref<4xi32, #tpu.memory_space<smem>>, %arg2: memref<1024x32xbf16, #tpu.memory_space<vmem>>, %arg3: memref<4x32x32xbf16, #tpu.memory_space<vmem>>, %arg4: memref<4x2x32xf32, #tpu.memory_space<vmem>>, %arg5: memref<4x32x128xbf16, #tpu.memory_space<vmem>>, %arg6: memref<1024x128xbf16, #tpu.memory_space<vmem>>) attributes {dimension_semantics = [#tpu.dimension_semantics<parallel>], iteration_bounds = array<i64: 4>, scalar_prefetch = 1 : i64, scratch_operands = 0 : i64, tpu.core_type = #tpu.core_type<tc>, window_params = [{transform_indices = @transform_0, window_bounds = array<i64: 1024, 32>}, {pipeline_mode = #tpu.pipeline_mode<synchronous>, transform_indices = @transform_1, window_bounds = array<i64: 4, 32, 32>}, {pipeline_mode = #tpu.pipeline_mode<synchronous>, transform_indices = @transform_2, window_bounds = array<i64: 4, 2, 32>}, {pipeline_mode = #tpu.pipeline_mode<synchronous>, transform_indices = @transform_3, window_bounds = array<i64: 4, 32, 128>}, {transform_indices = @transform_4, window_bounds = array<i64: 1024, 128>}]} {
    %0 = arith.index_cast %arg0 : i32 to index
    %1 = memref.load %arg1[%0] : memref<4xi32, #tpu.memory_space<smem>>
    %c0 = arith.constant 0 : index
    %c0_0 = arith.constant 0 : index
    %2 = vector.load %arg2[%c0, %c0_0] : memref<1024x32xbf16, #tpu.memory_space<vmem>>, vector<1024x32xbf16>
    %3 = arith.index_cast %1 : i32 to index
    %c0_1 = arith.constant 0 : index
    %c0_2 = arith.constant 0 : index
    %4 = vector.load %arg3[%3, %c0_1, %c0_2] : memref<4x32x32xbf16, #tpu.memory_space<vmem>>, vector<1x32x32xbf16>
    %5 = vector.shape_cast %4 : vector<1x32x32xbf16> to vector<32x32xbf16>
    %cst = arith.constant dense<0.000000e+00> : vector<1024x32xf32>
    %6 = tpu.matmul %2, %5, %cst {dimension_numbers = #tpu.dot_dimension_numbers<[1], [0], [0], [1], [0, 0, 1, 1], [], []>} : vector<1024x32xbf16>, vector<32x32xbf16>, vector<1024x32xf32> -> vector<1024x32xf32>
    %cst_3 = arith.constant dense<0.000000e+00> : vector<1024xf32>
    %7 = vector.multi_reduction <add>, %6, %cst_3 [1] : vector<1024x32xf32> to vector<1024xf32>
    %8 = vector.shape_cast %7 : vector<1024xf32> to vector<1024x1xf32>
    %9 = arith.mulf %6, %6 : vector<1024x32xf32>
    %cst_4 = arith.constant dense<0.000000e+00> : vector<1024xf32>
    %10 = vector.multi_reduction <add>, %9, %cst_4 [1] : vector<1024x32xf32> to vector<1024xf32>
    %11 = vector.shape_cast %10 : vector<1024xf32> to vector<1024x1xf32>
    %cst_5 = arith.constant 3.125000e-02 : f32
    %12 = vector.broadcast %cst_5 : f32 to vector<1024x1xf32>
    %13 = arith.mulf %8, %12 : vector<1024x1xf32>
    %cst_6 = arith.constant 3.125000e-02 : f32
    %14 = vector.broadcast %cst_6 : f32 to vector<1024x1xf32>
    %15 = arith.mulf %11, %14 : vector<1024x1xf32>
    %16 = arith.mulf %13, %13 : vector<1024x1xf32>
    %17 = arith.subf %15, %16 : vector<1024x1xf32>
    %cst_7 = arith.constant 0.000000e+00 : f32
    %18 = vector.broadcast %cst_7 : f32 to vector<1024x1xf32>
    %19 = arith.maximumf %17, %18 : vector<1024x1xf32>
    %20 = vector.broadcast %13 : vector<1024x1xf32> to vector<1024x32xf32>
    %21 = arith.subf %6, %20 : vector<1024x32xf32>
    %cst_8 = arith.constant 9.99999974E-6 : f32
    %22 = vector.broadcast %cst_8 : f32 to vector<1024x1xf32>
    %23 = arith.addf %19, %22 : vector<1024x1xf32>
    %24 = math.rsqrt %23 : vector<1024x1xf32>
    %25 = vector.broadcast %24 : vector<1024x1xf32> to vector<1024x32xf32>
    %26 = arith.mulf %21, %25 : vector<1024x32xf32>
    %27 = arith.index_cast %1 : i32 to index
    %c0_9 = arith.constant 0 : index
    %c0_10 = arith.constant 0 : index
    %28 = vector.load %arg4[%27, %c0_9, %c0_10] : memref<4x2x32xf32, #tpu.memory_space<vmem>>, vector<1x2x32xf32>
    %29 = vector.shape_cast %28 : vector<1x2x32xf32> to vector<2x32xf32>
    %30 = vector.extract_strided_slice %29 {offsets = [0, 0], sizes = [1, 32], strides = [1, 1]} : vector<2x32xf32> to vector<1x32xf32>
    %31 = vector.broadcast %30 : vector<1x32xf32> to vector<1024x32xf32>
    %32 = arith.mulf %26, %31 : vector<1024x32xf32>
    %33 = vector.extract_strided_slice %29 {offsets = [1, 0], sizes = [1, 32], strides = [1, 1]} : vector<2x32xf32> to vector<1x32xf32>
    %34 = vector.broadcast %33 : vector<1x32xf32> to vector<1024x32xf32>
    %35 = arith.addf %32, %34 : vector<1024x32xf32>
    %cst_11 = arith.constant 0.000000e+00 : f32
    %36 = vector.broadcast %cst_11 : f32 to vector<1024x32xf32>
    %37 = arith.maximumf %35, %36 : vector<1024x32xf32>
    %38 = arith.index_cast %1 : i32 to index
    %c0_12 = arith.constant 0 : index
    %c0_13 = arith.constant 0 : index
    %39 = vector.load %arg5[%38, %c0_12, %c0_13] : memref<4x32x128xbf16, #tpu.memory_space<vmem>>, vector<1x32x128xbf16>
    %40 = vector.shape_cast %39 : vector<1x32x128xbf16> to vector<32x128xbf16>
    %41 = arith.truncf %37 : vector<1024x32xf32> to vector<1024x32xbf16>
    %cst_14 = arith.constant dense<0.000000e+00> : vector<1024x128xf32>
    %42 = tpu.matmul %41, %40, %cst_14 {dimension_numbers = #tpu.dot_dimension_numbers<[1], [0], [0], [1], [0, 0, 1, 1], [], []>} : vector<1024x32xbf16>, vector<32x128xbf16>, vector<1024x128xf32> -> vector<1024x128xf32>
    %43 = arith.truncf %42 : vector<1024x128xf32> to vector<1024x128xbf16>
    %c0_15 = arith.constant 0 : index
    %c0_16 = arith.constant 0 : index
    %44 = vector.load %arg6[%c0_15, %c0_16] : memref<1024x128xbf16, #tpu.memory_space<vmem>>, vector<1024x128xbf16>
    tpu.vector_store %arg6[%c0_15, %c0_16], %43 {strides = array<i32>} : memref<1024x128xbf16, #tpu.memory_space<vmem>>, vector<1024x128xbf16>,
    return
  }
  func.func @transform_0(%arg0: i32, %arg1: memref<4xi32, #tpu.memory_space<smem>>) -> (i32, i32) {
    %c0_i32 = arith.constant 0 : i32
    %c0_i32_0 = arith.constant 0 : i32
    return %arg0, %c0_i32 : i32, i32
  }
  func.func @transform_1(%arg0: i32, %arg1: memref<4xi32, #tpu.memory_space<smem>>) -> (i32, i32, i32) {
    %c0_i32 = arith.constant 0 : i32
    %c0_i32_0 = arith.constant 0 : i32
    %c0_i32_1 = arith.constant 0 : i32
    %c0_i32_2 = arith.constant 0 : i32
    return %c0_i32, %c0_i32_0, %c0_i32_1 : i32, i32, i32
  }
  func.func @transform_2(%arg0: i32, %arg1: memref<4xi32, #tpu.memory_space<smem>>) -> (i32, i32, i32) {
    %c0_i32 = arith.constant 0 : i32
    %c0_i32_0 = arith.constant 0 : i32
    %c0_i32_1 = arith.constant 0 : i32
    %c0_i32_2 = arith.constant 0 : i32
    return %c0_i32, %c0_i32_0, %c0_i32_1 : i32, i32, i32
  }
  func.func @transform_3(%arg0: i32, %arg1: memref<4xi32, #tpu.memory_space<smem>>) -> (i32, i32, i32) {
    %c0_i32 = arith.constant 0 : i32
    %c0_i32_0 = arith.constant 0 : i32
    %c0_i32_1 = arith.constant 0 : i32
    %c0_i32_2 = arith.constant 0 : i32
    return %c0_i32, %c0_i32_0, %c0_i32_1 : i32, i32, i32
  }
  func.func @transform_4(%arg0: i32, %arg1: memref<4xi32, #tpu.memory_space<smem>>) -> (i32, i32) {
    %c0_i32 = arith.constant 0 : i32
    %c0_i32_0 = arith.constant 0 : i32
    return %arg0, %c0_i32 : i32, i32
  }
}

</mosaic_0001>

<llo_original>
// kernel: tpu_custom_call.1
$region0: #{tpu_custom_call.1}
  #allocation0 [shape = 'u32[]', space=smem, size = 0x4, offset = 0x4, fixed_abs, tag = 'smem constant byte address 0x4 - core index']
  #allocation1 [shape = 'u32[144,128]{1,0:T(1,128)}', space=vmem, size = 0x12000, scoped, tag = 'internal scratch']
  #allocation2 [shape = 's32[1]{0}', space=sflag, size = 0x4, scoped, tag = 'scoped memory for tpu_custom_call.1']
  #allocation3 [shape = 'u8[512]{0}', space=smem, size = 0x200, scoped, tag = 'prefetched SMEM operand 0']
  %s0 = inlined_call_operand.vmem [shape: s32[4], index: 0, kind: input, shape index: {}]
  %s1 = inlined_call_operand.vmem [shape: bf16[4096,32], index: 1, kind: input, shape index: {}]
  %s2 = inlined_call_operand.vmem [shape: bf16[4,32,32], index: 2, kind: input, shape index: {}]
  %s3 = inlined_call_operand.vmem [shape: f32[4,2,32], index: 3, kind: input, shape index: {}]
  %s4 = inlined_call_operand.vmem [shape: bf16[4,32,128], index: 4, kind: input, shape index: {}]
  %s5 = inlined_call_operand.hbm [shape: bf16[4096,128], index: 5, kind: output, shape index: {}]
  %s6 = sld [smem:[#allocation0]]
  $region49: #{tpu_custom_call.1} parent=0
    _
  %s8 = ssub.s32 1, %s6
  %s9 = scalar_select 0, %s8, %s6
  %s10 = sshll.u32 %s0, 4
  %s11 = int_to_ptr.vmem [resolvable:$true] %s10
  %13 = dma.vmem_to_smem %s11, 16, [#allocation3], [#allocation2]
  %14 = dma.done [#allocation2], 16
  %15 = sfence
  $region1: #{tpu_custom_call.1} parent=0
    #allocation4 [shape = 'u8[524288]{0}', space=vmem, size = 0x80000, scoped, tag = 'output window, operand 0']
    #allocation5 [shape = 's32[2]{0}', space=sflag, size = 0x8, scoped, tag = 'scoped memory for tpu_custom_call.1']
    %16 = vsyncpa [#allocation5], 0
    %s17 = scalar_lea.sflag [#allocation5], 1
    %18 = vsyncpa %s17, 0
    loop: start=0, step=1, limit=6
    $region2: #{tpu_custom_call.1} parent=1 // loop_pre_header
      _
    $region3: #{tpu_custom_call.1} parent=1 // loop_header
      %s20 = sphi 0, %s24
      %p21 = scmp.ge.s32.totalorder %s20, 6
      %s30 = sphi 0, %s32
      %s33 = sphi 0, %s30
      %s34 = sphi 0, %s33
      %s50 = sphi 0, %s34
      %s54 = sphi 0, %s54
      %s56 = sphi 0, %s54
      %s57 = sphi 0, %s56
      %s71 = sphi 0, %s57
      %s75 = sphi 0, %s75
      %s77 = sphi 0, %s75
      %s78 = sphi 0, %s77
      %s92 = sphi 0, %s78
      %s96 = sphi 0, %s96
      %s98 = sphi 0, %s96
      %s99 = sphi 0, %s98
      %s113 = sphi 0, %s99
      %s119 = sphi 0, %s121
      %s122 = sphi 0, %s119
      %s123 = sphi 0, %s122
      %s139 = sphi 0, %s123
    $region4: #{tpu_custom_call.1} parent=1 // loop_header_branch
      %23 = sbr.rel (%p21) target = $region8
    $region5: #{tpu_custom_call.1} parent=1 // loop_body
      %s25 = ssub.s32 %s20, 1
      %s26 = ssub.s32 %s20, 2
      %s27 = sadd.s32 %s20, 1
      %s28 = ssub.s32 %s20, %s27
      %p29 = scmp.eq.s32.totalorder %s28, 0
      %s31 = sadd.s32 %s30, 1
      %s32 = scalar_select %p29, %s30, %s31
      %p35 = pneg %p29
      %p36 = scmp.eq.s32.totalorder %s20, 3
      %p37 = por %p35, %p36
      %p38 = scmp.ne.s32.totalorder %s30, %s33
      %p39 = scmp.eq.s32.totalorder %s20, 0
      %p40 = por %p38, %p39
      %p41 = scmp.ne.s32.totalorder %s30, %s33
      %p42 = scmp.eq.s32.totalorder %s25, 3
      %p43 = por %p41, %p42
      %p44 = scmp.ne.s32.totalorder %s33, %s34
      %p45 = scmp.eq.s32.totalorder %s25, 0
      %p46 = por %p44, %p45
      %p47 = scmp.ne.s32.totalorder %s33, %s34
      %p48 = scmp.eq.s32.totalorder %s26, 3
      %p49 = por %p47, %p48
      %p51 = scmp.ne.s32.totalorder %s34, %s50
      %p52 = scmp.eq.s32.totalorder %s26, 0
      %p53 = por %p51, %p52
      %s55 = sadd.s32 %s54, 1
      %p58 = scmp.eq.s32.totalorder %s20, 3
      %p59 = scmp.ne.s32.totalorder %s54, %s56
      %p60 = scmp.eq.s32.totalorder %s20, 0
      %p61 = por %p59, %p60
      %p62 = scmp.ne.s32.totalorder %s54, %s56
      %p63 = scmp.eq.s32.totalorder %s25, 3
      %p64 = por %p62, %p63
      %p65 = scmp.ne.s32.totalorder %s56, %s57
      %p66 = scmp.eq.s32.totalorder %s25, 0
      %p67 = por %p65, %p66
      %p68 = scmp.ne.s32.totalorder %s56, %s57
      %p69 = scmp.eq.s32.totalorder %s26, 3
      %p70 = por %p68, %p69
      %p72 = scmp.ne.s32.totalorder %s57, %s71
      %p73 = scmp.eq.s32.totalorder %s26, 0
      %p74 = por %p72, %p73
      %s76 = sadd.s32 %s75, 1
      %p79 = scmp.eq.s32.totalorder %s20, 3
      %p80 = scmp.ne.s32.totalorder %s75, %s77
      %p81 = scmp.eq.s32.totalorder %s20, 0
      %p82 = por %p80, %p81
      %p83 = scmp.ne.s32.totalorder %s75, %s77
      %p84 = scmp.eq.s32.totalorder %s25, 3
      %p85 = por %p83, %p84
      %p86 = scmp.ne.s32.totalorder %s77, %s78
      %p87 = scmp.eq.s32.totalorder %s25, 0
      %p88 = por %p86, %p87
      %p89 = scmp.ne.s32.totalorder %s77, %s78
      %p90 = scmp.eq.s32.totalorder %s26, 3
      %p91 = por %p89, %p90
      %p93 = scmp.ne.s32.totalorder %s78, %s92
      %p94 = scmp.eq.s32.totalorder %s26, 0
      %p95 = por %p93, %p94
      %s97 = sadd.s32 %s96, 1
      %p100 = scmp.eq.s32.totalorder %s20, 3
      %p101 = scmp.ne.s32.totalorder %s96, %s98
      %p102 = scmp.eq.s32.totalorder %s20, 0
      %p103 = por %p101, %p102
      %p104 = scmp.ne.s32.totalorder %s96, %s98
      %p105 = scmp.eq.s32.totalorder %s25, 3
      %p106 = por %p104, %p105
      %p107 = scmp.ne.s32.totalorder %s98, %s99
      %p108 = scmp.eq.s32.totalorder %s25, 0
      %p109 = por %p107, %p108
      %p110 = scmp.ne.s32.totalorder %s98, %s99
      %p111 = scmp.eq.s32.totalorder %s26, 3
      %p112 = por %p110, %p111
      %p114 = scmp.ne.s32.totalorder %s99, %s113
      %p115 = scmp.eq.s32.totalorder %s26, 0
      %p116 = por %p114, %p115
      %s117 = ssub.s32 %s20, %s27
      %p118 = scmp.eq.s32.totalorder %s117, 0
      %s120 = sadd.s32 %s119, 1
      %s121 = scalar_select %p118, %s119, %s120
      %p124 = pneg %p118
      %p125 = scmp.eq.s32.totalorder %s20, 3
      %p126 = por %p124, %p125
      %p127 = scmp.ne.s32.totalorder %s119, %s122
      %p128 = scmp.eq.s32.totalorder %s20, 0
      %p129 = por %p127, %p128
      %p130 = scmp.ne.s32.totalorder %s119, %s122
      %p131 = scmp.eq.s32.totalorder %s25, 3
      %p132 = por %p130, %p131
      %p133 = scmp.ne.s32.totalorder %s122, %s123
      %p134 = scmp.eq.s32.totalorder %s25, 0
      %p135 = por %p133, %p134
      %p136 = scmp.ne.s32.totalorder %s122, %s123
      %p137 = scmp.eq.s32.totalorder %s26, 3
      %p138 = por %p136, %p137
      %p140 = scmp.ne.s32.totalorder %s123, %s139
      %p141 = scmp.eq.s32.totalorder %s26, 0
      %p142 = por %p140, %p141
      %p143 = scmp.le.s32.totalorder 1, %s20
      %p144 = scmp.lt.s32.totalorder %s20, 5
      %p145 = pnand %p143, %p144
      %p146 = pneg %p145
      // Predicated region
      $region9: #{tpu_custom_call.1} parent=5 // pred_check
        _
      $region10: #{tpu_custom_call.1} parent=5 // pred_check_branch
        %148 = sbr.rel (%p145) target = $region12
      $region11: #{tpu_custom_call.1} parent=5 // pred_region
        %s149 = ssub.s32 %s20, 1
        // Predicated region
        $region13: #{tpu_custom_call.1} parent=11 // pred_check
          %p150 = pneg %p67
        $region14: #{tpu_custom_call.1} parent=11 // pred_check_branch
          %152 = sbr.rel (%p150) target = $region16
        $region15: #{tpu_custom_call.1} parent=11 // pred_region
          _
        $region16: #{tpu_custom_call.1} parent=11 // pred_fallthru
          _
        // Predicated region
        $region17: #{tpu_custom_call.1} parent=11 // pred_check
          %p153 = pneg %p88
        $region18: #{tpu_custom_call.1} parent=11 // pred_check_branch
          %155 = sbr.rel (%p153) target = $region20
        $region19: #{tpu_custom_call.1} parent=11 // pred_region
          _
        $region20: #{tpu_custom_call.1} parent=11 // pred_fallthru
          _
        // Predicated region
        $region21: #{tpu_custom_call.1} parent=11 // pred_check
          %p156 = pneg %p109
        $region22: #{tpu_custom_call.1} parent=11 // pred_check_branch
          %158 = sbr.rel (%p156) target = $region24
        $region23: #{tpu_custom_call.1} parent=11 // pred_region
          _
        $region24: #{tpu_custom_call.1} parent=11 // pred_fallthru
          _
      $region12: #{tpu_custom_call.1} parent=5 // pred_fallthru
        _
      %p159 = scmp.lt.s32.totalorder %s20, 4
      // Predicated region
      $region25: #{tpu_custom_call.1} parent=5 // pred_check
        %p160 = pneg %p159
      $region26: #{tpu_custom_call.1} parent=5 // pred_check_branch
        %162 = sbr.rel (%p160) target = $region28
      $region27: #{tpu_custom_call.1} parent=5 // pred_region
        // Predicated region
        $region29: #{tpu_custom_call.1} parent=27 // pred_check
          %p163 = pneg %p40
        $region30: #{tpu_custom_call.1} parent=27 // pred_check_branch
          %165 = sbr.rel (%p163) target = $region32
        $region31: #{tpu_custom_call.1} parent=27 // pred_region
          %s166 = smul.u32 128, %s20
          %p167 = scmp.lt.s32.totalorder %s166, 511
          %s168 = scalar_select %p167, %s166, 511
          %s169 = smul.addr %s168, 4
          %s170 = scalar_lea.vmem %s1, %s169
          %s171 = smul.u32 128, %s20
        $region32: #{tpu_custom_call.1} parent=27 // pred_fallthru
          _
      $region28: #{tpu_custom_call.1} parent=5 // pred_fallthru
        _
      %p172 = scmp.le.s32.totalorder 1, %s20
      %p173 = scmp.lt.s32.totalorder %s20, 5
      %p174 = pnand %p172, %p173
      %p175 = pneg %p174
      // Predicated region
      $region33: #{tpu_custom_call.1} parent=5 // pred_check
        _
      $region34: #{tpu_custom_call.1} parent=5 // pred_check_branch
        %177 = sbr.rel (%p174) target = $region36
      $region35: #{tpu_custom_call.1} parent=5 // pred_region
        %s178 = ssub.s32 %s20, 1
        %s179 = smul.u32 128, %s25
        %p180 = scmp.lt.s32.totalorder %s179, 511
        %s181 = scalar_select %p180, %s179, 511
        %s182 = smul.addr %s181, 4
        %s183 = scalar_lea.vmem %s1, %s182
        %p184 = pneg %p46
        %p185 = pneg %p43
        %p186 = pneg %p67
        %p187 = pneg %p64
        %p188 = pneg %p88
        %p189 = pneg %p85
        %p190 = pneg %p109
        %p191 = pneg %p106
        %p192 = pneg %p135
        %p193 = pneg %p132
        %s194 = sand.u32 %s122, 1
        %s195 = scalar_lea.sflag [#allocation5], %s194
        %s196 = sand.u32 %s122, 1
        %s197 = smul.addr %s196, 512
        %s198 = scalar_lea.vmem [#allocation4], %s197
        %s199 = smul.u32 128, %s25
        %p200 = scmp.lt.s32.totalorder %s199, 511
        %s201 = scalar_select %p200, %s199, 511
        %s202 = smul.addr %s201, 4
        %s203 = scalar_lea.vmem %s1, %s202
        %s204 = smul.u32 128, %s25
        %s205 = smul.u32 128, %s25
        %s207 = sld [smem:[#allocation3 + %s25]]
        %v208 = vld [vmem:[%s203] sm:$0xf]
        %v209 = vld [vmem:[%s203 + $0x4] sm:$0xf]
        %v210 = vld [vmem:[%s203 + $0x8] sm:$0xf]
        %v211 = vld [vmem:[%s203 + $0xc] sm:$0xf]
        %v212 = vld [vmem:[%s203 + $0x10] sm:$0xf]
        %v213 = vld [vmem:[%s203 + $0x14] sm:$0xf]
        %v214 = vld [vmem:[%s203 + $0x18] sm:$0xf]
        %v215 = vld [vmem:[%s203 + $0x1c] sm:$0xf]
        %v216 = vld [vmem:[%s203 + $0x20] sm:$0xf]
        %v217 = vld [vmem:[%s203 + $0x24] sm:$0xf]
        %v218 = vld [vmem:[%s203 + $0x28] sm:$0xf]
        %v219 = vld [vmem:[%s203 + $0x2c] sm:$0xf]
        %v220 = vld [vmem:[%s203 + $0x30] sm:$0xf]
        %v221 = vld [vmem:[%s203 + $0x34] sm:$0xf]
        %v222 = vld [vmem:[%s203 + $0x38] sm:$0xf]
        %v223 = vld [vmem:[%s203 + $0x3c] sm:$0xf]
        %v224 = vld [vmem:[%s203 + $0x40] sm:$0xf]
        %v225 = vld [vmem:[%s203 + $0x44] sm:$0xf]
        %v226 = vld [vmem:[%s203 + $0x48] sm:$0xf]
        %v227 = vld [vmem:[%s203 + $0x4c] sm:$0xf]
        %v228 = vld [vmem:[%s203 + $0x50] sm:$0xf]
        %v229 = vld [vmem:[%s203 + $0x54] sm:$0xf]
        %v230 = vld [vmem:[%s203 + $0x58] sm:$0xf]
        %v231 = vld [vmem:[%s203 + $0x5c] sm:$0xf]
        %v232 = vld [vmem:[%s203 + $0x60] sm:$0xf]
        %v233 = vld [vmem:[%s203 + $0x64] sm:$0xf]
        %v234 = vld [vmem:[%s203 + $0x68] sm:$0xf]
        %v235 = vld [vmem:[%s203 + $0x6c] sm:$0xf]
        %v236 = vld [vmem:[%s203 + $0x70] sm:$0xf]
        %v237 = vld [vmem:[%s203 + $0x74] sm:$0xf]
        %v238 = vld [vmem:[%s203 + $0x78] sm:$0xf]
        %v239 = vld [vmem:[%s203 + $0x7c] sm:$0xf]
        %v240 = vld [vmem:[%s203 + $0x80] sm:$0xf]
        %v241 = vld [vmem:[%s203 + $0x84] sm:$0xf]
        %v242 = vld [vmem:[%s203 + $0x88] sm:$0xf]
        %v243 = vld [vmem:[%s203 + $0x8c] sm:$0xf]
        %v244 = vld [vmem:[%s203 + $0x90] sm:$0xf]
        %v245 = vld [vmem:[%s203 + $0x94] sm:$0xf]
        %v246 = vld [vmem:[%s203 + $0x98] sm:$0xf]
        %v247 = vld [vmem:[%s203 + $0x9c] sm:$0xf]
        %v248 = vld [vmem:[%s203 + $0xa0] sm:$0xf]
        %v249 = vld [vmem:[%s203 + $0xa4] sm:$0xf]
        %v250 = vld [vmem:[%s203 + $0xa8] sm:$0xf]
        %v251 = vld [vmem:[%s203 + $0xac] sm:$0xf]
        %v252 = vld [vmem:[%s203 + $0xb0] sm:$0xf]
        %v253 = vld [vmem:[%s203 + $0xb4] sm:$0xf]
        %v254 = vld [vmem:[%s203 + $0xb8] sm:$0xf]
        %v255 = vld [vmem:[%s203 + $0xbc] sm:$0xf]
        %v256 = vld [vmem:[%s203 + $0xc0] sm:$0xf]
        %v257 = vld [vmem:[%s203 + $0xc4] sm:$0xf]
        %v258 = vld [vmem:[%s203 + $0xc8] sm:$0xf]
        %v259 = vld [vmem:[%s203 + $0xcc] sm:$0xf]
        %v260 = vld [vmem:[%s203 + $0xd0] sm:$0xf]
        %v261 = vld [vmem:[%s203 + $0xd4] sm:$0xf]
        %v262 = vld [vmem:[%s203 + $0xd8] sm:$0xf]
        %v263 = vld [vmem:[%s203 + $0xdc] sm:$0xf]
        %v264 = vld [vmem:[%s203 + $0xe0] sm:$0xf]
        %v265 = vld [vmem:[%s203 + $0xe4] sm:$0xf]
        %v266 = vld [vmem:[%s203 + $0xe8] sm:$0xf]
        %v267 = vld [vmem:[%s203 + $0xec] sm:$0xf]
        %v268 = vld [vmem:[%s203 + $0xf0] sm:$0xf]
        %v269 = vld [vmem:[%s203 + $0xf4] sm:$0xf]
        %v270 = vld [vmem:[%s203 + $0xf8] sm:$0xf]
        %v271 = vld [vmem:[%s203 + $0xfc] sm:$0xf]
        %v272 = vld [vmem:[%s203 + $0x100] sm:$0xf]
        %v273 = vld [vmem:[%s203 + $0x104] sm:$0xf]
        %v274 = vld [vmem:[%s203 + $0x108] sm:$0xf]
        %v275 = vld [vmem:[%s203 + $0x10c] sm:$0xf]
        %v276 = vld [vmem:[%s203 + $0x110] sm:$0xf]
        %v277 = vld [vmem:[%s203 + $0x114] sm:$0xf]
        %v278 = vld [vmem:[%s203 + $0x118] sm:$0xf]
        %v279 = vld [vmem:[%s203 + $0x11c] sm:$0xf]
        %v280 = vld [vmem:[%s203 + $0x120] sm:$0xf]
        %v281 = vld [vmem:[%s203 + $0x124] sm:$0xf]
        %v282 = vld [vmem:[%s203 + $0x128] sm:$0xf]
        %v283 = vld [vmem:[%s203 + $0x12c] sm:$0xf]
        %v284 = vld [vmem:[%s203 + $0x130] sm:$0xf]
        %v285 = vld [vmem:[%s203 + $0x134] sm:$0xf]
        %v286 = vld [vmem:[%s203 + $0x138] sm:$0xf]
        %v287 = vld [vmem:[%s203 + $0x13c] sm:$0xf]
        %v288 = vld [vmem:[%s203 + $0x140] sm:$0xf]
        %v289 = vld [vmem:[%s203 + $0x144] sm:$0xf]
        %v290 = vld [vmem:[%s203 + $0x148] sm:$0xf]
        %v291 = vld [vmem:[%s203 + $0x14c] sm:$0xf]
        %v292 = vld [vmem:[%s203 + $0x150] sm:$0xf]
        %v293 = vld [vmem:[%s203 + $0x154] sm:$0xf]
        %v294 = vld [vmem:[%s203 + $0x158] sm:$0xf]
        %v295 = vld [vmem:[%s203 + $0x15c] sm:$0xf]
        %v296 = vld [vmem:[%s203 + $0x160] sm:$0xf]
        %v297 = vld [vmem:[%s203 + $0x164] sm:$0xf]
        %v298 = vld [vmem:[%s203 + $0x168] sm:$0xf]
        %v299 = vld [vmem:[%s203 + $0x16c] sm:$0xf]
        %v300 = vld [vmem:[%s203 + $0x170] sm:$0xf]
        %v301 = vld [vmem:[%s203 + $0x174] sm:$0xf]
        %v302 = vld [vmem:[%s203 + $0x178] sm:$0xf]
        %v303 = vld [vmem:[%s203 + $0x17c] sm:$0xf]
        %v304 = vld [vmem:[%s203 + $0x180] sm:$0xf]
        %v305 = vld [vmem:[%s203 + $0x184] sm:$0xf]
        %v306 = vld [vmem:[%s203 + $0x188] sm:$0xf]
        %v307 = vld [vmem:[%s203 + $0x18c] sm:$0xf]
        %v308 = vld [vmem:[%s203 + $0x190] sm:$0xf]
        %v309 = vld [vmem:[%s203 + $0x194] sm:$0xf]
        %v310 = vld [vmem:[%s203 + $0x198] sm:$0xf]
        %v311 = vld [vmem:[%s203 + $0x19c] sm:$0xf]
        %v312 = vld [vmem:[%s203 + $0x1a0] sm:$0xf]
        %v313 = vld [vmem:[%s203 + $0x1a4] sm:$0xf]
        %v314 = vld [vmem:[%s203 + $0x1a8] sm:$0xf]
        %v315 = vld [vmem:[%s203 + $0x1ac] sm:$0xf]
        %v316 = vld [vmem:[%s203 + $0x1b0] sm:$0xf]
        %v317 = vld [vmem:[%s203 + $0x1b4] sm:$0xf]
        %v318 = vld [vmem:[%s203 + $0x1b8] sm:$0xf]
        %v319 = vld [vmem:[%s203 + $0x1bc] sm:$0xf]
        %v320 = vld [vmem:[%s203 + $0x1c0] sm:$0xf]
        %v321 = vld [vmem:[%s203 + $0x1c4] sm:$0xf]
        %v322 = vld [vmem:[%s203 + $0x1c8] sm:$0xf]
        %v323 = vld [vmem:[%s203 + $0x1cc] sm:$0xf]
        %v324 = vld [vmem:[%s203 + $0x1d0] sm:$0xf]
        %v325 = vld [vmem:[%s203 + $0x1d4] sm:$0xf]
        %v326 = vld [vmem:[%s203 + $0x1d8] sm:$0xf]
        %v327 = vld [vmem:[%s203 + $0x1dc] sm:$0xf]
        %v328 = vld [vmem:[%s203 + $0x1e0] sm:$0xf]
        %v329 = vld [vmem:[%s203 + $0x1e4] sm:$0xf]
        %v330 = vld [vmem:[%s203 + $0x1e8] sm:$0xf]
        %v331 = vld [vmem:[%s203 + $0x1ec] sm:$0xf]
        %v332 = vld [vmem:[%s203 + $0x1f0] sm:$0xf]
        %v333 = vld [vmem:[%s203 + $0x1f4] sm:$0xf]
        %v334 = vld [vmem:[%s203 + $0x1f8] sm:$0xf]
        %v335 = vld [vmem:[%s203 + $0x1fc] sm:$0xf]
        %s336 = smul.u32 %s207, 4
        %s337 = smul.addr %s336, 4
        %s338 = scalar_lea.vmem %s2, %s337
        %v339 = vld [vmem:[%s338] sm:$0xf]
        %v340 = vld [vmem:[%s338 + $0x4] sm:$0xf]
        %v341 = vld [vmem:[%s338 + $0x8] sm:$0xf]
        %v342 = vld [vmem:[%s338 + $0xc] sm:$0xf]
        %v471 = vunpack.c.l.b16 %v208
        %v472 = vunpack.c.l.b16 %v209
        %v473 = vunpack.c.l.b16 %v210
        %v474 = vunpack.c.l.b16 %v211
        %v475 = vunpack.c.l.b16 %v212
        %v476 = vunpack.c.l.b16 %v213
        %v477 = vunpack.c.l.b16 %v214
        %v478 = vunpack.c.l.b16 %v215
        %v479 = vunpack.c.l.b16 %v216
        %v480 = vunpack.c.l.b16 %v217
        %v481 = vunpack.c.l.b16 %v218
        %v482 = vunpack.c.l.b16 %v219
        %v483 = vunpack.c.l.b16 %v220
        %v484 = vunpack.c.l.b16 %v221
        %v485 = vunpack.c.l.b16 %v222
        %v486 = vunpack.c.l.b16 %v223
        %v487 = vunpack.c.l.b16 %v224
        %v488 = vunpack.c.l.b16 %v225
        %v489 = vunpack.c.l.b16 %v226
        %v490 = vunpack.c.l.b16 %v227
        %v491 = vunpack.c.l.b16 %v228
        %v492 = vunpack.c.l.b16 %v229
        %v493 = vunpack.c.l.b16 %v230
        %v494 = vunpack.c.l.b16 %v231
        %v495 = vunpack.c.l.b16 %v232
        %v496 = vunpack.c.l.b16 %v233
        %v497 = vunpack.c.l.b16 %v234
        %v498 = vunpack.c.l.b16 %v235
        %v499 = vunpack.c.l.b16 %v236
        %v500 = vunpack.c.l.b16 %v237
        %v501 = vunpack.c.l.b16 %v238
        %v502 = vunpack.c.l.b16 %v239
        %v503 = vunpack.c.l.b16 %v240
        %v504 = vunpack.c.l.b16 %v241
        %v505 = vunpack.c.l.b16 %v242
        %v506 = vunpack.c.l.b16 %v243
        %v507 = vunpack.c.l.b16 %v244
        %v508 = vunpack.c.l.b16 %v245
        %v509 = vunpack.c.l.b16 %v246
        %v510 = vunpack.c.l.b16 %v247
        %v511 = vunpack.c.l.b16 %v248
        %v512 = vunpack.c.l.b16 %v249
        %v513 = vunpack.c.l.b16 %v250
        %v514 = vunpack.c.l.b16 %v251
        %v515 = vunpack.c.l.b16 %v252
        %v516 = vunpack.c.l.b16 %v253
        %v517 = vunpack.c.l.b16 %v254
        %v518 = vunpack.c.l.b16 %v255
        %v519 = vunpack.c.l.b16 %v256
        %v520 = vunpack.c.l.b16 %v257
        %v521 = vunpack.c.l.b16 %v258
        %v522 = vunpack.c.l.b16 %v259
        %v523 = vunpack.c.l.b16 %v260
        %v524 = vunpack.c.l.b16 %v261
        %v525 = vunpack.c.l.b16 %v262
        %v526 = vunpack.c.l.b16 %v263
        %v527 = vunpack.c.l.b16 %v264
        %v528 = vunpack.c.l.b16 %v265
        %v529 = vunpack.c.l.b16 %v266
        %v530 = vunpack.c.l.b16 %v267
        %v531 = vunpack.c.l.b16 %v268
        %v532 = vunpack.c.l.b16 %v269
        %v533 = vunpack.c.l.b16 %v270
        %v534 = vunpack.c.l.b16 %v271
        %v535 = vunpack.c.l.b16 %v272
        %v536 = vunpack.c.l.b16 %v273
        %v537 = vunpack.c.l.b16 %v274
        %v538 = vunpack.c.l.b16 %v275
        %v539 = vunpack.c.l.b16 %v276
        %v540 = vunpack.c.l.b16 %v277
        %v541 = vunpack.c.l.b16 %v278
        %v542 = vunpack.c.l.b16 %v279
        %v543 = vunpack.c.l.b16 %v280
        %v544 = vunpack.c.l.b16 %v281
        %v545 = vunpack.c.l.b16 %v282
        %v546 = vunpack.c.l.b16 %v283
        %v547 = vunpack.c.l.b16 %v284
        %v548 = vunpack.c.l.b16 %v285
        %v549 = vunpack.c.l.b16 %v286
        %v550 = vunpack.c.l.b16 %v287
        %v551 = vunpack.c.l.b16 %v288
        %v552 = vunpack.c.l.b16 %v289
        %v553 = vunpack.c.l.b16 %v290
        %v554 = vunpack.c.l.b16 %v291
        %v555 = vunpack.c.l.b16 %v292
        %v556 = vunpack.c.l.b16 %v293
        %v557 = vunpack.c.l.b16 %v294
        %v558 = vunpack.c.l.b16 %v295
        %v559 = vunpack.c.l.b16 %v296
        %v560 = vunpack.c.l.b16 %v297
        %v561 = vunpack.c.l.b16 %v298
        %v562 = vunpack.c.l.b16 %v299
        %v563 = vunpack.c.l.b16 %v300
        %v564 = vunpack.c.l.b16 %v301
        %v565 = vunpack.c.l.b16 %v302
        %v566 = vunpack.c.l.b16 %v303
        %v567 = vunpack.c.l.b16 %v304
        %v568 = vunpack.c.l.b16 %v305
        %v569 = vunpack.c.l.b16 %v306
        %v570 = vunpack.c.l.b16 %v307
        %v571 = vunpack.c.l.b16 %v308
        %v572 = vunpack.c.l.b16 %v309
        %v573 = vunpack.c.l.b16 %v310
        %v574 = vunpack.c.l.b16 %v311
        %v575 = vunpack.c.l.b16 %v312
        %v576 = vunpack.c.l.b16 %v313
        %v577 = vunpack.c.l.b16 %v314
        %v578 = vunpack.c.l.b16 %v315
        %v579 = vunpack.c.l.b16 %v316
        %v580 = vunpack.c.l.b16 %v317
        %v581 = vunpack.c.l.b16 %v318
        %v582 = vunpack.c.l.b16 %v319
        %v583 = vunpack.c.l.b16 %v320
        %v584 = vunpack.c.l.b16 %v321
        %v585 = vunpack.c.l.b16 %v322
        %v586 = vunpack.c.l.b16 %v323
        %v587 = vunpack.c.l.b16 %v324
        %v588 = vunpack.c.l.b16 %v325
        %v589 = vunpack.c.l.b16 %v326
        %v590 = vunpack.c.l.b16 %v327
        %v591 = vunpack.c.l.b16 %v328
        %v592 = vunpack.c.l.b16 %v329
        %v593 = vunpack.c.l.b16 %v330
        %v594 = vunpack.c.l.b16 %v331
        %v595 = vunpack.c.l.b16 %v332
        %v596 = vunpack.c.l.b16 %v333
        %v597 = vunpack.c.l.b16 %v334
        %v598 = vunpack.c.l.b16 %v335
        %v599 = vpack.c.b16 %v472, %v471
        %v600 = vpack.c.b16 %v474, %v473
        %v601 = vpack.c.b16 %v476, %v475
        %v602 = vpack.c.b16 %v478, %v477
        %v603 = vpack.c.b16 %v480, %v479
        %v604 = vpack.c.b16 %v482, %v481
        %v605 = vpack.c.b16 %v484, %v483
        %v606 = vpack.c.b16 %v486, %v485
        %v607 = vpack.c.b16 %v488, %v487
        %v608 = vpack.c.b16 %v490, %v489
        %v609 = vpack.c.b16 %v492, %v491
        %v610 = vpack.c.b16 %v494, %v493
        %v611 = vpack.c.b16 %v496, %v495
        %v612 = vpack.c.b16 %v498, %v497
        %v613 = vpack.c.b16 %v500, %v499
        %v614 = vpack.c.b16 %v502, %v501
        %v615 = vpack.c.b16 %v504, %v503
        %v616 = vpack.c.b16 %v506, %v505
        %v617 = vpack.c.b16 %v508, %v507
        %v618 = vpack.c.b16 %v510, %v509
        %v619 = vpack.c.b16 %v512, %v511
        %v620 = vpack.c.b16 %v514, %v513
        %v621 = vpack.c.b16 %v516, %v515
        %v622 = vpack.c.b16 %v518, %v517
        %v623 = vpack.c.b16 %v520, %v519
        %v624 = vpack.c.b16 %v522, %v521
        %v625 = vpack.c.b16 %v524, %v523
        %v626 = vpack.c.b16 %v526, %v525
        %v627 = vpack.c.b16 %v528, %v527
        %v628 = vpack.c.b16 %v530, %v529
        %v629 = vpack.c.b16 %v532, %v531
        %v630 = vpack.c.b16 %v534, %v533
        %v631 = vpack.c.b16 %v536, %v535
        %v632 = vpack.c.b16 %v538, %v537
        %v633 = vpack.c.b16 %v540, %v539
        %v634 = vpack.c.b16 %v542, %v541
        %v635 = vpack.c.b16 %v544, %v543
        %v636 = vpack.c.b16 %v546, %v545
        %v637 = vpack.c.b16 %v548, %v547
        %v638 = vpack.c.b16 %v550, %v549
        %v639 = vpack.c.b16 %v552, %v551
        %v640 = vpack.c.b16 %v554, %v553
        %v641 = vpack.c.b16 %v556, %v555
        %v642 = vpack.c.b16 %v558, %v557
        %v643 = vpack.c.b16 %v560, %v559
        %v644 = vpack.c.b16 %v562, %v561
        %v645 = vpack.c.b16 %v564, %v563
        %v646 = vpack.c.b16 %v566, %v565
        %v647 = vpack.c.b16 %v568, %v567
        %v648 = vpack.c.b16 %v570, %v569
        %v649 = vpack.c.b16 %v572, %v571
        %v650 = vpack.c.b16 %v574, %v573
        %v651 = vpack.c.b16 %v576, %v575
        %v652 = vpack.c.b16 %v578, %v577
        %v653 = vpack.c.b16 %v580, %v579
        %v654 = vpack.c.b16 %v582, %v581
        %v655 = vpack.c.b16 %v584, %v583
        %v656 = vpack.c.b16 %v586, %v585
        %v657 = vpack.c.b16 %v588, %v587
        %v658 = vpack.c.b16 %v590, %v589
        %v659 = vpack.c.b16 %v592, %v591
        %v660 = vpack.c.b16 %v594, %v593
        %v661 = vpack.c.b16 %v596, %v595
        %v662 = vpack.c.b16 %v598, %v597
        %v667 = vunpack.c.l.b16 %v339
        %v668 = vunpack.c.l.b16 %v340
        %v669 = vunpack.c.l.b16 %v341
        %v670 = vunpack.c.l.b16 %v342
        %v671 = vpack.c.b16 %v668, %v667
        %v672 = vpack.c.b16 %v670, %v669
        %vm675 = vcmask 261120
        %v677 = vsel %vm675, %v599, 0
        %v680 = vsel %vm675, %v600, 0
        %v683 = vsel %vm675, %v601, 0
        %v686 = vsel %vm675, %v602, 0
        %v689 = vsel %vm675, %v603, 0
        %v692 = vsel %vm675, %v604, 0
        %v695 = vsel %vm675, %v605, 0
        %v698 = vsel %vm675, %v606, 0
        %v701 = vsel %vm675, %v607, 0
        %v704 = vsel %vm675, %v608, 0
        %v707 = vsel %vm675, %v609, 0
        %v710 = vsel %vm675, %v610, 0
        %v713 = vsel %vm675, %v611, 0
        %v716 = vsel %vm675, %v612, 0
        %v719 = vsel %vm675, %v613, 0
        %v722 = vsel %vm675, %v614, 0
        %v725 = vsel %vm675, %v615, 0
        %v728 = vsel %vm675, %v616, 0
        %v731 = vsel %vm675, %v617, 0
        %v734 = vsel %vm675, %v618, 0
        %v737 = vsel %vm675, %v619, 0
        %v740 = vsel %vm675, %v620, 0
        %v743 = vsel %vm675, %v621, 0
        %v746 = vsel %vm675, %v622, 0
        %v749 = vsel %vm675, %v623, 0
        %v752 = vsel %vm675, %v624, 0
        %v755 = vsel %vm675, %v625, 0
        %v758 = vsel %vm675, %v626, 0
        %v761 = vsel %vm675, %v627, 0
        %v764 = vsel %vm675, %v628, 0
        %v767 = vsel %vm675, %v629, 0
        %v770 = vsel %vm675, %v630, 0
        %v773 = vsel %vm675, %v631, 0
        %v776 = vsel %vm675, %v632, 0
        %v779 = vsel %vm675, %v633, 0
        %v782 = vsel %vm675, %v634, 0
        %v785 = vsel %vm675, %v635, 0
        %v788 = vsel %vm675, %v636, 0
        %v791 = vsel %vm675, %v637, 0
        %v794 = vsel %vm675, %v638, 0
        %v797 = vsel %vm675, %v639, 0
        %v800 = vsel %vm675, %v640, 0
        %v803 = vsel %vm675, %v641, 0
        %v806 = vsel %vm675, %v642, 0
        %v809 = vsel %vm675, %v643, 0
        %v812 = vsel %vm675, %v644, 0
        %v815 = vsel %vm675, %v645, 0
        %v818 = vsel %vm675, %v646, 0
        %v821 = vsel %vm675, %v647, 0
        %v824 = vsel %vm675, %v648, 0
        %v827 = vsel %vm675, %v649, 0
        %v830 = vsel %vm675, %v650, 0
        %v833 = vsel %vm675, %v651, 0
        %v836 = vsel %vm675, %v652, 0
        %v839 = vsel %vm675, %v653, 0
        %v842 = vsel %vm675, %v654, 0
        %v845 = vsel %vm675, %v655, 0
        %v848 = vsel %vm675, %v656, 0
        %v851 = vsel %vm675, %v657, 0
        %v854 = vsel %vm675, %v658, 0
        %v857 = vsel %vm675, %v659, 0
        %v860 = vsel %vm675, %v660, 0
        %v863 = vsel %vm675, %v661, 0
        %v866 = vsel %vm675, %v662, 0
        %868 = vmatprep.subr.bf16.mxu0 0
        %869 = vmatpush1.bf16.msra.mxu0 %v671
        %870 = vmatprep.subr.bf16.mxu0 0
        %871 = vmatpush1.bf16.msra.mxu0 %v672
        %872 = vmatprep.subr.bf16.mxu0 0
        %873 = vmatpush1.bf16.msra.mxu0 0
        %874 = vmatprep.subr.bf16.mxu0 0
        %875 = vmatpush1.bf16.msra.mxu0 0
        %876 = vmatprep.subr.bf16.mxu0 0
        %877 = vmatpush1.bf16.msra.mxu0 0
        %878 = vmatprep.subr.bf16.mxu0 0
        %879 = vmatpush1.bf16.msra.mxu0 0
        %880 = vmatprep.subr.bf16.mxu0 0
        %881 = vmatpush1.bf16.msra.mxu0 0
        %882 = vmatprep.subr.bf16.mxu0 0
        %883 = vmatpush1.bf16.msra.mxu0 0
        %884 = vmatprep.subr.bf16.mxu0 0
        %885 = vmatpush1.bf16.msra.mxu0 0
        %886 = vmatprep.subr.bf16.mxu0 0
        %887 = vmatpush1.bf16.msra.mxu0 0
        %888 = vmatprep.subr.bf16.mxu0 0
        %889 = vmatpush1.bf16.msra.mxu0 0
        %890 = vmatprep.subr.bf16.mxu0 0
        %891 = vmatpush1.bf16.msra.mxu0 0
        %892 = vmatprep.subr.bf16.mxu0 0
        %893 = vmatpush1.bf16.msra.mxu0 0
        %894 = vmatprep.subr.bf16.mxu0 0
        %895 = vmatpush1.bf16.msra.mxu0 0
        %896 = vmatprep.subr.bf16.mxu0 0
        %897 = vmatpush1.bf16.msra.mxu0 0
        %898 = vmatprep.subr.bf16.mxu0 0
        %899 = vmatpush1.bf16.msra.mxu0 0
        %900 = vmatprep.mubr.bf16.mxu0 0
        %901 = vmatmul.mubr.bf16.gmra.mrb[0].mxu0 %v677
        %v902 = vpop.f32.mrb[0].mxu0
        %v903 = vadd.f32 0.0, %v902
        %v904 = vpop.f32.mrb[0].mxu0
        %v905 = vpop.f32.mrb[0].mxu0
        %v906 = vadd.f32 0.0, %v905
        %v907 = vpop.f32.mrb[0].mxu0
        %908 = vmatprep.mubr.bf16.mxu0 0
        %909 = vmatmul.mubr.bf16.gmra.mrb[0].mxu0 %v680
        %v910 = vpop.f32.mrb[0].mxu0
        %v911 = vadd.f32 0.0, %v910
        %v912 = vpop.f32.mrb[0].mxu0
        %v913 = vpop.f32.mrb[0].mxu0
        %v914 = vadd.f32 0.0, %v913
        %v915 = vpop.f32.mrb[0].mxu0
        %916 = vmatprep.mubr.bf16.mxu0 0
        %917 = vmatmul.mubr.bf16.gmra.mrb[0].mxu0 %v683
        %v918 = vpop.f32.mrb[0].mxu0
        %v919 = vadd.f32 0.0, %v918
        %v920 = vpop.f32.mrb[0].mxu0
        %v921 = vpop.f32.mrb[0].mxu0
        %v922 = vadd.f32 0.0, %v921
        %v923 = vpop.f32.mrb[0].mxu0
        %924 = vmatprep.mubr.bf16.mxu0 0
        %925 = vmatmul.mubr.bf16.gmra.mrb[0].mxu0 %v686
        %v926 = vpop.f32.mrb[0].mxu0
        %v927 = vadd.f32 0.0, %v926
        %v928 = vpop.f32.mrb[0].mxu0
        %v929 = vpop.f32.mrb[0].mxu0
        %v930 = vadd.f32 0.0, %v929
        %v931 = vpop.f32.mrb[0].mxu0
        %932 = vmatprep.mubr.bf16.mxu0 0
        %933 = vmatmul.mubr.bf16.gmra.mrb[0].mxu0 %v689
        %v934 = vpop.f32.mrb[0].mxu0
        %v935 = vadd.f32 0.0, %v934
        %v936 = vpop.f32.mrb[0].mxu0
        %v937 = vpop.f32.mrb[0].mxu0
        %v938 = vadd.f32 0.0, %v937
        %v939 = vpop.f32.mrb[0].mxu0
        %940 = vmatprep.mubr.bf16.mxu0 0
        %941 = vmatmul.mubr.bf16.gmra.mrb[0].mxu0 %v692
        %v942 = vpop.f32.mrb[0].mxu0
        %v943 = vadd.f32 0.0, %v942
        %v944 = vpop.f32.mrb[0].mxu0
        %v945 = vpop.f32.mrb[0].mxu0
        %v946 = vadd.f32 0.0, %v945
        %v947 = vpop.f32.mrb[0].mxu0
        %948 = vmatprep.mubr.bf16.mxu0 0
        %949 = vmatmul.mubr.bf16.gmra.mrb[0].mxu0 %v695
        %v950 = vpop.f32.mrb[0].mxu0
        %v951 = vadd.f32 0.0, %v950
        %v952 = vpop.f32.mrb[0].mxu0
        %v953 = vpop.f32.mrb[0].mxu0
        %v954 = vadd.f32 0.0, %v953
        %v955 = vpop.f32.mrb[0].mxu0
        %956 = vmatprep.mubr.bf16.mxu0 0
        %957 = vmatmul.mubr.bf16.gmra.mrb[0].mxu0 %v698
        %v958 = vpop.f32.mrb[0].mxu0
        %v959 = vadd.f32 0.0, %v958
        %v960 = vpop.f32.mrb[0].mxu0
        %v961 = vpop.f32.mrb[0].mxu0
        %v962 = vadd.f32 0.0, %v961
        %v963 = vpop.f32.mrb[0].mxu0
        %964 = vmatprep.mubr.bf16.mxu0 0
        %965 = vmatmul.mubr.bf16.gmra.mrb[0].mxu0 %v701
        %v966 = vpop.f32.mrb[0].mxu0
        %v967 = vadd.f32 0.0, %v966
        %v968 = vpop.f32.mrb[0].mxu0
        %v969 = vpop.f32.mrb[0].mxu0
        %v970 = vadd.f32 0.0, %v969
        %v971 = vpop.f32.mrb[0].mxu0
        %972 = vmatprep.mubr.bf16.mxu0 0
        %973 = vmatmul.mubr.bf16.gmra.mrb[0].mxu0 %v704
        %v974 = vpop.f32.mrb[0].mxu0
        %v975 = vadd.f32 0.0, %v974
        %v976 = vpop.f32.mrb[0].mxu0
        %v977 = vpop.f32.mrb[0].mxu0
        %v978 = vadd.f32 0.0, %v977
        %v979 = vpop.f32.mrb[0].mxu0
        %980 = vmatprep.mubr.bf16.mxu0 0
        %981 = vmatmul.mubr.bf16.gmra.mrb[0].mxu0 %v707
        %v982 = vpop.f32.mrb[0].mxu0
        %v983 = vadd.f32 0.0, %v982
        %v984 = vpop.f32.mrb[0].mxu0
        %v985 = vpop.f32.mrb[0].mxu0
        %v986 = vadd.f32 0.0, %v985
        %v987 = vpop.f32.mrb[0].mxu0
        %988 = vmatprep.mubr.bf16.mxu0 0
        %989 = vmatmul.mubr.bf16.gmra.mrb[0].mxu0 %v710
        %v990 = vpop.f32.mrb[0].mxu0
        %v991 = vadd.f32 0.0, %v990
        %v992 = vpop.f32.mrb[0].mxu0
        %v993 = vpop.f32.mrb[0].mxu0
        %v994 = vadd.f32 0.0, %v993
        %v995 = vpop.f32.mrb[0].mxu0
        %996 = vmatprep.mubr.bf16.mxu0 0
        %997 = vmatmul.mubr.bf16.gmra.mrb[0].mxu0 %v713
        %v998 = vpop.f32.mrb[0].mxu0
        %v999 = vadd.f32 0.0, %v998
        %v1000 = vpop.f32.mrb[0].mxu0
        %v1001 = vpop.f32.mrb[0].mxu0
        %v1002 = vadd.f32 0.0, %v1001
        %v1003 = vpop.f32.mrb[0].mxu0
        %1004 = vmatprep.mubr.bf16.mxu0 0
        %1005 = vmatmul.mubr.bf16.gmra.mrb[0].mxu0 %v716
        %v1006 = vpop.f32.mrb[0].mxu0
        %v1007 = vadd.f32 0.0, %v1006
        %v1008 = vpop.f32.mrb[0].mxu0
        %v1009 = vpop.f32.mrb[0].mxu0
        %v1010 = vadd.f32 0.0, %v1009
        %v1011 = vpop.f32.mrb[0].mxu0
        %1012 = vmatprep.mubr.bf16.mxu0 0
        %1013 = vmatmul.mubr.bf16.gmra.mrb[0].mxu0 %v719
        %v1014 = vpop.f32.mrb[0].mxu0
        %v1015 = vadd.f32 0.0, %v1014
        %v1016 = vpop.f32.mrb[0].mxu0
        %v1017 = vpop.f32.mrb[0].mxu0
        %v1018 = vadd.f32 0.0, %v1017
        %v1019 = vpop.f32.mrb[0].mxu0
        %1020 = vmatprep.mubr.bf16.mxu0 0
        %1021 = vmatmul.mubr.bf16.gmra.mrb[0].mxu0 %v722
        %v1022 = vpop.f32.mrb[0].mxu0
        %v1023 = vadd.f32 0.0, %v1022
        %v1024 = vpop.f32.mrb[0].mxu0
        %v1025 = vpop.f32.mrb[0].mxu0
        %v1026 = vadd.f32 0.0, %v1025
        %v1027 = vpop.f32.mrb[0].mxu0
        %1028 = vmatprep.mubr.bf16.mxu0 0
        %1029 = vmatmul.mubr.bf16.gmra.mrb[0].mxu0 %v725
        %v1030 = vpop.f32.mrb[0].mxu0
        %v1031 = vadd.f32 0.0, %v1030
        %v1032 = vpop.f32.mrb[0].mxu0
        %v1033 = vpop.f32.mrb[0].mxu0
        %v1034 = vadd.f32 0.0, %v1033
        %v1035 = vpop.f32.mrb[0].mxu0
        %1036 = vmatprep.mubr.bf16.mxu0 0
        %1037 = vmatmul.mubr.bf16.gmra.mrb[0].mxu0 %v728
        %v1038 = vpop.f32.mrb[0].mxu0
        %v1039 = vadd.f32 0.0, %v1038
        %v1040 = vpop.f32.mrb[0].mxu0
        %v1041 = vpop.f32.mrb[0].mxu0
        %v1042 = vadd.f32 0.0, %v1041
        %v1043 = vpop.f32.mrb[0].mxu0
        %1044 = vmatprep.mubr.bf16.mxu0 0
        %1045 = vmatmul.mubr.bf16.gmra.mrb[0].mxu0 %v731
        %v1046 = vpop.f32.mrb[0].mxu0
        %v1047 = vadd.f32 0.0, %v1046
        %v1048 = vpop.f32.mrb[0].mxu0
        %v1049 = vpop.f32.mrb[0].mxu0
        %v1050 = vadd.f32 0.0, %v1049
        %v1051 = vpop.f32.mrb[0].mxu0
        %1052 = vmatprep.mubr.bf16.mxu0 0
        %1053 = vmatmul.mubr.bf16.gmra.mrb[0].mxu0 %v734
        %v1054 = vpop.f32.mrb[0].mxu0
        %v1055 = vadd.f32 0.0, %v1054
        %v1056 = vpop.f32.mrb[0].mxu0
        %v1057 = vpop.f32.mrb[0].mxu0
        %v1058 = vadd.f32 0.0, %v1057
        %v1059 = vpop.f32.mrb[0].mxu0
        %1060 = vmatprep.mubr.bf16.mxu0 0
        %1061 = vmatmul.mubr.bf16.gmra.mrb[0].mxu0 %v737
        %v1062 = vpop.f32.mrb[0].mxu0
        %v1063 = vadd.f32 0.0, %v1062
        %v1064 = vpop.f32.mrb[0].mxu0
        %v1065 = vpop.f32.mrb[0].mxu0
        %v1066 = vadd.f32 0.0, %v1065
        %v1067 = vpop.f32.mrb[0].mxu0
        %1068 = vmatprep.mubr.bf16.mxu0 0
        %1069 = vmatmul.mubr.bf16.gmra.mrb[0].mxu0 %v740
        %v1070 = vpop.f32.mrb[0].mxu0
        %v1071 = vadd.f32 0.0, %v1070
        %v1072 = vpop.f32.mrb[0].mxu0
        %v1073 = vpop.f32.mrb[0].mxu0
        %v1074 = vadd.f32 0.0, %v1073
        %v1075 = vpop.f32.mrb[0].mxu0
        %1076 = vmatprep.mubr.bf16.mxu0 0
        %1077 = vmatmul.mubr.bf16.gmra.mrb[0].mxu0 %v743
        %v1078 = vpop.f32.mrb[0].mxu0
        %v1079 = vadd.f32 0.0, %v1078
        %v1080 = vpop.f32.mrb[0].mxu0
        %v1081 = vpop.f32.mrb[0].mxu0
        %v1082 = vadd.f32 0.0, %v1081
        %v1083 = vpop.f32.mrb[0].mxu0
        %1084 = vmatprep.mubr.bf16.mxu0 0
        %1085 = vmatmul.mubr.bf16.gmra.mrb[0].mxu0 %v746
        %v1086 = vpop.f32.mrb[0].mxu0
        %v1087 = vadd.f32 0.0, %v1086
        %v1088 = vpop.f32.mrb[0].mxu0
        %v1089 = vpop.f32.mrb[0].mxu0
        %v1090 = vadd.f32 0.0, %v1089
        %v1091 = vpop.f32.mrb[0].mxu0
        %1092 = vmatprep.mubr.bf16.mxu0 0
        %1093 = vmatmul.mubr.bf16.gmra.mrb[0].mxu0 %v749
        %v1094 = vpop.f32.mrb[0].mxu0
        %v1095 = vadd.f32 0.0, %v1094
        %v1096 = vpop.f32.mrb[0].mxu0
        %v1097 = vpop.f32.mrb[0].mxu0
        %v1098 = vadd.f32 0.0, %v1097
        %v1099 = vpop.f32.mrb[0].mxu0
        %1100 = vmatprep.mubr.bf16.mxu0 0
        %1101 = vmatmul.mubr.bf16.gmra.mrb[0].mxu0 %v752
        %v1102 = vpop.f32.mrb[0].mxu0
        %v1103 = vadd.f32 0.0, %v1102
        %v1104 = vpop.f32.mrb[0].mxu0
        %v1105 = vpop.f32.mrb[0].mxu0
        %v1106 = vadd.f32 0.0, %v1105
        %v1107 = vpop.f32.mrb[0].mxu0
        %1108 = vmatprep.mubr.bf16.mxu0 0
        %1109 = vmatmul.mubr.bf16.gmra.mrb[0].mxu0 %v755
        %v1110 = vpop.f32.mrb[0].mxu0
        %v1111 = vadd.f32 0.0, %v1110
        %v1112 = vpop.f32.mrb[0].mxu0
        %v1113 = vpop.f32.mrb[0].mxu0
        %v1114 = vadd.f32 0.0, %v1113
        %v1115 = vpop.f32.mrb[0].mxu0
        %1116 = vmatprep.mubr.bf16.mxu0 0
        %1117 = vmatmul.mubr.bf16.gmra.mrb[0].mxu0 %v758
        %v1118 = vpop.f32.mrb[0].mxu0
        %v1119 = vadd.f32 0.0, %v1118
        %v1120 = vpop.f32.mrb[0].mxu0
        %v1121 = vpop.f32.mrb[0].mxu0
        %v1122 = vadd.f32 0.0, %v1121
        %v1123 = vpop.f32.mrb[0].mxu0
        %1124 = vmatprep.mubr.bf16.mxu0 0
        %1125 = vmatmul.mubr.bf16.gmra.mrb[0].mxu0 %v761
        %v1126 = vpop.f32.mrb[0].mxu0
        %v1127 = vadd.f32 0.0, %v1126
        %v1128 = vpop.f32.mrb[0].mxu0
        %v1129 = vpop.f32.mrb[0].mxu0
        %v1130 = vadd.f32 0.0, %v1129
        %v1131 = vpop.f32.mrb[0].mxu0
        %1132 = vmatprep.mubr.bf16.mxu0 0
        %1133 = vmatmul.mubr.bf16.gmra.mrb[0].mxu0 %v764
        %v1134 = vpop.f32.mrb[0].mxu0
        %v1135 = vadd.f32 0.0, %v1134
        %v1136 = vpop.f32.mrb[0].mxu0
        %v1137 = vpop.f32.mrb[0].mxu0
        %v1138 = vadd.f32 0.0, %v1137
        %v1139 = vpop.f32.mrb[0].mxu0
        %1140 = vmatprep.mubr.bf16.mxu0 0
        %1141 = vmatmul.mubr.bf16.gmra.mrb[0].mxu0 %v767
        %v1142 = vpop.f32.mrb[0].mxu0
        %v1143 = vadd.f32 0.0, %v1142
        %v1144 = vpop.f32.mrb[0].mxu0
        %v1145 = vpop.f32.mrb[0].mxu0
        %v1146 = vadd.f32 0.0, %v1145
        %v1147 = vpop.f32.mrb[0].mxu0
        %1148 = vmatprep.mubr.bf16.mxu0 0
        %1149 = vmatmul.mubr.bf16.gmra.mrb[0].mxu0 %v770
        %v1150 = vpop.f32.mrb[0].mxu0
        %v1151 = vadd.f32 0.0, %v1150
        %v1152 = vpop.f32.mrb[0].mxu0
        %v1153 = vpop.f32.mrb[0].mxu0
        %v1154 = vadd.f32 0.0, %v1153
        %v1155 = vpop.f32.mrb[0].mxu0
        %1156 = vmatprep.mubr.bf16.mxu0 0
        %1157 = vmatmul.mubr.bf16.gmra.mrb[0].mxu0 %v773
        %v1158 = vpop.f32.mrb[0].mxu0
        %v1159 = vadd.f32 0.0, %v1158
        %v1160 = vpop.f32.mrb[0].mxu0
        %v1161 = vpop.f32.mrb[0].mxu0
        %v1162 = vadd.f32 0.0, %v1161
        %v1163 = vpop.f32.mrb[0].mxu0
        %1164 = vmatprep.mubr.bf16.mxu0 0
        %1165 = vmatmul.mubr.bf16.gmra.mrb[0].mxu0 %v776
        %v1166 = vpop.f32.mrb[0].mxu0
        %v1167 = vadd.f32 0.0, %v1166
        %v1168 = vpop.f32.mrb[0].mxu0
        %v1169 = vpop.f32.mrb[0].mxu0
        %v1170 = vadd.f32 0.0, %v1169
        %v1171 = vpop.f32.mrb[0].mxu0
        %1172 = vmatprep.mubr.bf16.mxu0 0
        %1173 = vmatmul.mubr.bf16.gmra.mrb[0].mxu0 %v779
        %v1174 = vpop.f32.mrb[0].mxu0
        %v1175 = vadd.f32 0.0, %v1174
        %v1176 = vpop.f32.mrb[0].mxu0
        %v1177 = vpop.f32.mrb[0].mxu0
        %v1178 = vadd.f32 0.0, %v1177
        %v1179 = vpop.f32.mrb[0].mxu0
        %1180 = vmatprep.mubr.bf16.mxu0 0
        %1181 = vmatmul.mubr.bf16.gmra.mrb[0].mxu0 %v782
        %v1182 = vpop.f32.mrb[0].mxu0
        %v1183 = vadd.f32 0.0, %v1182
        %v1184 = vpop.f32.mrb[0].mxu0
        %v1185 = vpop.f32.mrb[0].mxu0
        %v1186 = vadd.f32 0.0, %v1185
        %v1187 = vpop.f32.mrb[0].mxu0
        %1188 = vmatprep.mubr.bf16.mxu0 0
        %1189 = vmatmul.mubr.bf16.gmra.mrb[0].mxu0 %v785
        %v1190 = vpop.f32.mrb[0].mxu0
        %v1191 = vadd.f32 0.0, %v1190
        %v1192 = vpop.f32.mrb[0].mxu0
        %v1193 = vpop.f32.mrb[0].mxu0
        %v1194 = vadd.f32 0.0, %v1193
        %v1195 = vpop.f32.mrb[0].mxu0
        %1196 = vmatprep.mubr.bf16.mxu0 0
        %1197 = vmatmul.mubr.bf16.gmra.mrb[0].mxu0 %v788
        %v1198 = vpop.f32.mrb[0].mxu0
        %v1199 = vadd.f32 0.0, %v1198
        %v1200 = vpop.f32.mrb[0].mxu0
        %v1201 = vpop.f32.mrb[0].mxu0
        %v1202 = vadd.f32 0.0, %v1201
        %v1203 = vpop.f32.mrb[0].mxu0
        %1204 = vmatprep.mubr.bf16.mxu0 0
        %1205 = vmatmul.mubr.bf16.gmra.mrb[0].mxu0 %v791
        %v1206 = vpop.f32.mrb[0].mxu0
        %v1207 = vadd.f32 0.0, %v1206
        %v1208 = vpop.f32.mrb[0].mxu0
        %v1209 = vpop.f32.mrb[0].mxu0
        %v1210 = vadd.f32 0.0, %v1209
        %v1211 = vpop.f32.mrb[0].mxu0
        %1212 = vmatprep.mubr.bf16.mxu0 0
        %1213 = vmatmul.mubr.bf16.gmra.mrb[0].mxu0 %v794
        %v1214 = vpop.f32.mrb[0].mxu0
        %v1215 = vadd.f32 0.0, %v1214
        %v1216 = vpop.f32.mrb[0].mxu0
        %v1217 = vpop.f32.mrb[0].mxu0
        %v1218 = vadd.f32 0.0, %v1217
        %v1219 = vpop.f32.mrb[0].mxu0
        %1220 = vmatprep.mubr.bf16.mxu0 0
        %1221 = vmatmul.mubr.bf16.gmra.mrb[0].mxu0 %v797
        %v1222 = vpop.f32.mrb[0].mxu0
        %v1223 = vadd.f32 0.0, %v1222
        %v1224 = vpop.f32.mrb[0].mxu0
        %v1225 = vpop.f32.mrb[0].mxu0
        %v1226 = vadd.f32 0.0, %v1225
        %v1227 = vpop.f32.mrb[0].mxu0
        %1228 = vmatprep.mubr.bf16.mxu0 0
        %1229 = vmatmul.mubr.bf16.gmra.mrb[0].mxu0 %v800
        %v1230 = vpop.f32.mrb[0].mxu0
        %v1231 = vadd.f32 0.0, %v1230
        %v1232 = vpop.f32.mrb[0].mxu0
        %v1233 = vpop.f32.mrb[0].mxu0
        %v1234 = vadd.f32 0.0, %v1233
        %v1235 = vpop.f32.mrb[0].mxu0
        %1236 = vmatprep.mubr.bf16.mxu0 0
        %1237 = vmatmul.mubr.bf16.gmra.mrb[0].mxu0 %v803
        %v1238 = vpop.f32.mrb[0].mxu0
        %v1239 = vadd.f32 0.0, %v1238
        %v1240 = vpop.f32.mrb[0].mxu0
        %v1241 = vpop.f32.mrb[0].mxu0
        %v1242 = vadd.f32 0.0, %v1241
        %v1243 = vpop.f32.mrb[0].mxu0
        %1244 = vmatprep.mubr.bf16.mxu0 0
        %1245 = vmatmul.mubr.bf16.gmra.mrb[0].mxu0 %v806
        %v1246 = vpop.f32.mrb[0].mxu0
        %v1247 = vadd.f32 0.0, %v1246
        %v1248 = vpop.f32.mrb[0].mxu0
        %v1249 = vpop.f32.mrb[0].mxu0
        %v1250 = vadd.f32 0.0, %v1249
        %v1251 = vpop.f32.mrb[0].mxu0
        %1252 = vmatprep.mubr.bf16.mxu0 0
        %1253 = vmatmul.mubr.bf16.gmra.mrb[0].mxu0 %v809
        %v1254 = vpop.f32.mrb[0].mxu0
        %v1255 = vadd.f32 0.0, %v1254
        %v1256 = vpop.f32.mrb[0].mxu0
        %v1257 = vpop.f32.mrb[0].mxu0
        %v1258 = vadd.f32 0.0, %v1257
        %v1259 = vpop.f32.mrb[0].mxu0
        %1260 = vmatprep.mubr.bf16.mxu0 0
        %1261 = vmatmul.mubr.bf16.gmra.mrb[0].mxu0 %v812
        %v1262 = vpop.f32.mrb[0].mxu0
        %v1263 = vadd.f32 0.0, %v1262
        %v1264 = vpop.f32.mrb[0].mxu0
        %v1265 = vpop.f32.mrb[0].mxu0
        %v1266 = vadd.f32 0.0, %v1265
        %v1267 = vpop.f32.mrb[0].mxu0
        %1268 = vmatprep.mubr.bf16.mxu0 0
        %1269 = vmatmul.mubr.bf16.gmra.mrb[0].mxu0 %v815
        %v1270 = vpop.f32.mrb[0].mxu0
        %v1271 = vadd.f32 0.0, %v1270
        %v1272 = vpop.f32.mrb[0].mxu0
        %v1273 = vpop.f32.mrb[0].mxu0
        %v1274 = vadd.f32 0.0, %v1273
        %v1275 = vpop.f32.mrb[0].mxu0
        %1276 = vmatprep.mubr.bf16.mxu0 0
        %1277 = vmatmul.mubr.bf16.gmra.mrb[0].mxu0 %v818
        %v1278 = vpop.f32.mrb[0].mxu0
        %v1279 = vadd.f32 0.0, %v1278
        %v1280 = vpop.f32.mrb[0].mxu0
        %v1281 = vpop.f32.mrb[0].mxu0
        %v1282 = vadd.f32 0.0, %v1281
        %v1283 = vpop.f32.mrb[0].mxu0
        %1284 = vmatprep.mubr.bf16.mxu0 0
        %1285 = vmatmul.mubr.bf16.gmra.mrb[0].mxu0 %v821
        %v1286 = vpop.f32.mrb[0].mxu0
        %v1287 = vadd.f32 0.0, %v1286
        %v1288 = vpop.f32.mrb[0].mxu0
        %v1289 = vpop.f32.mrb[0].mxu0
        %v1290 = vadd.f32 0.0, %v1289
        %v1291 = vpop.f32.mrb[0].mxu0
        %1292 = vmatprep.mubr.bf16.mxu0 0
        %1293 = vmatmul.mubr.bf16.gmra.mrb[0].mxu0 %v824
        %v1294 = vpop.f32.mrb[0].mxu0
        %v1295 = vadd.f32 0.0, %v1294
        %v1296 = vpop.f32.mrb[0].mxu0
        %v1297 = vpop.f32.mrb[0].mxu0
        %v1298 = vadd.f32 0.0, %v1297
        %v1299 = vpop.f32.mrb[0].mxu0
        %1300 = vmatprep.mubr.bf16.mxu0 0
        %1301 = vmatmul.mubr.bf16.gmra.mrb[0].mxu0 %v827
        %v1302 = vpop.f32.mrb[0].mxu0
        %v1303 = vadd.f32 0.0, %v1302
        %v1304 = vpop.f32.mrb[0].mxu0
        %v1305 = vpop.f32.mrb[0].mxu0
        %v1306 = vadd.f32 0.0, %v1305
        %v1307 = vpop.f32.mrb[0].mxu0
        %1308 = vmatprep.mubr.bf16.mxu0 0
        %1309 = vmatmul.mubr.bf16.gmra.mrb[0].mxu0 %v830
        %v1310 = vpop.f32.mrb[0].mxu0
        %v1311 = vadd.f32 0.0, %v1310
        %v1312 = vpop.f32.mrb[0].mxu0
        %v1313 = vpop.f32.mrb[0].mxu0
        %v1314 = vadd.f32 0.0, %v1313
        %v1315 = vpop.f32.mrb[0].mxu0
        %1316 = vmatprep.mubr.bf16.mxu0 0
        %1317 = vmatmul.mubr.bf16.gmra.mrb[0].mxu0 %v833
        %v1318 = vpop.f32.mrb[0].mxu0
        %v1319 = vadd.f32 0.0, %v1318
        %v1320 = vpop.f32.mrb[0].mxu0
        %v1321 = vpop.f32.mrb[0].mxu0
        %v1322 = vadd.f32 0.0, %v1321
        %v1323 = vpop.f32.mrb[0].mxu0
        %1324 = vmatprep.mubr.bf16.mxu0 0
        %1325 = vmatmul.mubr.bf16.gmra.mrb[0].mxu0 %v836
        %v1326 = vpop.f32.mrb[0].mxu0
        %v1327 = vadd.f32 0.0, %v1326
        %v1328 = vpop.f32.mrb[0].mxu0
        %v1329 = vpop.f32.mrb[0].mxu0
        %v1330 = vadd.f32 0.0, %v1329
        %v1331 = vpop.f32.mrb[0].mxu0
        %1332 = vmatprep.mubr.bf16.mxu0 0
        %1333 = vmatmul.mubr.bf16.gmra.mrb[0].mxu0 %v839
        %v1334 = vpop.f32.mrb[0].mxu0
        %v1335 = vadd.f32 0.0, %v1334
        %v1336 = vpop.f32.mrb[0].mxu0
        %v1337 = vpop.f32.mrb[0].mxu0
        %v1338 = vadd.f32 0.0, %v1337
        %v1339 = vpop.f32.mrb[0].mxu0
        %1340 = vmatprep.mubr.bf16.mxu0 0
        %1341 = vmatmul.mubr.bf16.gmra.mrb[0].mxu0 %v842
        %v1342 = vpop.f32.mrb[0].mxu0
        %v1343 = vadd.f32 0.0, %v1342
        %v1344 = vpop.f32.mrb[0].mxu0
        %v1345 = vpop.f32.mrb[0].mxu0
        %v1346 = vadd.f32 0.0, %v1345
        %v1347 = vpop.f32.mrb[0].mxu0
        %1348 = vmatprep.mubr.bf16.mxu0 0
        %1349 = vmatmul.mubr.bf16.gmra.mrb[0].mxu0 %v845
        %v1350 = vpop.f32.mrb[0].mxu0
        %v1351 = vadd.f32 0.0, %v1350
        %v1352 = vpop.f32.mrb[0].mxu0
        %v1353 = vpop.f32.mrb[0].mxu0
        %v1354 = vadd.f32 0.0, %v1353
        %v1355 = vpop.f32.mrb[0].mxu0
        %1356 = vmatprep.mubr.bf16.mxu0 0
        %1357 = vmatmul.mubr.bf16.gmra.mrb[0].mxu0 %v848
        %v1358 = vpop.f32.mrb[0].mxu0
        %v1359 = vadd.f32 0.0, %v1358
        %v1360 = vpop.f32.mrb[0].mxu0
        %v1361 = vpop.f32.mrb[0].mxu0
        %v1362 = vadd.f32 0.0, %v1361
        %v1363 = vpop.f32.mrb[0].mxu0
        %1364 = vmatprep.mubr.bf16.mxu0 0
        %1365 = vmatmul.mubr.bf16.gmra.mrb[0].mxu0 %v851
        %v1366 = vpop.f32.mrb[0].mxu0
        %v1367 = vadd.f32 0.0, %v1366
        %v1368 = vpop.f32.mrb[0].mxu0
        %v1369 = vpop.f32.mrb[0].mxu0
        %v1370 = vadd.f32 0.0, %v1369
        %v1371 = vpop.f32.mrb[0].mxu0
        %1372 = vmatprep.mubr.bf16.mxu0 0
        %1373 = vmatmul.mubr.bf16.gmra.mrb[0].mxu0 %v854
        %v1374 = vpop.f32.mrb[0].mxu0
        %v1375 = vadd.f32 0.0, %v1374
        %v1376 = vpop.f32.mrb[0].mxu0
        %v1377 = vpop.f32.mrb[0].mxu0
        %v1378 = vadd.f32 0.0, %v1377
        %v1379 = vpop.f32.mrb[0].mxu0
        %1380 = vmatprep.mubr.bf16.mxu0 0
        %1381 = vmatmul.mubr.bf16.gmra.mrb[0].mxu0 %v857
        %v1382 = vpop.f32.mrb[0].mxu0
        %v1383 = vadd.f32 0.0, %v1382
        %v1384 = vpop.f32.mrb[0].mxu0
        %v1385 = vpop.f32.mrb[0].mxu0
        %v1386 = vadd.f32 0.0, %v1385
        %v1387 = vpop.f32.mrb[0].mxu0
        %1388 = vmatprep.mubr.bf16.mxu0 0
        %1389 = vmatmul.mubr.bf16.gmra.mrb[0].mxu0 %v860
        %v1390 = vpop.f32.mrb[0].mxu0
        %v1391 = vadd.f32 0.0, %v1390
        %v1392 = vpop.f32.mrb[0].mxu0
        %v1393 = vpop.f32.mrb[0].mxu0
        %v1394 = vadd.f32 0.0, %v1393
        %v1395 = vpop.f32.mrb[0].mxu0
        %1396 = vmatprep.mubr.bf16.mxu0 0
        %1397 = vmatmul.mubr.bf16.gmra.mrb[0].mxu0 %v863
        %v1398 = vpop.f32.mrb[0].mxu0
        %v1399 = vadd.f32 0.0, %v1398
        %v1400 = vpop.f32.mrb[0].mxu0
        %v1401 = vpop.f32.mrb[0].mxu0
        %v1402 = vadd.f32 0.0, %v1401
        %v1403 = vpop.f32.mrb[0].mxu0
        %1404 = vmatprep.mubr.bf16.mxu0 0
        %1405 = vmatmul.mubr.bf16.gmra.mrb[0].mxu0 %v866
        %v1406 = vpop.f32.mrb[0].mxu0
        %v1407 = vadd.f32 0.0, %v1406
        %v1408 = vpop.f32.mrb[0].mxu0
        %v1409 = vpop.f32.mrb[0].mxu0
        %v1410 = vadd.f32 0.0, %v1409
        %v1411 = vpop.f32.mrb[0].mxu0
        %1412 = vdwg.mxu0
        %v1413 = vsel %vm675, %v903, 0.0
        %1414 = vadd.xlane.f32.xlu0 %v1413
        %v1415 = vpop.xlane.xlu0 %1414
        %v1416 = vsel %vm675, %v906, 0.0
        %1417 = vadd.xlane.f32.xlu0 %v1416
        %v1418 = vpop.xlane.xlu0 %1417
        %v1419 = vsel %vm675, %v911, 0.0
        %1420 = vadd.xlane.f32.xlu0 %v1419
        %v1421 = vpop.xlane.xlu0 %1420
        %v1422 = vsel %vm675, %v914, 0.0
        %1423 = vadd.xlane.f32.xlu0 %v1422
        %v1424 = vpop.xlane.xlu0 %1423
        %v1425 = vsel %vm675, %v919, 0.0
        %1426 = vadd.xlane.f32.xlu0 %v1425
        %v1427 = vpop.xlane.xlu0 %1426
        %v1428 = vsel %vm675, %v922, 0.0
        %1429 = vadd.xlane.f32.xlu0 %v1428
        %v1430 = vpop.xlane.xlu0 %1429
        %v1431 = vsel %vm675, %v927, 0.0
        %1432 = vadd.xlane.f32.xlu0 %v1431
        %v1433 = vpop.xlane.xlu0 %1432
        %v1434 = vsel %vm675, %v930, 0.0
        %1435 = vadd.xlane.f32.xlu0 %v1434
        %v1436 = vpop.xlane.xlu0 %1435
        %v1437 = vsel %vm675, %v935, 0.0
        %1438 = vadd.xlane.f32.xlu0 %v1437
        %v1439 = vpop.xlane.xlu0 %1438
        %v1440 = vsel %vm675, %v938, 0.0
        %1441 = vadd.xlane.f32.xlu0 %v1440
        %v1442 = vpop.xlane.xlu0 %1441
        %v1443 = vsel %vm675, %v943, 0.0
        %1444 = vadd.xlane.f32.xlu0 %v1443
        %v1445 = vpop.xlane.xlu0 %1444
        %v1446 = vsel %vm675, %v946, 0.0
        %1447 = vadd.xlane.f32.xlu0 %v1446
        %v1448 = vpop.xlane.xlu0 %1447
        %v1449 = vsel %vm675, %v951, 0.0
        %1450 = vadd.xlane.f32.xlu0 %v1449
        %v1451 = vpop.xlane.xlu0 %1450
        %v1452 = vsel %vm675, %v954, 0.0
        %1453 = vadd.xlane.f32.xlu0 %v1452
        %v1454 = vpop.xlane.xlu0 %1453
        %v1455 = vsel %vm675, %v959, 0.0
        %1456 = vadd.xlane.f32.xlu0 %v1455
        %v1457 = vpop.xlane.xlu0 %1456
        %v1458 = vsel %vm675, %v962, 0.0
        %1459 = vadd.xlane.f32.xlu0 %v1458
        %v1460 = vpop.xlane.xlu0 %1459
        %v1461 = vsel %vm675, %v967, 0.0
        %1462 = vadd.xlane.f32.xlu0 %v1461
        %v1463 = vpop.xlane.xlu0 %1462
        %v1464 = vsel %vm675, %v970, 0.0
        %1465 = vadd.xlane.f32.xlu0 %v1464
        %v1466 = vpop.xlane.xlu0 %1465
        %v1467 = vsel %vm675, %v975, 0.0
        %1468 = vadd.xlane.f32.xlu0 %v1467
        %v1469 = vpop.xlane.xlu0 %1468
        %v1470 = vsel %vm675, %v978, 0.0
        %1471 = vadd.xlane.f32.xlu0 %v1470
        %v1472 = vpop.xlane.xlu0 %1471
        %v1473 = vsel %vm675, %v983, 0.0
        %1474 = vadd.xlane.f32.xlu0 %v1473
        %v1475 = vpop.xlane.xlu0 %1474
        %v1476 = vsel %vm675, %v986, 0.0
        %1477 = vadd.xlane.f32.xlu0 %v1476
        %v1478 = vpop.xlane.xlu0 %1477
        %v1479 = vsel %vm675, %v991, 0.0
        %1480 = vadd.xlane.f32.xlu0 %v1479
        %v1481 = vpop.xlane.xlu0 %1480
        %v1482 = vsel %vm675, %v994, 0.0
        %1483 = vadd.xlane.f32.xlu0 %v1482
        %v1484 = vpop.xlane.xlu0 %1483
        %v1485 = vsel %vm675, %v999, 0.0
        %1486 = vadd.xlane.f32.xlu0 %v1485
        %v1487 = vpop.xlane.xlu0 %1486
        %v1488 = vsel %vm675, %v1002, 0.0
        %1489 = vadd.xlane.f32.xlu0 %v1488
        %v1490 = vpop.xlane.xlu0 %1489
        %v1491 = vsel %vm675, %v1007, 0.0
        %1492 = vadd.xlane.f32.xlu0 %v1491
        %v1493 = vpop.xlane.xlu0 %1492
        %v1494 = vsel %vm675, %v1010, 0.0
        %1495 = vadd.xlane.f32.xlu0 %v1494
        %v1496 = vpop.xlane.xlu0 %1495
        %v1497 = vsel %vm675, %v1015, 0.0
        %1498 = vadd.xlane.f32.xlu0 %v1497
        %v1499 = vpop.xlane.xlu0 %1498
        %v1500 = vsel %vm675, %v1018, 0.0
        %1501 = vadd.xlane.f32.xlu0 %v1500
        %v1502 = vpop.xlane.xlu0 %1501
        %v1503 = vsel %vm675, %v1023, 0.0
        %1504 = vadd.xlane.f32.xlu0 %v1503
        %v1505 = vpop.xlane.xlu0 %1504
        %v1506 = vsel %vm675, %v1026, 0.0
        %1507 = vadd.xlane.f32.xlu0 %v1506
        %v1508 = vpop.xlane.xlu0 %1507
        %v1509 = vsel %vm675, %v1031, 0.0
        %1510 = vadd.xlane.f32.xlu0 %v1509
        %v1511 = vpop.xlane.xlu0 %1510
        %v1512 = vsel %vm675, %v1034, 0.0
        %1513 = vadd.xlane.f32.xlu0 %v1512
        %v1514 = vpop.xlane.xlu0 %1513
        %v1515 = vsel %vm675, %v1039, 0.0
        %1516 = vadd.xlane.f32.xlu0 %v1515
        %v1517 = vpop.xlane.xlu0 %1516
        %v1518 = vsel %vm675, %v1042, 0.0
        %1519 = vadd.xlane.f32.xlu0 %v1518
        %v1520 = vpop.xlane.xlu0 %1519
        %v1521 = vsel %vm675, %v1047, 0.0
        %1522 = vadd.xlane.f32.xlu0 %v1521
        %v1523 = vpop.xlane.xlu0 %1522
        %v1524 = vsel %vm675, %v1050, 0.0
        %1525 = vadd.xlane.f32.xlu0 %v1524
        %v1526 = vpop.xlane.xlu0 %1525
        %v1527 = vsel %vm675, %v1055, 0.0
        %1528 = vadd.xlane.f32.xlu0 %v1527
        %v1529 = vpop.xlane.xlu0 %1528
        %v1530 = vsel %vm675, %v1058, 0.0
        %1531 = vadd.xlane.f32.xlu0 %v1530
        %v1532 = vpop.xlane.xlu0 %1531
        %v1533 = vsel %vm675, %v1063, 0.0
        %1534 = vadd.xlane.f32.xlu0 %v1533
        %v1535 = vpop.xlane.xlu0 %1534
        %v1536 = vsel %vm675, %v1066, 0.0
        %1537 = vadd.xlane.f32.xlu0 %v1536
        %v1538 = vpop.xlane.xlu0 %1537
        %v1539 = vsel %vm675, %v1071, 0.0
        %1540 = vadd.xlane.f32.xlu0 %v1539
        %v1541 = vpop.xlane.xlu0 %1540
        %v1542 = vsel %vm675, %v1074, 0.0
        %1543 = vadd.xlane.f32.xlu0 %v1542
        %v1544 = vpop.xlane.xlu0 %1543
        %v1545 = vsel %vm675, %v1079, 0.0
        %1546 = vadd.xlane.f32.xlu0 %v1545
        %v1547 = vpop.xlane.xlu0 %1546
        %v1548 = vsel %vm675, %v1082, 0.0
        %1549 = vadd.xlane.f32.xlu0 %v1548
        %v1550 = vpop.xlane.xlu0 %1549
        %v1551 = vsel %vm675, %v1087, 0.0
        %1552 = vadd.xlane.f32.xlu0 %v1551
        %v1553 = vpop.xlane.xlu0 %1552
        %v1554 = vsel %vm675, %v1090, 0.0
        %1555 = vadd.xlane.f32.xlu0 %v1554
        %v1556 = vpop.xlane.xlu0 %1555
        %v1557 = vsel %vm675, %v1095, 0.0
        %1558 = vadd.xlane.f32.xlu0 %v1557
        %v1559 = vpop.xlane.xlu0 %1558
        %v1560 = vsel %vm675, %v1098, 0.0
        %1561 = vadd.xlane.f32.xlu0 %v1560
        %v1562 = vpop.xlane.xlu0 %1561
        %v1563 = vsel %vm675, %v1103, 0.0
        %1564 = vadd.xlane.f32.xlu0 %v1563
        %v1565 = vpop.xlane.xlu0 %1564
        %v1566 = vsel %vm675, %v1106, 0.0
        %1567 = vadd.xlane.f32.xlu0 %v1566
        %v1568 = vpop.xlane.xlu0 %1567
        %v1569 = vsel %vm675, %v1111, 0.0
        %1570 = vadd.xlane.f32.xlu0 %v1569
        %v1571 = vpop.xlane.xlu0 %1570
        %v1572 = vsel %vm675, %v1114, 0.0
        %1573 = vadd.xlane.f32.xlu0 %v1572
        %v1574 = vpop.xlane.xlu0 %1573
        %v1575 = vsel %vm675, %v1119, 0.0
        %1576 = vadd.xlane.f32.xlu0 %v1575
        %v1577 = vpop.xlane.xlu0 %1576
        %v1578 = vsel %vm675, %v1122, 0.0
        %1579 = vadd.xlane.f32.xlu0 %v1578
        %v1580 = vpop.xlane.xlu0 %1579
        %v1581 = vsel %vm675, %v1127, 0.0
        %1582 = vadd.xlane.f32.xlu0 %v1581
        %v1583 = vpop.xlane.xlu0 %1582
        %v1584 = vsel %vm675, %v1130, 0.0
        %1585 = vadd.xlane.f32.xlu0 %v1584
        %v1586 = vpop.xlane.xlu0 %1585
        %v1587 = vsel %vm675, %v1135, 0.0
        %1588 = vadd.xlane.f32.xlu0 %v1587
        %v1589 = vpop.xlane.xlu0 %1588
        %v1590 = vsel %vm675, %v1138, 0.0
        %1591 = vadd.xlane.f32.xlu0 %v1590
        %v1592 = vpop.xlane.xlu0 %1591
        %v1593 = vsel %vm675, %v1143, 0.0
        %1594 = vadd.xlane.f32.xlu0 %v1593
        %v1595 = vpop.xlane.xlu0 %1594
        %v1596 = vsel %vm675, %v1146, 0.0
        %1597 = vadd.xlane.f32.xlu0 %v1596
        %v1598 = vpop.xlane.xlu0 %1597
        %v1599 = vsel %vm675, %v1151, 0.0
        %1600 = vadd.xlane.f32.xlu0 %v1599
        %v1601 = vpop.xlane.xlu0 %1600
        %v1602 = vsel %vm675, %v1154, 0.0
        %1603 = vadd.xlane.f32.xlu0 %v1602
        %v1604 = vpop.xlane.xlu0 %1603
        %v1605 = vsel %vm675, %v1159, 0.0
        %1606 = vadd.xlane.f32.xlu0 %v1605
        %v1607 = vpop.xlane.xlu0 %1606
        %v1608 = vsel %vm675, %v1162, 0.0
        %1609 = vadd.xlane.f32.xlu0 %v1608
        %v1610 = vpop.xlane.xlu0 %1609
        %v1611 = vsel %vm675, %v1167, 0.0
        %1612 = vadd.xlane.f32.xlu0 %v1611
        %v1613 = vpop.xlane.xlu0 %1612
        %v1614 = vsel %vm675, %v1170, 0.0
        %1615 = vadd.xlane.f32.xlu0 %v1614
        %v1616 = vpop.xlane.xlu0 %1615
        %v1617 = vsel %vm675, %v1175, 0.0
        %1618 = vadd.xlane.f32.xlu0 %v1617
        %v1619 = vpop.xlane.xlu0 %1618
        %v1620 = vsel %vm675, %v1178, 0.0
        %1621 = vadd.xlane.f32.xlu0 %v1620
        %v1622 = vpop.xlane.xlu0 %1621
        %v1623 = vsel %vm675, %v1183, 0.0
        %1624 = vadd.xlane.f32.xlu0 %v1623
        %v1625 = vpop.xlane.xlu0 %1624
        %v1626 = vsel %vm675, %v1186, 0.0
        %1627 = vadd.xlane.f32.xlu0 %v1626
        %v1628 = vpop.xlane.xlu0 %1627
        %v1629 = vsel %vm675, %v1191, 0.0
        %1630 = vadd.xlane.f32.xlu0 %v1629
        %v1631 = vpop.xlane.xlu0 %1630
        %v1632 = vsel %vm675, %v1194, 0.0
        %1633 = vadd.xlane.f32.xlu0 %v1632
        %v1634 = vpop.xlane.xlu0 %1633
        %v1635 = vsel %vm675, %v1199, 0.0
        %1636 = vadd.xlane.f32.xlu0 %v1635
        %v1637 = vpop.xlane.xlu0 %1636
        %v1638 = vsel %vm675, %v1202, 0.0
        %1639 = vadd.xlane.f32.xlu0 %v1638
        %v1640 = vpop.xlane.xlu0 %1639
        %v1641 = vsel %vm675, %v1207, 0.0
        %1642 = vadd.xlane.f32.xlu0 %v1641
        %v1643 = vpop.xlane.xlu0 %1642
        %v1644 = vsel %vm675, %v1210, 0.0
        %1645 = vadd.xlane.f32.xlu0 %v1644
        %v1646 = vpop.xlane.xlu0 %1645
        %v1647 = vsel %vm675, %v1215, 0.0
        %1648 = vadd.xlane.f32.xlu0 %v1647
        %v1649 = vpop.xlane.xlu0 %1648
        %v1650 = vsel %vm675, %v1218, 0.0
        %1651 = vadd.xlane.f32.xlu0 %v1650
        %v1652 = vpop.xlane.xlu0 %1651
        %v1653 = vsel %vm675, %v1223, 0.0
        %1654 = vadd.xlane.f32.xlu0 %v1653
        %v1655 = vpop.xlane.xlu0 %1654
        %v1656 = vsel %vm675, %v1226, 0.0
        %1657 = vadd.xlane.f32.xlu0 %v1656
        %v1658 = vpop.xlane.xlu0 %1657
        %v1659 = vsel %vm675, %v1231, 0.0
        %1660 = vadd.xlane.f32.xlu0 %v1659
        %v1661 = vpop.xlane.xlu0 %1660
        %v1662 = vsel %vm675, %v1234, 0.0
        %1663 = vadd.xlane.f32.xlu0 %v1662
        %v1664 = vpop.xlane.xlu0 %1663
        %v1665 = vsel %vm675, %v1239, 0.0
        %1666 = vadd.xlane.f32.xlu0 %v1665
        %v1667 = vpop.xlane.xlu0 %1666
        %v1668 = vsel %vm675, %v1242, 0.0
        %1669 = vadd.xlane.f32.xlu0 %v1668
        %v1670 = vpop.xlane.xlu0 %1669
        %v1671 = vsel %vm675, %v1247, 0.0
        %1672 = vadd.xlane.f32.xlu0 %v1671
        %v1673 = vpop.xlane.xlu0 %1672
        %v1674 = vsel %vm675, %v1250, 0.0
        %1675 = vadd.xlane.f32.xlu0 %v1674
        %v1676 = vpop.xlane.xlu0 %1675
        %v1677 = vsel %vm675, %v1255, 0.0
        %1678 = vadd.xlane.f32.xlu0 %v1677
        %v1679 = vpop.xlane.xlu0 %1678
        %v1680 = vsel %vm675, %v1258, 0.0
        %1681 = vadd.xlane.f32.xlu0 %v1680
        %v1682 = vpop.xlane.xlu0 %1681
        %v1683 = vsel %vm675, %v1263, 0.0
        %1684 = vadd.xlane.f32.xlu0 %v1683
        %v1685 = vpop.xlane.xlu0 %1684
        %v1686 = vsel %vm675, %v1266, 0.0
        %1687 = vadd.xlane.f32.xlu0 %v1686
        %v1688 = vpop.xlane.xlu0 %1687
        %v1689 = vsel %vm675, %v1271, 0.0
        %1690 = vadd.xlane.f32.xlu0 %v1689
        %v1691 = vpop.xlane.xlu0 %1690
        %v1692 = vsel %vm675, %v1274, 0.0
        %1693 = vadd.xlane.f32.xlu0 %v1692
        %v1694 = vpop.xlane.xlu0 %1693
        %v1695 = vsel %vm675, %v1279, 0.0
        %1696 = vadd.xlane.f32.xlu0 %v1695
        %v1697 = vpop.xlane.xlu0 %1696
        %v1698 = vsel %vm675, %v1282, 0.0
        %1699 = vadd.xlane.f32.xlu0 %v1698
        %v1700 = vpop.xlane.xlu0 %1699
        %v1701 = vsel %vm675, %v1287, 0.0
        %1702 = vadd.xlane.f32.xlu0 %v1701
        %v1703 = vpop.xlane.xlu0 %1702
        %v1704 = vsel %vm675, %v1290, 0.0
        %1705 = vadd.xlane.f32.xlu0 %v1704
        %v1706 = vpop.xlane.xlu0 %1705
        %v1707 = vsel %vm675, %v1295, 0.0
        %1708 = vadd.xlane.f32.xlu0 %v1707
        %v1709 = vpop.xlane.xlu0 %1708
        %v1710 = vsel %vm675, %v1298, 0.0
        %1711 = vadd.xlane.f32.xlu0 %v1710
        %v1712 = vpop.xlane.xlu0 %1711
        %v1713 = vsel %vm675, %v1303, 0.0
        %1714 = vadd.xlane.f32.xlu0 %v1713
        %v1715 = vpop.xlane.xlu0 %1714
        %v1716 = vsel %vm675, %v1306, 0.0
        %1717 = vadd.xlane.f32.xlu0 %v1716
        %v1718 = vpop.xlane.xlu0 %1717
        %v1719 = vsel %vm675, %v1311, 0.0
        %1720 = vadd.xlane.f32.xlu0 %v1719
        %v1721 = vpop.xlane.xlu0 %1720
        %v1722 = vsel %vm675, %v1314, 0.0
        %1723 = vadd.xlane.f32.xlu0 %v1722
        %v1724 = vpop.xlane.xlu0 %1723
        %v1725 = vsel %vm675, %v1319, 0.0
        %1726 = vadd.xlane.f32.xlu0 %v1725
        %v1727 = vpop.xlane.xlu0 %1726
        %v1728 = vsel %vm675, %v1322, 0.0
        %1729 = vadd.xlane.f32.xlu0 %v1728
        %v1730 = vpop.xlane.xlu0 %1729
        %v1731 = vsel %vm675, %v1327, 0.0
        %1732 = vadd.xlane.f32.xlu0 %v1731
        %v1733 = vpop.xlane.xlu0 %1732
        %v1734 = vsel %vm675, %v1330, 0.0
        %1735 = vadd.xlane.f32.xlu0 %v1734
        %v1736 = vpop.xlane.xlu0 %1735
        %v1737 = vsel %vm675, %v1335, 0.0
        %1738 = vadd.xlane.f32.xlu0 %v1737
        %v1739 = vpop.xlane.xlu0 %1738
        %v1740 = vsel %vm675, %v1338, 0.0
        %1741 = vadd.xlane.f32.xlu0 %v1740
        %v1742 = vpop.xlane.xlu0 %1741
        %v1743 = vsel %vm675, %v1343, 0.0
        %1744 = vadd.xlane.f32.xlu0 %v1743
        %v1745 = vpop.xlane.xlu0 %1744
        %v1746 = vsel %vm675, %v1346, 0.0
        %1747 = vadd.xlane.f32.xlu0 %v1746
        %v1748 = vpop.xlane.xlu0 %1747
        %v1749 = vsel %vm675, %v1351, 0.0
        %1750 = vadd.xlane.f32.xlu0 %v1749
        %v1751 = vpop.xlane.xlu0 %1750
        %v1752 = vsel %vm675, %v1354, 0.0
        %1753 = vadd.xlane.f32.xlu0 %v1752
        %v1754 = vpop.xlane.xlu0 %1753
        %v1755 = vsel %vm675, %v1359, 0.0
        %1756 = vadd.xlane.f32.xlu0 %v1755
        %v1757 = vpop.xlane.xlu0 %1756
        %v1758 = vsel %vm675, %v1362, 0.0
        %1759 = vadd.xlane.f32.xlu0 %v1758
        %v1760 = vpop.xlane.xlu0 %1759
        %v1761 = vsel %vm675, %v1367, 0.0
        %1762 = vadd.xlane.f32.xlu0 %v1761
        %v1763 = vpop.xlane.xlu0 %1762
        %v1764 = vsel %vm675, %v1370, 0.0
        %1765 = vadd.xlane.f32.xlu0 %v1764
        %v1766 = vpop.xlane.xlu0 %1765
        %v1767 = vsel %vm675, %v1375, 0.0
        %1768 = vadd.xlane.f32.xlu0 %v1767
        %v1769 = vpop.xlane.xlu0 %1768
        %v1770 = vsel %vm675, %v1378, 0.0
        %1771 = vadd.xlane.f32.xlu0 %v1770
        %v1772 = vpop.xlane.xlu0 %1771
        %v1773 = vsel %vm675, %v1383, 0.0
        %1774 = vadd.xlane.f32.xlu0 %v1773
        %v1775 = vpop.xlane.xlu0 %1774
        %v1776 = vsel %vm675, %v1386, 0.0
        %1777 = vadd.xlane.f32.xlu0 %v1776
        %v1778 = vpop.xlane.xlu0 %1777
        %v1779 = vsel %vm675, %v1391, 0.0
        %1780 = vadd.xlane.f32.xlu0 %v1779
        %v1781 = vpop.xlane.xlu0 %1780
        %v1782 = vsel %vm675, %v1394, 0.0
        %1783 = vadd.xlane.f32.xlu0 %v1782
        %v1784 = vpop.xlane.xlu0 %1783
        %v1785 = vsel %vm675, %v1399, 0.0
        %1786 = vadd.xlane.f32.xlu0 %v1785
        %v1787 = vpop.xlane.xlu0 %1786
        %v1788 = vsel %vm675, %v1402, 0.0
        %1789 = vadd.xlane.f32.xlu0 %v1788
        %v1790 = vpop.xlane.xlu0 %1789
        %v1791 = vsel %vm675, %v1407, 0.0
        %1792 = vadd.xlane.f32.xlu0 %v1791
        %v1793 = vpop.xlane.xlu0 %1792
        %v1794 = vsel %vm675, %v1410, 0.0
        %1795 = vadd.xlane.f32.xlu0 %v1794
        %v1796 = vpop.xlane.xlu0 %1795
        %v1797 = vmul.f32 %v903, %v903
        %v1798 = vmul.f32 %v906, %v906
        %v1799 = vmul.f32 %v911, %v911
        %v1800 = vmul.f32 %v914, %v914
        %v1801 = vmul.f32 %v919, %v919
        %v1802 = vmul.f32 %v922, %v922
        %v1803 = vmul.f32 %v927, %v927
        %v1804 = vmul.f32 %v930, %v930
        %v1805 = vmul.f32 %v935, %v935
        %v1806 = vmul.f32 %v938, %v938
        %v1807 = vmul.f32 %v943, %v943
        %v1808 = vmul.f32 %v946, %v946
        %v1809 = vmul.f32 %v951, %v951
        %v1810 = vmul.f32 %v954, %v954
        %v1811 = vmul.f32 %v959, %v959
        %v1812 = vmul.f32 %v962, %v962
        %v1813 = vmul.f32 %v967, %v967
        %v1814 = vmul.f32 %v970, %v970
        %v1815 = vmul.f32 %v975, %v975
        %v1816 = vmul.f32 %v978, %v978
        %v1817 = vmul.f32 %v983, %v983
        %v1818 = vmul.f32 %v986, %v986
        %v1819 = vmul.f32 %v991, %v991
        %v1820 = vmul.f32 %v994, %v994
        %v1821 = vmul.f32 %v999, %v999
        %v1822 = vmul.f32 %v1002, %v1002
        %v1823 = vmul.f32 %v1007, %v1007
        %v1824 = vmul.f32 %v1010, %v1010
        %v1825 = vmul.f32 %v1015, %v1015
        %v1826 = vmul.f32 %v1018, %v1018
        %v1827 = vmul.f32 %v1023, %v1023
        %v1828 = vmul.f32 %v1026, %v1026
        %v1829 = vmul.f32 %v1031, %v1031
        %v1830 = vmul.f32 %v1034, %v1034
        %v1831 = vmul.f32 %v1039, %v1039
        %v1832 = vmul.f32 %v1042, %v1042
        %v1833 = vmul.f32 %v1047, %v1047
        %v1834 = vmul.f32 %v1050, %v1050
        %v1835 = vmul.f32 %v1055, %v1055
        %v1836 = vmul.f32 %v1058, %v1058
        %v1837 = vmul.f32 %v1063, %v1063
        %v1838 = vmul.f32 %v1066, %v1066
        %v1839 = vmul.f32 %v1071, %v1071
        %v1840 = vmul.f32 %v1074, %v1074
        %v1841 = vmul.f32 %v1079, %v1079
        %v1842 = vmul.f32 %v1082, %v1082
        %v1843 = vmul.f32 %v1087, %v1087
        %v1844 = vmul.f32 %v1090, %v1090
        %v1845 = vmul.f32 %v1095, %v1095
        %v1846 = vmul.f32 %v1098, %v1098
        %v1847 = vmul.f32 %v1103, %v1103
        %v1848 = vmul.f32 %v1106, %v1106
        %v1849 = vmul.f32 %v1111, %v1111
        %v1850 = vmul.f32 %v1114, %v1114
        %v1851 = vmul.f32 %v1119, %v1119
        %v1852 = vmul.f32 %v1122, %v1122
        %v1853 = vmul.f32 %v1127, %v1127
        %v1854 = vmul.f32 %v1130, %v1130
        %v1855 = vmul.f32 %v1135, %v1135
        %v1856 = vmul.f32 %v1138, %v1138
        %v1857 = vmul.f32 %v1143, %v1143
        %v1858 = vmul.f32 %v1146, %v1146
        %v1859 = vmul.f32 %v1151, %v1151
        %v1860 = vmul.f32 %v1154, %v1154
        %v1861 = vmul.f32 %v1159, %v1159
        %v1862 = vmul.f32 %v1162, %v1162
        %v1863 = vmul.f32 %v1167, %v1167
        %v1864 = vmul.f32 %v1170, %v1170
        %v1865 = vmul.f32 %v1175, %v1175
        %v1866 = vmul.f32 %v1178, %v1178
        %v1867 = vmul.f32 %v1183, %v1183
        %v1868 = vmul.f32 %v1186, %v1186
        %v1869 = vmul.f32 %v1191, %v1191
        %v1870 = vmul.f32 %v1194, %v1194
        %v1871 = vmul.f32 %v1199, %v1199
        %v1872 = vmul.f32 %v1202, %v1202
        %v1873 = vmul.f32 %v1207, %v1207
        %v1874 = vmul.f32 %v1210, %v1210
        %v1875 = vmul.f32 %v1215, %v1215
        %v1876 = vmul.f32 %v1218, %v1218
        %v1877 = vmul.f32 %v1223, %v1223
        %v1878 = vmul.f32 %v1226, %v1226
        %v1879 = vmul.f32 %v1231, %v1231
        %v1880 = vmul.f32 %v1234, %v1234
        %v1881 = vmul.f32 %v1239, %v1239
        %v1882 = vmul.f32 %v1242, %v1242
        %v1883 = vmul.f32 %v1247, %v1247
        %v1884 = vmul.f32 %v1250, %v1250
        %v1885 = vmul.f32 %v1255, %v1255
        %v1886 = vmul.f32 %v1258, %v1258
        %v1887 = vmul.f32 %v1263, %v1263
        %v1888 = vmul.f32 %v1266, %v1266
        %v1889 = vmul.f32 %v1271, %v1271
        %v1890 = vmul.f32 %v1274, %v1274
        %v1891 = vmul.f32 %v1279, %v1279
        %v1892 = vmul.f32 %v1282, %v1282
        %v1893 = vmul.f32 %v1287, %v1287
        %v1894 = vmul.f32 %v1290, %v1290
        %v1895 = vmul.f32 %v1295, %v1295
        %v1896 = vmul.f32 %v1298, %v1298
        %v1897 = vmul.f32 %v1303, %v1303
        %v1898 = vmul.f32 %v1306, %v1306
        %v1899 = vmul.f32 %v1311, %v1311
        %v1900 = vmul.f32 %v1314, %v1314
        %v1901 = vmul.f32 %v1319, %v1319
        %v1902 = vmul.f32 %v1322, %v1322
        %v1903 = vmul.f32 %v1327, %v1327
        %v1904 = vmul.f32 %v1330, %v1330
        %v1905 = vmul.f32 %v1335, %v1335
        %v1906 = vmul.f32 %v1338, %v1338
        %v1907 = vmul.f32 %v1343, %v1343
        %v1908 = vmul.f32 %v1346, %v1346
        %v1909 = vmul.f32 %v1351, %v1351
        %v1910 = vmul.f32 %v1354, %v1354
        %v1911 = vmul.f32 %v1359, %v1359
        %v1912 = vmul.f32 %v1362, %v1362
        %v1913 = vmul.f32 %v1367, %v1367
        %v1914 = vmul.f32 %v1370, %v1370
        %v1915 = vmul.f32 %v1375, %v1375
        %v1916 = vmul.f32 %v1378, %v1378
        %v1917 = vmul.f32 %v1383, %v1383
        %v1918 = vmul.f32 %v1386, %v1386
        %v1919 = vmul.f32 %v1391, %v1391
        %v1920 = vmul.f32 %v1394, %v1394
        %v1921 = vmul.f32 %v1399, %v1399
        %v1922 = vmul.f32 %v1402, %v1402
        %v1923 = vmul.f32 %v1407, %v1407
        %v1924 = vmul.f32 %v1410, %v1410
        %v1925 = vsel %vm675, %v1797, 0.0
        %1926 = vadd.xlane.f32.xlu0 %v1925
        %v1927 = vpop.xlane.xlu0 %1926
        %v1928 = vsel %vm675, %v1798, 0.0
        %1929 = vadd.xlane.f32.xlu0 %v1928
        %v1930 = vpop.xlane.xlu0 %1929
        %v1931 = vsel %vm675, %v1799, 0.0
        %1932 = vadd.xlane.f32.xlu0 %v1931
        %v1933 = vpop.xlane.xlu0 %1932
        %v1934 = vsel %vm675, %v1800, 0.0
        %1935 = vadd.xlane.f32.xlu0 %v1934
        %v1936 = vpop.xlane.xlu0 %1935
        %v1937 = vsel %vm675, %v1801, 0.0
        %1938 = vadd.xlane.f32.xlu0 %v1937
        %v1939 = vpop.xlane.xlu0 %1938
        %v1940 = vsel %vm675, %v1802, 0.0
        %1941 = vadd.xlane.f32.xlu0 %v1940
        %v1942 = vpop.xlane.xlu0 %1941
        %v1943 = vsel %vm675, %v1803, 0.0
        %1944 = vadd.xlane.f32.xlu0 %v1943
        %v1945 = vpop.xlane.xlu0 %1944
        %v1946 = vsel %vm675, %v1804, 0.0
        %1947 = vadd.xlane.f32.xlu0 %v1946
        %v1948 = vpop.xlane.xlu0 %1947
        %v1949 = vsel %vm675, %v1805, 0.0
        %1950 = vadd.xlane.f32.xlu0 %v1949
        %v1951 = vpop.xlane.xlu0 %1950
        %v1952 = vsel %vm675, %v1806, 0.0
        %1953 = vadd.xlane.f32.xlu0 %v1952
        %v1954 = vpop.xlane.xlu0 %1953
        %v1955 = vsel %vm675, %v1807, 0.0
        %1956 = vadd.xlane.f32.xlu0 %v1955
        %v1957 = vpop.xlane.xlu0 %1956
        %v1958 = vsel %vm675, %v1808, 0.0
        %1959 = vadd.xlane.f32.xlu0 %v1958
        %v1960 = vpop.xlane.xlu0 %1959
        %v1961 = vsel %vm675, %v1809, 0.0
        %1962 = vadd.xlane.f32.xlu0 %v1961
        %v1963 = vpop.xlane.xlu0 %1962
        %v1964 = vsel %vm675, %v1810, 0.0
        %1965 = vadd.xlane.f32.xlu0 %v1964
        %v1966 = vpop.xlane.xlu0 %1965
        %v1967 = vsel %vm675, %v1811, 0.0
        %1968 = vadd.xlane.f32.xlu0 %v1967
        %v1969 = vpop.xlane.xlu0 %1968
        %v1970 = vsel %vm675, %v1812, 0.0
        %1971 = vadd.xlane.f32.xlu0 %v1970
        %v1972 = vpop.xlane.xlu0 %1971
        %v1973 = vsel %vm675, %v1813, 0.0
        %1974 = vadd.xlane.f32.xlu0 %v1973
        %v1975 = vpop.xlane.xlu0 %1974
        %v1976 = vsel %vm675, %v1814, 0.0
        %1977 = vadd.xlane.f32.xlu0 %v1976
        %v1978 = vpop.xlane.xlu0 %1977
        %v1979 = vsel %vm675, %v1815, 0.0
        %1980 = vadd.xlane.f32.xlu0 %v1979
        %v1981 = vpop.xlane.xlu0 %1980
        %v1982 = vsel %vm675, %v1816, 0.0
        %1983 = vadd.xlane.f32.xlu0 %v1982
        %v1984 = vpop.xlane.xlu0 %1983
        %v1985 = vsel %vm675, %v1817, 0.0
        %1986 = vadd.xlane.f32.xlu0 %v1985
        %v1987 = vpop.xlane.xlu0 %1986
        %v1988 = vsel %vm675, %v1818, 0.0
        %1989 = vadd.xlane.f32.xlu0 %v1988
        %v1990 = vpop.xlane.xlu0 %1989
        %v1991 = vsel %vm675, %v1819, 0.0
        %1992 = vadd.xlane.f32.xlu0 %v1991
        %v1993 = vpop.xlane.xlu0 %1992
        %v1994 = vsel %vm675, %v1820, 0.0
        %1995 = vadd.xlane.f32.xlu0 %v1994
        %v1996 = vpop.xlane.xlu0 %1995
        %v1997 = vsel %vm675, %v1821, 0.0
        %1998 = vadd.xlane.f32.xlu0 %v1997
        %v1999 = vpop.xlane.xlu0 %1998
        %v2000 = vsel %vm675, %v1822, 0.0
        %2001 = vadd.xlane.f32.xlu0 %v2000
        %v2002 = vpop.xlane.xlu0 %2001
        %v2003 = vsel %vm675, %v1823, 0.0
        %2004 = vadd.xlane.f32.xlu0 %v2003
        %v2005 = vpop.xlane.xlu0 %2004
        %v2006 = vsel %vm675, %v1824, 0.0
        %2007 = vadd.xlane.f32.xlu0 %v2006
        %v2008 = vpop.xlane.xlu0 %2007
        %v2009 = vsel %vm675, %v1825, 0.0
        %2010 = vadd.xlane.f32.xlu0 %v2009
        %v2011 = vpop.xlane.xlu0 %2010
        %v2012 = vsel %vm675, %v1826, 0.0
        %2013 = vadd.xlane.f32.xlu0 %v2012
        %v2014 = vpop.xlane.xlu0 %2013
        %v2015 = vsel %vm675, %v1827, 0.0
        %2016 = vadd.xlane.f32.xlu0 %v2015
        %v2017 = vpop.xlane.xlu0 %2016
        %v2018 = vsel %vm675, %v1828, 0.0
        %2019 = vadd.xlane.f32.xlu0 %v2018
        %v2020 = vpop.xlane.xlu0 %2019
        %v2021 = vsel %vm675, %v1829, 0.0
        %2022 = vadd.xlane.f32.xlu0 %v2021
        %v2023 = vpop.xlane.xlu0 %2022
        %v2024 = vsel %vm675, %v1830, 0.0
        %2025 = vadd.xlane.f32.xlu0 %v2024
        %v2026 = vpop.xlane.xlu0 %2025
        %v2027 = vsel %vm675, %v1831, 0.0
        %2028 = vadd.xlane.f32.xlu0 %v2027
        %v2029 = vpop.xlane.xlu0 %2028
        %v2030 = vsel %vm675, %v1832, 0.0
        %2031 = vadd.xlane.f32.xlu0 %v2030
        %v2032 = vpop.xlane.xlu0 %2031
        %v2033 = vsel %vm675, %v1833, 0.0
        %2034 = vadd.xlane.f32.xlu0 %v2033
        %v2035 = vpop.xlane.xlu0 %2034
        %v2036 = vsel %vm675, %v1834, 0.0
        %2037 = vadd.xlane.f32.xlu0 %v2036
        %v2038 = vpop.xlane.xlu0 %2037
        %v2039 = vsel %vm675, %v1835, 0.0
        %2040 = vadd.xlane.f32.xlu0 %v2039
        %v2041 = vpop.xlane.xlu0 %2040
        %v2042 = vsel %vm675, %v1836, 0.0
        %2043 = vadd.xlane.f32.xlu0 %v2042
        %v2044 = vpop.xlane.xlu0 %2043
        %v2045 = vsel %vm675, %v1837, 0.0
        %2046 = vadd.xlane.f32.xlu0 %v2045
        %v2047 = vpop.xlane.xlu0 %2046
        %v2048 = vsel %vm675, %v1838, 0.0
        %2049 = vadd.xlane.f32.xlu0 %v2048
        %v2050 = vpop.xlane.xlu0 %2049
        %v2051 = vsel %vm675, %v1839, 0.0
        %2052 = vadd.xlane.f32.xlu0 %v2051
        %v2053 = vpop.xlane.xlu0 %2052
        %v2054 = vsel %vm675, %v1840, 0.0
        %2055 = vadd.xlane.f32.xlu0 %v2054
        %v2056 = vpop.xlane.xlu0 %2055
        %v2057 = vsel %vm675, %v1841, 0.0
        %2058 = vadd.xlane.f32.xlu0 %v2057
        %v2059 = vpop.xlane.xlu0 %2058
        %v2060 = vsel %vm675, %v1842, 0.0
        %2061 = vadd.xlane.f32.xlu0 %v2060
        %v2062 = vpop.xlane.xlu0 %2061
        %v2063 = vsel %vm675, %v1843, 0.0
        %2064 = vadd.xlane.f32.xlu0 %v2063
        %v2065 = vpop.xlane.xlu0 %2064
        %v2066 = vsel %vm675, %v1844, 0.0
        %2067 = vadd.xlane.f32.xlu0 %v2066
        %v2068 = vpop.xlane.xlu0 %2067
        %v2069 = vsel %vm675, %v1845, 0.0
        %2070 = vadd.xlane.f32.xlu0 %v2069
        %v2071 = vpop.xlane.xlu0 %2070
        %v2072 = vsel %vm675, %v1846, 0.0
        %2073 = vadd.xlane.f32.xlu0 %v2072
        %v2074 = vpop.xlane.xlu0 %2073
        %v2075 = vsel %vm675, %v1847, 0.0
        %2076 = vadd.xlane.f32.xlu0 %v2075
        %v2077 = vpop.xlane.xlu0 %2076
        %v2078 = vsel %vm675, %v1848, 0.0
        %2079 = vadd.xlane.f32.xlu0 %v2078
        %v2080 = vpop.xlane.xlu0 %2079
        %v2081 = vsel %vm675, %v1849, 0.0
        %2082 = vadd.xlane.f32.xlu0 %v2081
        %v2083 = vpop.xlane.xlu0 %2082
        %v2084 = vsel %vm675, %v1850, 0.0
        %2085 = vadd.xlane.f32.xlu0 %v2084
        %v2086 = vpop.xlane.xlu0 %2085
        %v2087 = vsel %vm675, %v1851, 0.0
        %2088 = vadd.xlane.f32.xlu0 %v2087
        %v2089 = vpop.xlane.xlu0 %2088
        %v2090 = vsel %vm675, %v1852, 0.0
        %2091 = vadd.xlane.f32.xlu0 %v2090
        %v2092 = vpop.xlane.xlu0 %2091
        %v2093 = vsel %vm675, %v1853, 0.0
        %2094 = vadd.xlane.f32.xlu0 %v2093
        %v2095 = vpop.xlane.xlu0 %2094
        %v2096 = vsel %vm675, %v1854, 0.0
        %2097 = vadd.xlane.f32.xlu0 %v2096
        %v2098 = vpop.xlane.xlu0 %2097
        %v2099 = vsel %vm675, %v1855, 0.0
        %2100 = vadd.xlane.f32.xlu0 %v2099
        %v2101 = vpop.xlane.xlu0 %2100
        %v2102 = vsel %vm675, %v1856, 0.0
        %2103 = vadd.xlane.f32.xlu0 %v2102
        %v2104 = vpop.xlane.xlu0 %2103
        %v2105 = vsel %vm675, %v1857, 0.0
        %2106 = vadd.xlane.f32.xlu0 %v2105
        %v2107 = vpop.xlane.xlu0 %2106
        %v2108 = vsel %vm675, %v1858, 0.0
        %2109 = vadd.xlane.f32.xlu0 %v2108
        %v2110 = vpop.xlane.xlu0 %2109
        %v2111 = vsel %vm675, %v1859, 0.0
        %2112 = vadd.xlane.f32.xlu0 %v2111
        %v2113 = vpop.xlane.xlu0 %2112
        %v2114 = vsel %vm675, %v1860, 0.0
        %2115 = vadd.xlane.f32.xlu0 %v2114
        %v2116 = vpop.xlane.xlu0 %2115
        %v2117 = vsel %vm675, %v1861, 0.0
        %2118 = vadd.xlane.f32.xlu0 %v2117
        %v2119 = vpop.xlane.xlu0 %2118
        %v2120 = vsel %vm675, %v1862, 0.0
        %2121 = vadd.xlane.f32.xlu0 %v2120
        %v2122 = vpop.xlane.xlu0 %2121
        %v2123 = vsel %vm675, %v1863, 0.0
        %2124 = vadd.xlane.f32.xlu0 %v2123
        %v2125 = vpop.xlane.xlu0 %2124
        %v2126 = vsel %vm675, %v1864, 0.0
        %2127 = vadd.xlane.f32.xlu0 %v2126
        %v2128 = vpop.xlane.xlu0 %2127
        %v2129 = vsel %vm675, %v1865, 0.0
        %2130 = vadd.xlane.f32.xlu0 %v2129
        %v2131 = vpop.xlane.xlu0 %2130
        %v2132 = vsel %vm675, %v1866, 0.0
        %2133 = vadd.xlane.f32.xlu0 %v2132
        %v2134 = vpop.xlane.xlu0 %2133
        %v2135 = vsel %vm675, %v1867, 0.0
        %2136 = vadd.xlane.f32.xlu0 %v2135
        %v2137 = vpop.xlane.xlu0 %2136
        %v2138 = vsel %vm675, %v1868, 0.0
        %2139 = vadd.xlane.f32.xlu0 %v2138
        %v2140 = vpop.xlane.xlu0 %2139
        %v2141 = vsel %vm675, %v1869, 0.0
        %2142 = vadd.xlane.f32.xlu0 %v2141
        %v2143 = vpop.xlane.xlu0 %2142
        %v2144 = vsel %vm675, %v1870, 0.0
        %2145 = vadd.xlane.f32.xlu0 %v2144
        %v2146 = vpop.xlane.xlu0 %2145
        %v2147 = vsel %vm675, %v1871, 0.0
        %2148 = vadd.xlane.f32.xlu0 %v2147
        %v2149 = vpop.xlane.xlu0 %2148
        %v2150 = vsel %vm675, %v1872, 0.0
        %2151 = vadd.xlane.f32.xlu0 %v2150
        %v2152 = vpop.xlane.xlu0 %2151
        %v2153 = vsel %vm675, %v1873, 0.0
        %2154 = vadd.xlane.f32.xlu0 %v2153
        %v2155 = vpop.xlane.xlu0 %2154
        %v2156 = vsel %vm675, %v1874, 0.0
        %2157 = vadd.xlane.f32.xlu0 %v2156
        %v2158 = vpop.xlane.xlu0 %2157
        %v2159 = vsel %vm675, %v1875, 0.0
        %2160 = vadd.xlane.f32.xlu0 %v2159
        %v2161 = vpop.xlane.xlu0 %2160
        %v2162 = vsel %vm675, %v1876, 0.0
        %2163 = vadd.xlane.f32.xlu0 %v2162
        %v2164 = vpop.xlane.xlu0 %2163
        %v2165 = vsel %vm675, %v1877, 0.0
        %2166 = vadd.xlane.f32.xlu0 %v2165
        %v2167 = vpop.xlane.xlu0 %2166
        %v2168 = vsel %vm675, %v1878, 0.0
        %2169 = vadd.xlane.f32.xlu0 %v2168
        %v2170 = vpop.xlane.xlu0 %2169
        %v2171 = vsel %vm675, %v1879, 0.0
        %2172 = vadd.xlane.f32.xlu0 %v2171
        %v2173 = vpop.xlane.xlu0 %2172
        %v2174 = vsel %vm675, %v1880, 0.0
        %2175 = vadd.xlane.f32.xlu0 %v2174
        %v2176 = vpop.xlane.xlu0 %2175
        %v2177 = vsel %vm675, %v1881, 0.0
        %2178 = vadd.xlane.f32.xlu0 %v2177
        %v2179 = vpop.xlane.xlu0 %2178
        %v2180 = vsel %vm675, %v1882, 0.0
        %2181 = vadd.xlane.f32.xlu0 %v2180
        %v2182 = vpop.xlane.xlu0 %2181
        %v2183 = vsel %vm675, %v1883, 0.0
        %2184 = vadd.xlane.f32.xlu0 %v2183
        %v2185 = vpop.xlane.xlu0 %2184
        %v2186 = vsel %vm675, %v1884, 0.0
        %2187 = vadd.xlane.f32.xlu0 %v2186
        %v2188 = vpop.xlane.xlu0 %2187
        %v2189 = vsel %vm675, %v1885, 0.0
        %2190 = vadd.xlane.f32.xlu0 %v2189
        %v2191 = vpop.xlane.xlu0 %2190
        %v2192 = vsel %vm675, %v1886, 0.0
        %2193 = vadd.xlane.f32.xlu0 %v2192
        %v2194 = vpop.xlane.xlu0 %2193
        %v2195 = vsel %vm675, %v1887, 0.0
        %2196 = vadd.xlane.f32.xlu0 %v2195
        %v2197 = vpop.xlane.xlu0 %2196
        %v2198 = vsel %vm675, %v1888, 0.0
        %2199 = vadd.xlane.f32.xlu0 %v2198
        %v2200 = vpop.xlane.xlu0 %2199
        %v2201 = vsel %vm675, %v1889, 0.0
        %2202 = vadd.xlane.f32.xlu0 %v2201
        %v2203 = vpop.xlane.xlu0 %2202
        %v2204 = vsel %vm675, %v1890, 0.0
        %2205 = vadd.xlane.f32.xlu0 %v2204
        %v2206 = vpop.xlane.xlu0 %2205
        %v2207 = vsel %vm675, %v1891, 0.0
        %2208 = vadd.xlane.f32.xlu0 %v2207
        %v2209 = vpop.xlane.xlu0 %2208
        %v2210 = vsel %vm675, %v1892, 0.0
        %2211 = vadd.xlane.f32.xlu0 %v2210
        %v2212 = vpop.xlane.xlu0 %2211
        %v2213 = vsel %vm675, %v1893, 0.0
        %2214 = vadd.xlane.f32.xlu0 %v2213
        %v2215 = vpop.xlane.xlu0 %2214
        %v2216 = vsel %vm675, %v1894, 0.0
        %2217 = vadd.xlane.f32.xlu0 %v2216
        %v2218 = vpop.xlane.xlu0 %2217
        %v2219 = vsel %vm675, %v1895, 0.0
        %2220 = vadd.xlane.f32.xlu0 %v2219
        %v2221 = vpop.xlane.xlu0 %2220
        %v2222 = vsel %vm675, %v1896, 0.0
        %2223 = vadd.xlane.f32.xlu0 %v2222
        %v2224 = vpop.xlane.xlu0 %2223
        %v2225 = vsel %vm675, %v1897, 0.0
        %2226 = vadd.xlane.f32.xlu0 %v2225
        %v2227 = vpop.xlane.xlu0 %2226
        %v2228 = vsel %vm675, %v1898, 0.0
        %2229 = vadd.xlane.f32.xlu0 %v2228
        %v2230 = vpop.xlane.xlu0 %2229
        %v2231 = vsel %vm675, %v1899, 0.0
        %2232 = vadd.xlane.f32.xlu0 %v2231
        %v2233 = vpop.xlane.xlu0 %2232
        %v2234 = vsel %vm675, %v1900, 0.0
        %2235 = vadd.xlane.f32.xlu0 %v2234
        %v2236 = vpop.xlane.xlu0 %2235
        %v2237 = vsel %vm675, %v1901, 0.0
        %2238 = vadd.xlane.f32.xlu0 %v2237
        %v2239 = vpop.xlane.xlu0 %2238
        %v2240 = vsel %vm675, %v1902, 0.0
        %2241 = vadd.xlane.f32.xlu0 %v2240
        %v2242 = vpop.xlane.xlu0 %2241
        %v2243 = vsel %vm675, %v1903, 0.0
        %2244 = vadd.xlane.f32.xlu0 %v2243
        %v2245 = vpop.xlane.xlu0 %2244
        %v2246 = vsel %vm675, %v1904, 0.0
        %2247 = vadd.xlane.f32.xlu0 %v2246
        %v2248 = vpop.xlane.xlu0 %2247
        %v2249 = vsel %vm675, %v1905, 0.0
        %2250 = vadd.xlane.f32.xlu0 %v2249
        %v2251 = vpop.xlane.xlu0 %2250
        %v2252 = vsel %vm675, %v1906, 0.0
        %2253 = vadd.xlane.f32.xlu0 %v2252
        %v2254 = vpop.xlane.xlu0 %2253
        %v2255 = vsel %vm675, %v1907, 0.0
        %2256 = vadd.xlane.f32.xlu0 %v2255
        %v2257 = vpop.xlane.xlu0 %2256
        %v2258 = vsel %vm675, %v1908, 0.0
        %2259 = vadd.xlane.f32.xlu0 %v2258
        %v2260 = vpop.xlane.xlu0 %2259
        %v2261 = vsel %vm675, %v1909, 0.0
        %2262 = vadd.xlane.f32.xlu0 %v2261
        %v2263 = vpop.xlane.xlu0 %2262
        %v2264 = vsel %vm675, %v1910, 0.0
        %2265 = vadd.xlane.f32.xlu0 %v2264
        %v2266 = vpop.xlane.xlu0 %2265
        %v2267 = vsel %vm675, %v1911, 0.0
        %2268 = vadd.xlane.f32.xlu0 %v2267
        %v2269 = vpop.xlane.xlu0 %2268
        %v2270 = vsel %vm675, %v1912, 0.0
        %2271 = vadd.xlane.f32.xlu0 %v2270
        %v2272 = vpop.xlane.xlu0 %2271
        %v2273 = vsel %vm675, %v1913, 0.0
        %2274 = vadd.xlane.f32.xlu0 %v2273
        %v2275 = vpop.xlane.xlu0 %2274
        %v2276 = vsel %vm675, %v1914, 0.0
        %2277 = vadd.xlane.f32.xlu0 %v2276
        %v2278 = vpop.xlane.xlu0 %2277
        %v2279 = vsel %vm675, %v1915, 0.0
        %2280 = vadd.xlane.f32.xlu0 %v2279
        %v2281 = vpop.xlane.xlu0 %2280
        %v2282 = vsel %vm675, %v1916, 0.0
        %2283 = vadd.xlane.f32.xlu0 %v2282
        %v2284 = vpop.xlane.xlu0 %2283
        %v2285 = vsel %vm675, %v1917, 0.0
        %2286 = vadd.xlane.f32.xlu0 %v2285
        %v2287 = vpop.xlane.xlu0 %2286
        %v2288 = vsel %vm675, %v1918, 0.0
        %2289 = vadd.xlane.f32.xlu0 %v2288
        %v2290 = vpop.xlane.xlu0 %2289
        %v2291 = vsel %vm675, %v1919, 0.0
        %2292 = vadd.xlane.f32.xlu0 %v2291
        %v2293 = vpop.xlane.xlu0 %2292
        %v2294 = vsel %vm675, %v1920, 0.0
        %2295 = vadd.xlane.f32.xlu0 %v2294
        %v2296 = vpop.xlane.xlu0 %2295
        %v2297 = vsel %vm675, %v1921, 0.0
        %2298 = vadd.xlane.f32.xlu0 %v2297
        %v2299 = vpop.xlane.xlu0 %2298
        %v2300 = vsel %vm675, %v1922, 0.0
        %2301 = vadd.xlane.f32.xlu0 %v2300
        %v2302 = vpop.xlane.xlu0 %2301
        %v2303 = vsel %vm675, %v1923, 0.0
        %2304 = vadd.xlane.f32.xlu0 %v2303
        %v2305 = vpop.xlane.xlu0 %2304
        %v2306 = vsel %vm675, %v1924, 0.0
        %2307 = vadd.xlane.f32.xlu0 %v2306
        %v2308 = vpop.xlane.xlu0 %2307
        %v2309 = vmul.f32 %v1415, 0.03125
        %v2310 = vmul.f32 %v1418, 0.03125
        %v2311 = vmul.f32 %v1421, 0.03125
        %v2312 = vmul.f32 %v1424, 0.03125
        %v2313 = vmul.f32 %v1427, 0.03125
        %v2314 = vmul.f32 %v1430, 0.03125
        %v2315 = vmul.f32 %v1433, 0.03125
        %v2316 = vmul.f32 %v1436, 0.03125
        %v2317 = vmul.f32 %v1439, 0.03125
        %v2318 = vmul.f32 %v1442, 0.03125
        %v2319 = vmul.f32 %v1445, 0.03125
        %v2320 = vmul.f32 %v1448, 0.03125
        %v2321 = vmul.f32 %v1451, 0.03125
        %v2322 = vmul.f32 %v1454, 0.03125
        %v2323 = vmul.f32 %v1457, 0.03125
        %v2324 = vmul.f32 %v1460, 0.03125
        %v2325 = vmul.f32 %v1463, 0.03125
        %v2326 = vmul.f32 %v1466, 0.03125
        %v2327 = vmul.f32 %v1469, 0.03125
        %v2328 = vmul.f32 %v1472, 0.03125
        %v2329 = vmul.f32 %v1475, 0.03125
        %v2330 = vmul.f32 %v1478, 0.03125
        %v2331 = vmul.f32 %v1481, 0.03125
        %v2332 = vmul.f32 %v1484, 0.03125
        %v2333 = vmul.f32 %v1487, 0.03125
        %v2334 = vmul.f32 %v1490, 0.03125
        %v2335 = vmul.f32 %v1493, 0.03125
        %v2336 = vmul.f32 %v1496, 0.03125
        %v2337 = vmul.f32 %v1499, 0.03125
        %v2338 = vmul.f32 %v1502, 0.03125
        %v2339 = vmul.f32 %v1505, 0.03125
        %v2340 = vmul.f32 %v1508, 0.03125
        %v2341 = vmul.f32 %v1511, 0.03125
        %v2342 = vmul.f32 %v1514, 0.03125
        %v2343 = vmul.f32 %v1517, 0.03125
        %v2344 = vmul.f32 %v1520, 0.03125
        %v2345 = vmul.f32 %v1523, 0.03125
        %v2346 = vmul.f32 %v1526, 0.03125
        %v2347 = vmul.f32 %v1529, 0.03125
        %v2348 = vmul.f32 %v1532, 0.03125
        %v2349 = vmul.f32 %v1535, 0.03125
        %v2350 = vmul.f32 %v1538, 0.03125
        %v2351 = vmul.f32 %v1541, 0.03125
        %v2352 = vmul.f32 %v1544, 0.03125
        %v2353 = vmul.f32 %v1547, 0.03125
        %v2354 = vmul.f32 %v1550, 0.03125
        %v2355 = vmul.f32 %v1553, 0.03125
        %v2356 = vmul.f32 %v1556, 0.03125
        %v2357 = vmul.f32 %v1559, 0.03125
        %v2358 = vmul.f32 %v1562, 0.03125
        %v2359 = vmul.f32 %v1565, 0.03125
        %v2360 = vmul.f32 %v1568, 0.03125
        %v2361 = vmul.f32 %v1571, 0.03125
        %v2362 = vmul.f32 %v1574, 0.03125
        %v2363 = vmul.f32 %v1577, 0.03125
        %v2364 = vmul.f32 %v1580, 0.03125
        %v2365 = vmul.f32 %v1583, 0.03125
        %v2366 = vmul.f32 %v1586, 0.03125
        %v2367 = vmul.f32 %v1589, 0.03125
        %v2368 = vmul.f32 %v1592, 0.03125
        %v2369 = vmul.f32 %v1595, 0.03125
        %v2370 = vmul.f32 %v1598, 0.03125
        %v2371 = vmul.f32 %v1601, 0.03125
        %v2372 = vmul.f32 %v1604, 0.03125
        %v2373 = vmul.f32 %v1607, 0.03125
        %v2374 = vmul.f32 %v1610, 0.03125
        %v2375 = vmul.f32 %v1613, 0.03125
        %v2376 = vmul.f32 %v1616, 0.03125
        %v2377 = vmul.f32 %v1619, 0.03125
        %v2378 = vmul.f32 %v1622, 0.03125
        %v2379 = vmul.f32 %v1625, 0.03125
        %v2380 = vmul.f32 %v1628, 0.03125
        %v2381 = vmul.f32 %v1631, 0.03125
        %v2382 = vmul.f32 %v1634, 0.03125
        %v2383 = vmul.f32 %v1637, 0.03125
        %v2384 = vmul.f32 %v1640, 0.03125
        %v2385 = vmul.f32 %v1643, 0.03125
        %v2386 = vmul.f32 %v1646, 0.03125
        %v2387 = vmul.f32 %v1649, 0.03125
        %v2388 = vmul.f32 %v1652, 0.03125
        %v2389 = vmul.f32 %v1655, 0.03125
        %v2390 = vmul.f32 %v1658, 0.03125
        %v2391 = vmul.f32 %v1661, 0.03125
        %v2392 = vmul.f32 %v1664, 0.03125
        %v2393 = vmul.f32 %v1667, 0.03125
        %v2394 = vmul.f32 %v1670, 0.03125
        %v2395 = vmul.f32 %v1673, 0.03125
        %v2396 = vmul.f32 %v1676, 0.03125
        %v2397 = vmul.f32 %v1679, 0.03125
        %v2398 = vmul.f32 %v1682, 0.03125
        %v2399 = vmul.f32 %v1685, 0.03125
        %v2400 = vmul.f32 %v1688, 0.03125
        %v2401 = vmul.f32 %v1691, 0.03125
        %v2402 = vmul.f32 %v1694, 0.03125
        %v2403 = vmul.f32 %v1697, 0.03125
        %v2404 = vmul.f32 %v1700, 0.03125
        %v2405 = vmul.f32 %v1703, 0.03125
        %v2406 = vmul.f32 %v1706, 0.03125
        %v2407 = vmul.f32 %v1709, 0.03125
        %v2408 = vmul.f32 %v1712, 0.03125
        %v2409 = vmul.f32 %v1715, 0.03125
        %v2410 = vmul.f32 %v1718, 0.03125
        %v2411 = vmul.f32 %v1721, 0.03125
        %v2412 = vmul.f32 %v1724, 0.03125
        %v2413 = vmul.f32 %v1727, 0.03125
        %v2414 = vmul.f32 %v1730, 0.03125
        %v2415 = vmul.f32 %v1733, 0.03125
        %v2416 = vmul.f32 %v1736, 0.03125
        %v2417 = vmul.f32 %v1739, 0.03125
        %v2418 = vmul.f32 %v1742, 0.03125
        %v2419 = vmul.f32 %v1745, 0.03125
        %v2420 = vmul.f32 %v1748, 0.03125
        %v2421 = vmul.f32 %v1751, 0.03125
        %v2422 = vmul.f32 %v1754, 0.03125
        %v2423 = vmul.f32 %v1757, 0.03125
        %v2424 = vmul.f32 %v1760, 0.03125
        %v2425 = vmul.f32 %v1763, 0.03125
        %v2426 = vmul.f32 %v1766, 0.03125
        %v2427 = vmul.f32 %v1769, 0.03125
        %v2428 = vmul.f32 %v1772, 0.03125
        %v2429 = vmul.f32 %v1775, 0.03125
        %v2430 = vmul.f32 %v1778, 0.03125
        %v2431 = vmul.f32 %v1781, 0.03125
        %v2432 = vmul.f32 %v1784, 0.03125
        %v2433 = vmul.f32 %v1787, 0.03125
        %v2434 = vmul.f32 %v1790, 0.03125
        %v2435 = vmul.f32 %v1793, 0.03125
        %v2436 = vmul.f32 %v1796, 0.03125
        %v2437 = vmul.f32 %v1927, 0.03125
        %v2438 = vmul.f32 %v1930, 0.03125
        %v2439 = vmul.f32 %v1933, 0.03125
        %v2440 = vmul.f32 %v1936, 0.03125
        %v2441 = vmul.f32 %v1939, 0.03125
        %v2442 = vmul.f32 %v1942, 0.03125
        %v2443 = vmul.f32 %v1945, 0.03125
        %v2444 = vmul.f32 %v1948, 0.03125
        %v2445 = vmul.f32 %v1951, 0.03125
        %v2446 = vmul.f32 %v1954, 0.03125
        %v2447 = vmul.f32 %v1957, 0.03125
        %v2448 = vmul.f32 %v1960, 0.03125
        %v2449 = vmul.f32 %v1963, 0.03125
        %v2450 = vmul.f32 %v1966, 0.03125
        %v2451 = vmul.f32 %v1969, 0.03125
        %v2452 = vmul.f32 %v1972, 0.03125
        %v2453 = vmul.f32 %v1975, 0.03125
        %v2454 = vmul.f32 %v1978, 0.03125
        %v2455 = vmul.f32 %v1981, 0.03125
        %v2456 = vmul.f32 %v1984, 0.03125
        %v2457 = vmul.f32 %v1987, 0.03125
        %v2458 = vmul.f32 %v1990, 0.03125
        %v2459 = vmul.f32 %v1993, 0.03125
        %v2460 = vmul.f32 %v1996, 0.03125
        %v2461 = vmul.f32 %v1999, 0.03125
        %v2462 = vmul.f32 %v2002, 0.03125
        %v2463 = vmul.f32 %v2005, 0.03125
        %v2464 = vmul.f32 %v2008, 0.03125
        %v2465 = vmul.f32 %v2011, 0.03125
        %v2466 = vmul.f32 %v2014, 0.03125
        %v2467 = vmul.f32 %v2017, 0.03125
        %v2468 = vmul.f32 %v2020, 0.03125
        %v2469 = vmul.f32 %v2023, 0.03125
        %v2470 = vmul.f32 %v2026, 0.03125
        %v2471 = vmul.f32 %v2029, 0.03125
        %v2472 = vmul.f32 %v2032, 0.03125
        %v2473 = vmul.f32 %v2035, 0.03125
        %v2474 = vmul.f32 %v2038, 0.03125
        %v2475 = vmul.f32 %v2041, 0.03125
        %v2476 = vmul.f32 %v2044, 0.03125
        %v2477 = vmul.f32 %v2047, 0.03125
        %v2478 = vmul.f32 %v2050, 0.03125
        %v2479 = vmul.f32 %v2053, 0.03125
        %v2480 = vmul.f32 %v2056, 0.03125
        %v2481 = vmul.f32 %v2059, 0.03125
        %v2482 = vmul.f32 %v2062, 0.03125
        %v2483 = vmul.f32 %v2065, 0.03125
        %v2484 = vmul.f32 %v2068, 0.03125
        %v2485 = vmul.f32 %v2071, 0.03125
        %v2486 = vmul.f32 %v2074, 0.03125
        %v2487 = vmul.f32 %v2077, 0.03125
        %v2488 = vmul.f32 %v2080, 0.03125
        %v2489 = vmul.f32 %v2083, 0.03125
        %v2490 = vmul.f32 %v2086, 0.03125
        %v2491 = vmul.f32 %v2089, 0.03125
        %v2492 = vmul.f32 %v2092, 0.03125
        %v2493 = vmul.f32 %v2095, 0.03125
        %v2494 = vmul.f32 %v2098, 0.03125
        %v2495 = vmul.f32 %v2101, 0.03125
        %v2496 = vmul.f32 %v2104, 0.03125
        %v2497 = vmul.f32 %v2107, 0.03125
        %v2498 = vmul.f32 %v2110, 0.03125
        %v2499 = vmul.f32 %v2113, 0.03125
        %v2500 = vmul.f32 %v2116, 0.03125
        %v2501 = vmul.f32 %v2119, 0.03125
        %v2502 = vmul.f32 %v2122, 0.03125
        %v2503 = vmul.f32 %v2125, 0.03125
        %v2504 = vmul.f32 %v2128, 0.03125
        %v2505 = vmul.f32 %v2131, 0.03125
        %v2506 = vmul.f32 %v2134, 0.03125
        %v2507 = vmul.f32 %v2137, 0.03125
        %v2508 = vmul.f32 %v2140, 0.03125
        %v2509 = vmul.f32 %v2143, 0.03125
        %v2510 = vmul.f32 %v2146, 0.03125
        %v2511 = vmul.f32 %v2149, 0.03125
        %v2512 = vmul.f32 %v2152, 0.03125
        %v2513 = vmul.f32 %v2155, 0.03125
        %v2514 = vmul.f32 %v2158, 0.03125
        %v2515 = vmul.f32 %v2161, 0.03125
        %v2516 = vmul.f32 %v2164, 0.03125
        %v2517 = vmul.f32 %v2167, 0.03125
        %v2518 = vmul.f32 %v2170, 0.03125
        %v2519 = vmul.f32 %v2173, 0.03125
        %v2520 = vmul.f32 %v2176, 0.03125
        %v2521 = vmul.f32 %v2179, 0.03125
        %v2522 = vmul.f32 %v2182, 0.03125
        %v2523 = vmul.f32 %v2185, 0.03125
        %v2524 = vmul.f32 %v2188, 0.03125
        %v2525 = vmul.f32 %v2191, 0.03125
        %v2526 = vmul.f32 %v2194, 0.03125
        %v2527 = vmul.f32 %v2197, 0.03125
        %v2528 = vmul.f32 %v2200, 0.03125
        %v2529 = vmul.f32 %v2203, 0.03125
        %v2530 = vmul.f32 %v2206, 0.03125
        %v2531 = vmul.f32 %v2209, 0.03125
        %v2532 = vmul.f32 %v2212, 0.03125
        %v2533 = vmul.f32 %v2215, 0.03125
        %v2534 = vmul.f32 %v2218, 0.03125
        %v2535 = vmul.f32 %v2221, 0.03125
        %v2536 = vmul.f32 %v2224, 0.03125
        %v2537 = vmul.f32 %v2227, 0.03125
        %v2538 = vmul.f32 %v2230, 0.03125
        %v2539 = vmul.f32 %v2233, 0.03125
        %v2540 = vmul.f32 %v2236, 0.03125
        %v2541 = vmul.f32 %v2239, 0.03125
        %v2542 = vmul.f32 %v2242, 0.03125
        %v2543 = vmul.f32 %v2245, 0.03125
        %v2544 = vmul.f32 %v2248, 0.03125
        %v2545 = vmul.f32 %v2251, 0.03125
        %v2546 = vmul.f32 %v2254, 0.03125
        %v2547 = vmul.f32 %v2257, 0.03125
        %v2548 = vmul.f32 %v2260, 0.03125
        %v2549 = vmul.f32 %v2263, 0.03125
        %v2550 = vmul.f32 %v2266, 0.03125
        %v2551 = vmul.f32 %v2269, 0.03125
        %v2552 = vmul.f32 %v2272, 0.03125
        %v2553 = vmul.f32 %v2275, 0.03125
        %v2554 = vmul.f32 %v2278, 0.03125
        %v2555 = vmul.f32 %v2281, 0.03125
        %v2556 = vmul.f32 %v2284, 0.03125
        %v2557 = vmul.f32 %v2287, 0.03125
        %v2558 = vmul.f32 %v2290, 0.03125
        %v2559 = vmul.f32 %v2293, 0.03125
        %v2560 = vmul.f32 %v2296, 0.03125
        %v2561 = vmul.f32 %v2299, 0.03125
        %v2562 = vmul.f32 %v2302, 0.03125
        %v2563 = vmul.f32 %v2305, 0.03125
        %v2564 = vmul.f32 %v2308, 0.03125
        %v2565 = vmul.f32 %v2309, %v2309
        %v2566 = vmul.f32 %v2310, %v2310
        %v2567 = vmul.f32 %v2311, %v2311
        %v2568 = vmul.f32 %v2312, %v2312
        %v2569 = vmul.f32 %v2313, %v2313
        %v2570 = vmul.f32 %v2314, %v2314
        %v2571 = vmul.f32 %v2315, %v2315
        %v2572 = vmul.f32 %v2316, %v2316
        %v2573 = vmul.f32 %v2317, %v2317
        %v2574 = vmul.f32 %v2318, %v2318
        %v2575 = vmul.f32 %v2319, %v2319
        %v2576 = vmul.f32 %v2320, %v2320
        %v2577 = vmul.f32 %v2321, %v2321
        %v2578 = vmul.f32 %v2322, %v2322
        %v2579 = vmul.f32 %v2323, %v2323
        %v2580 = vmul.f32 %v2324, %v2324
        %v2581 = vmul.f32 %v2325, %v2325
        %v2582 = vmul.f32 %v2326, %v2326
        %v2583 = vmul.f32 %v2327, %v2327
        %v2584 = vmul.f32 %v2328, %v2328
        %v2585 = vmul.f32 %v2329, %v2329
        %v2586 = vmul.f32 %v2330, %v2330
        %v2587 = vmul.f32 %v2331, %v2331
        %v2588 = vmul.f32 %v2332, %v2332
        %v2589 = vmul.f32 %v2333, %v2333
        %v2590 = vmul.f32 %v2334, %v2334
        %v2591 = vmul.f32 %v2335, %v2335
        %v2592 = vmul.f32 %v2336, %v2336
        %v2593 = vmul.f32 %v2337, %v2337
        %v2594 = vmul.f32 %v2338, %v2338
        %v2595 = vmul.f32 %v2339, %v2339
        %v2596 = vmul.f32 %v2340, %v2340
        %v2597 = vmul.f32 %v2341, %v2341
        %v2598 = vmul.f32 %v2342, %v2342
        %v2599 = vmul.f32 %v2343, %v2343
        %v2600 = vmul.f32 %v2344, %v2344
        %v2601 = vmul.f32 %v2345, %v2345
        %v2602 = vmul.f32 %v2346, %v2346
        %v2603 = vmul.f32 %v2347, %v2347
        %v2604 = vmul.f32 %v2348, %v2348
        %v2605 = vmul.f32 %v2349, %v2349
        %v2606 = vmul.f32 %v2350, %v2350
        %v2607 = vmul.f32 %v2351, %v2351
        %v2608 = vmul.f32 %v2352, %v2352
        %v2609 = vmul.f32 %v2353, %v2353
        %v2610 = vmul.f32 %v2354, %v2354
        %v2611 = vmul.f32 %v2355, %v2355
        %v2612 = vmul.f32 %v2356, %v2356
        %v2613 = vmul.f32 %v2357, %v2357
        %v2614 = vmul.f32 %v2358, %v2358
        %v2615 = vmul.f32 %v2359, %v2359
        %v2616 = vmul.f32 %v2360, %v2360
        %v2617 = vmul.f32 %v2361, %v2361
        %v2618 = vmul.f32 %v2362, %v2362
        %v2619 = vmul.f32 %v2363, %v2363
        %v2620 = vmul.f32 %v2364, %v2364
        %v2621 = vmul.f32 %v2365, %v2365
        %v2622 = vmul.f32 %v2366, %v2366
        %v2623 = vmul.f32 %v2367, %v2367
        %v2624 = vmul.f32 %v2368, %v2368
        %v2625 = vmul.f32 %v2369, %v2369
        %v2626 = vmul.f32 %v2370, %v2370
        %v2627 = vmul.f32 %v2371, %v2371
        %v2628 = vmul.f32 %v2372, %v2372
        %v2629 = vmul.f32 %v2373, %v2373
        %v2630 = vmul.f32 %v2374, %v2374
        %v2631 = vmul.f32 %v2375, %v2375
        %v2632 = vmul.f32 %v2376, %v2376
        %v2633 = vmul.f32 %v2377, %v2377
        %v2634 = vmul.f32 %v2378, %v2378
        %v2635 = vmul.f32 %v2379, %v2379
        %v2636 = vmul.f32 %v2380, %v2380
        %v2637 = vmul.f32 %v2381, %v2381
        %v2638 = vmul.f32 %v2382, %v2382
        %v2639 = vmul.f32 %v2383, %v2383
        %v2640 = vmul.f32 %v2384, %v2384
        %v2641 = vmul.f32 %v2385, %v2385
        %v2642 = vmul.f32 %v2386, %v2386
        %v2643 = vmul.f32 %v2387, %v2387
        %v2644 = vmul.f32 %v2388, %v2388
        %v2645 = vmul.f32 %v2389, %v2389
        %v2646 = vmul.f32 %v2390, %v2390
        %v2647 = vmul.f32 %v2391, %v2391
        %v2648 = vmul.f32 %v2392, %v2392
        %v2649 = vmul.f32 %v2393, %v2393
        %v2650 = vmul.f32 %v2394, %v2394
        %v2651 = vmul.f32 %v2395, %v2395
        %v2652 = vmul.f32 %v2396, %v2396
        %v2653 = vmul.f32 %v2397, %v2397
        %v2654 = vmul.f32 %v2398, %v2398
        %v2655 = vmul.f32 %v2399, %v2399
        %v2656 = vmul.f32 %v2400, %v2400
        %v2657 = vmul.f32 %v2401, %v2401
        %v2658 = vmul.f32 %v2402, %v2402
        %v2659 = vmul.f32 %v2403, %v2403
        %v2660 = vmul.f32 %v2404, %v2404
        %v2661 = vmul.f32 %v2405, %v2405
        %v2662 = vmul.f32 %v2406, %v2406
        %v2663 = vmul.f32 %v2407, %v2407
        %v2664 = vmul.f32 %v2408, %v2408
        %v2665 = vmul.f32 %v2409, %v2409
        %v2666 = vmul.f32 %v2410, %v2410
        %v2667 = vmul.f32 %v2411, %v2411
        %v2668 = vmul.f32 %v2412, %v2412
        %v2669 = vmul.f32 %v2413, %v2413
        %v2670 = vmul.f32 %v2414, %v2414
        %v2671 = vmul.f32 %v2415, %v2415
        %v2672 = vmul.f32 %v2416, %v2416
        %v2673 = vmul.f32 %v2417, %v2417
        %v2674 = vmul.f32 %v2418, %v2418
        %v2675 = vmul.f32 %v2419, %v2419
        %v2676 = vmul.f32 %v2420, %v2420
        %v2677 = vmul.f32 %v2421, %v2421
        %v2678 = vmul.f32 %v2422, %v2422
        %v2679 = vmul.f32 %v2423, %v2423
        %v2680 = vmul.f32 %v2424, %v2424
        %v2681 = vmul.f32 %v2425, %v2425
        %v2682 = vmul.f32 %v2426, %v2426
        %v2683 = vmul.f32 %v2427, %v2427
        %v2684 = vmul.f32 %v2428, %v2428
        %v2685 = vmul.f32 %v2429, %v2429
        %v2686 = vmul.f32 %v2430, %v2430
        %v2687 = vmul.f32 %v2431, %v2431
        %v2688 = vmul.f32 %v2432, %v2432
        %v2689 = vmul.f32 %v2433, %v2433
        %v2690 = vmul.f32 %v2434, %v2434
        %v2691 = vmul.f32 %v2435, %v2435
        %v2692 = vmul.f32 %v2436, %v2436
        %v2693 = vsub.f32 %v2437, %v2565
        %v2694 = vsub.f32 %v2438, %v2566
        %v2695 = vsub.f32 %v2439, %v2567
        %v2696 = vsub.f32 %v2440, %v2568
        %v2697 = vsub.f32 %v2441, %v2569
        %v2698 = vsub.f32 %v2442, %v2570
        %v2699 = vsub.f32 %v2443, %v2571
        %v2700 = vsub.f32 %v2444, %v2572
        %v2701 = vsub.f32 %v2445, %v2573
        %v2702 = vsub.f32 %v2446, %v2574
        %v2703 = vsub.f32 %v2447, %v2575
        %v2704 = vsub.f32 %v2448, %v2576
        %v2705 = vsub.f32 %v2449, %v2577
        %v2706 = vsub.f32 %v2450, %v2578
        %v2707 = vsub.f32 %v2451, %v2579
        %v2708 = vsub.f32 %v2452, %v2580
        %v2709 = vsub.f32 %v2453, %v2581
        %v2710 = vsub.f32 %v2454, %v2582
        %v2711 = vsub.f32 %v2455, %v2583
        %v2712 = vsub.f32 %v2456, %v2584
        %v2713 = vsub.f32 %v2457, %v2585
        %v2714 = vsub.f32 %v2458, %v2586
        %v2715 = vsub.f32 %v2459, %v2587
        %v2716 = vsub.f32 %v2460, %v2588
        %v2717 = vsub.f32 %v2461, %v2589
        %v2718 = vsub.f32 %v2462, %v2590
        %v2719 = vsub.f32 %v2463, %v2591
        %v2720 = vsub.f32 %v2464, %v2592
        %v2721 = vsub.f32 %v2465, %v2593
        %v2722 = vsub.f32 %v2466, %v2594
        %v2723 = vsub.f32 %v2467, %v2595
        %v2724 = vsub.f32 %v2468, %v2596
        %v2725 = vsub.f32 %v2469, %v2597
        %v2726 = vsub.f32 %v2470, %v2598
        %v2727 = vsub.f32 %v2471, %v2599
        %v2728 = vsub.f32 %v2472, %v2600
        %v2729 = vsub.f32 %v2473, %v2601
        %v2730 = vsub.f32 %v2474, %v2602
        %v2731 = vsub.f32 %v2475, %v2603
        %v2732 = vsub.f32 %v2476, %v2604
        %v2733 = vsub.f32 %v2477, %v2605
        %v2734 = vsub.f32 %v2478, %v2606
        %v2735 = vsub.f32 %v2479, %v2607
        %v2736 = vsub.f32 %v2480, %v2608
        %v2737 = vsub.f32 %v2481, %v2609
        %v2738 = vsub.f32 %v2482, %v2610
        %v2739 = vsub.f32 %v2483, %v2611
        %v2740 = vsub.f32 %v2484, %v2612
        %v2741 = vsub.f32 %v2485, %v2613
        %v2742 = vsub.f32 %v2486, %v2614
        %v2743 = vsub.f32 %v2487, %v2615
        %v2744 = vsub.f32 %v2488, %v2616
        %v2745 = vsub.f32 %v2489, %v2617
        %v2746 = vsub.f32 %v2490, %v2618
        %v2747 = vsub.f32 %v2491, %v2619
        %v2748 = vsub.f32 %v2492, %v2620
        %v2749 = vsub.f32 %v2493, %v2621
        %v2750 = vsub.f32 %v2494, %v2622
        %v2751 = vsub.f32 %v2495, %v2623
        %v2752 = vsub.f32 %v2496, %v2624
        %v2753 = vsub.f32 %v2497, %v2625
        %v2754 = vsub.f32 %v2498, %v2626
        %v2755 = vsub.f32 %v2499, %v2627
        %v2756 = vsub.f32 %v2500, %v2628
        %v2757 = vsub.f32 %v2501, %v2629
        %v2758 = vsub.f32 %v2502, %v2630
        %v2759 = vsub.f32 %v2503, %v2631
        %v2760 = vsub.f32 %v2504, %v2632
        %v2761 = vsub.f32 %v2505, %v2633
        %v2762 = vsub.f32 %v2506, %v2634
        %v2763 = vsub.f32 %v2507, %v2635
        %v2764 = vsub.f32 %v2508, %v2636
        %v2765 = vsub.f32 %v2509, %v2637
        %v2766 = vsub.f32 %v2510, %v2638
        %v2767 = vsub.f32 %v2511, %v2639
        %v2768 = vsub.f32 %v2512, %v2640
        %v2769 = vsub.f32 %v2513, %v2641
        %v2770 = vsub.f32 %v2514, %v2642
        %v2771 = vsub.f32 %v2515, %v2643
        %v2772 = vsub.f32 %v2516, %v2644
        %v2773 = vsub.f32 %v2517, %v2645
        %v2774 = vsub.f32 %v2518, %v2646
        %v2775 = vsub.f32 %v2519, %v2647
        %v2776 = vsub.f32 %v2520, %v2648
        %v2777 = vsub.f32 %v2521, %v2649
        %v2778 = vsub.f32 %v2522, %v2650
        %v2779 = vsub.f32 %v2523, %v2651
        %v2780 = vsub.f32 %v2524, %v2652
        %v2781 = vsub.f32 %v2525, %v2653
        %v2782 = vsub.f32 %v2526, %v2654
        %v2783 = vsub.f32 %v2527, %v2655
        %v2784 = vsub.f32 %v2528, %v2656
        %v2785 = vsub.f32 %v2529, %v2657
        %v2786 = vsub.f32 %v2530, %v2658
        %v2787 = vsub.f32 %v2531, %v2659
        %v2788 = vsub.f32 %v2532, %v2660
        %v2789 = vsub.f32 %v2533, %v2661
        %v2790 = vsub.f32 %v2534, %v2662
        %v2791 = vsub.f32 %v2535, %v2663
        %v2792 = vsub.f32 %v2536, %v2664
        %v2793 = vsub.f32 %v2537, %v2665
        %v2794 = vsub.f32 %v2538, %v2666
        %v2795 = vsub.f32 %v2539, %v2667
        %v2796 = vsub.f32 %v2540, %v2668
        %v2797 = vsub.f32 %v2541, %v2669
        %v2798 = vsub.f32 %v2542, %v2670
        %v2799 = vsub.f32 %v2543, %v2671
        %v2800 = vsub.f32 %v2544, %v2672
        %v2801 = vsub.f32 %v2545, %v2673
        %v2802 = vsub.f32 %v2546, %v2674
        %v2803 = vsub.f32 %v2547, %v2675
        %v2804 = vsub.f32 %v2548, %v2676
        %v2805 = vsub.f32 %v2549, %v2677
        %v2806 = vsub.f32 %v2550, %v2678
        %v2807 = vsub.f32 %v2551, %v2679
        %v2808 = vsub.f32 %v2552, %v2680
        %v2809 = vsub.f32 %v2553, %v2681
        %v2810 = vsub.f32 %v2554, %v2682
        %v2811 = vsub.f32 %v2555, %v2683
        %v2812 = vsub.f32 %v2556, %v2684
        %v2813 = vsub.f32 %v2557, %v2685
        %v2814 = vsub.f32 %v2558, %v2686
        %v2815 = vsub.f32 %v2559, %v2687
        %v2816 = vsub.f32 %v2560, %v2688
        %v2817 = vsub.f32 %v2561, %v2689
        %v2818 = vsub.f32 %v2562, %v2690
        %v2819 = vsub.f32 %v2563, %v2691
        %v2820 = vsub.f32 %v2564, %v2692
        %v2821 = vmax.f32 %v2693, 0.0
        %v2822 = vmax.f32 %v2694, 0.0
        %v2823 = vmax.f32 %v2695, 0.0
        %v2824 = vmax.f32 %v2696, 0.0
        %v2825 = vmax.f32 %v2697, 0.0
        %v2826 = vmax.f32 %v2698, 0.0
        %v2827 = vmax.f32 %v2699, 0.0
        %v2828 = vmax.f32 %v2700, 0.0
        %v2829 = vmax.f32 %v2701, 0.0
        %v2830 = vmax.f32 %v2702, 0.0
        %v2831 = vmax.f32 %v2703, 0.0
        %v2832 = vmax.f32 %v2704, 0.0
        %v2833 = vmax.f32 %v2705, 0.0
        %v2834 = vmax.f32 %v2706, 0.0
        %v2835 = vmax.f32 %v2707, 0.0
        %v2836 = vmax.f32 %v2708, 0.0
        %v2837 = vmax.f32 %v2709, 0.0
        %v2838 = vmax.f32 %v2710, 0.0
        %v2839 = vmax.f32 %v2711, 0.0
        %v2840 = vmax.f32 %v2712, 0.0
        %v2841 = vmax.f32 %v2713, 0.0
        %v2842 = vmax.f32 %v2714, 0.0
        %v2843 = vmax.f32 %v2715, 0.0
        %v2844 = vmax.f32 %v2716, 0.0
        %v2845 = vmax.f32 %v2717, 0.0
        %v2846 = vmax.f32 %v2718, 0.0
        %v2847 = vmax.f32 %v2719, 0.0
        %v2848 = vmax.f32 %v2720, 0.0
        %v2849 = vmax.f32 %v2721, 0.0
        %v2850 = vmax.f32 %v2722, 0.0
        %v2851 = vmax.f32 %v2723, 0.0
        %v2852 = vmax.f32 %v2724, 0.0
        %v2853 = vmax.f32 %v2725, 0.0
        %v2854 = vmax.f32 %v2726, 0.0
        %v2855 = vmax.f32 %v2727, 0.0
        %v2856 = vmax.f32 %v2728, 0.0
        %v2857 = vmax.f32 %v2729, 0.0
        %v2858 = vmax.f32 %v2730, 0.0
        %v2859 = vmax.f32 %v2731, 0.0
        %v2860 = vmax.f32 %v2732, 0.0
        %v2861 = vmax.f32 %v2733, 0.0
        %v2862 = vmax.f32 %v2734, 0.0
        %v2863 = vmax.f32 %v2735, 0.0
        %v2864 = vmax.f32 %v2736, 0.0
        %v2865 = vmax.f32 %v2737, 0.0
        %v2866 = vmax.f32 %v2738, 0.0
        %v2867 = vmax.f32 %v2739, 0.0
        %v2868 = vmax.f32 %v2740, 0.0
        %v2869 = vmax.f32 %v2741, 0.0
        %v2870 = vmax.f32 %v2742, 0.0
        %v2871 = vmax.f32 %v2743, 0.0
        %v2872 = vmax.f32 %v2744, 0.0
        %v2873 = vmax.f32 %v2745, 0.0
        %v2874 = vmax.f32 %v2746, 0.0
        %v2875 = vmax.f32 %v2747, 0.0
        %v2876 = vmax.f32 %v2748, 0.0
        %v2877 = vmax.f32 %v2749, 0.0
        %v2878 = vmax.f32 %v2750, 0.0
        %v2879 = vmax.f32 %v2751, 0.0
        %v2880 = vmax.f32 %v2752, 0.0
        %v2881 = vmax.f32 %v2753, 0.0
        %v2882 = vmax.f32 %v2754, 0.0
        %v2883 = vmax.f32 %v2755, 0.0
        %v2884 = vmax.f32 %v2756, 0.0
        %v2885 = vmax.f32 %v2757, 0.0
        %v2886 = vmax.f32 %v2758, 0.0
        %v2887 = vmax.f32 %v2759, 0.0
        %v2888 = vmax.f32 %v2760, 0.0
        %v2889 = vmax.f32 %v2761, 0.0
        %v2890 = vmax.f32 %v2762, 0.0
        %v2891 = vmax.f32 %v2763, 0.0
        %v2892 = vmax.f32 %v2764, 0.0
        %v2893 = vmax.f32 %v2765, 0.0
        %v2894 = vmax.f32 %v2766, 0.0
        %v2895 = vmax.f32 %v2767, 0.0
        %v2896 = vmax.f32 %v2768, 0.0
        %v2897 = vmax.f32 %v2769, 0.0
        %v2898 = vmax.f32 %v2770, 0.0
        %v2899 = vmax.f32 %v2771, 0.0
        %v2900 = vmax.f32 %v2772, 0.0
        %v2901 = vmax.f32 %v2773, 0.0
        %v2902 = vmax.f32 %v2774, 0.0
        %v2903 = vmax.f32 %v2775, 0.0
        %v2904 = vmax.f32 %v2776, 0.0
        %v2905 = vmax.f32 %v2777, 0.0
        %v2906 = vmax.f32 %v2778, 0.0
        %v2907 = vmax.f32 %v2779, 0.0
        %v2908 = vmax.f32 %v2780, 0.0
        %v2909 = vmax.f32 %v2781, 0.0
        %v2910 = vmax.f32 %v2782, 0.0
        %v2911 = vmax.f32 %v2783, 0.0
        %v2912 = vmax.f32 %v2784, 0.0
        %v2913 = vmax.f32 %v2785, 0.0
        %v2914 = vmax.f32 %v2786, 0.0
        %v2915 = vmax.f32 %v2787, 0.0
        %v2916 = vmax.f32 %v2788, 0.0
        %v2917 = vmax.f32 %v2789, 0.0
        %v2918 = vmax.f32 %v2790, 0.0
        %v2919 = vmax.f32 %v2791, 0.0
        %v2920 = vmax.f32 %v2792, 0.0
        %v2921 = vmax.f32 %v2793, 0.0
        %v2922 = vmax.f32 %v2794, 0.0
        %v2923 = vmax.f32 %v2795, 0.0
        %v2924 = vmax.f32 %v2796, 0.0
        %v2925 = vmax.f32 %v2797, 0.0
        %v2926 = vmax.f32 %v2798, 0.0
        %v2927 = vmax.f32 %v2799, 0.0
        %v2928 = vmax.f32 %v2800, 0.0
        %v2929 = vmax.f32 %v2801, 0.0
        %v2930 = vmax.f32 %v2802, 0.0
        %v2931 = vmax.f32 %v2803, 0.0
        %v2932 = vmax.f32 %v2804, 0.0
        %v2933 = vmax.f32 %v2805, 0.0
        %v2934 = vmax.f32 %v2806, 0.0
        %v2935 = vmax.f32 %v2807, 0.0
        %v2936 = vmax.f32 %v2808, 0.0
        %v2937 = vmax.f32 %v2809, 0.0
        %v2938 = vmax.f32 %v2810, 0.0
        %v2939 = vmax.f32 %v2811, 0.0
        %v2940 = vmax.f32 %v2812, 0.0
        %v2941 = vmax.f32 %v2813, 0.0
        %v2942 = vmax.f32 %v2814, 0.0
        %v2943 = vmax.f32 %v2815, 0.0
        %v2944 = vmax.f32 %v2816, 0.0
        %v2945 = vmax.f32 %v2817, 0.0
        %v2946 = vmax.f32 %v2818, 0.0
        %v2947 = vmax.f32 %v2819, 0.0
        %v2948 = vmax.f32 %v2820, 0.0
        %v2949 = vsub.f32 %v903, %v2309
        %v2950 = vsub.f32 %v906, %v2310
        %v2951 = vsub.f32 %v911, %v2311
        %v2952 = vsub.f32 %v914, %v2312
        %v2953 = vsub.f32 %v919, %v2313
        %v2954 = vsub.f32 %v922, %v2314
        %v2955 = vsub.f32 %v927, %v2315
        %v2956 = vsub.f32 %v930, %v2316
        %v2957 = vsub.f32 %v935, %v2317
        %v2958 = vsub.f32 %v938, %v2318
        %v2959 = vsub.f32 %v943, %v2319
        %v2960 = vsub.f32 %v946, %v2320
        %v2961 = vsub.f32 %v951, %v2321
        %v2962 = vsub.f32 %v954, %v2322
        %v2963 = vsub.f32 %v959, %v2323
        %v2964 = vsub.f32 %v962, %v2324
        %v2965 = vsub.f32 %v967, %v2325
        %v2966 = vsub.f32 %v970, %v2326
        %v2967 = vsub.f32 %v975, %v2327
        %v2968 = vsub.f32 %v978, %v2328
        %v2969 = vsub.f32 %v983, %v2329
        %v2970 = vsub.f32 %v986, %v2330
        %v2971 = vsub.f32 %v991, %v2331
        %v2972 = vsub.f32 %v994, %v2332
        %v2973 = vsub.f32 %v999, %v2333
        %v2974 = vsub.f32 %v1002, %v2334
        %v2975 = vsub.f32 %v1007, %v2335
        %v2976 = vsub.f32 %v1010, %v2336
        %v2977 = vsub.f32 %v1015, %v2337
        %v2978 = vsub.f32 %v1018, %v2338
        %v2979 = vsub.f32 %v1023, %v2339
        %v2980 = vsub.f32 %v1026, %v2340
        %v2981 = vsub.f32 %v1031, %v2341
        %v2982 = vsub.f32 %v1034, %v2342
        %v2983 = vsub.f32 %v1039, %v2343
        %v2984 = vsub.f32 %v1042, %v2344
        %v2985 = vsub.f32 %v1047, %v2345
        %v2986 = vsub.f32 %v1050, %v2346
        %v2987 = vsub.f32 %v1055, %v2347
        %v2988 = vsub.f32 %v1058, %v2348
        %v2989 = vsub.f32 %v1063, %v2349
        %v2990 = vsub.f32 %v1066, %v2350
        %v2991 = vsub.f32 %v1071, %v2351
        %v2992 = vsub.f32 %v1074, %v2352
        %v2993 = vsub.f32 %v1079, %v2353
        %v2994 = vsub.f32 %v1082, %v2354
        %v2995 = vsub.f32 %v1087, %v2355
        %v2996 = vsub.f32 %v1090, %v2356
        %v2997 = vsub.f32 %v1095, %v2357
        %v2998 = vsub.f32 %v1098, %v2358
        %v2999 = vsub.f32 %v1103, %v2359
        %v3000 = vsub.f32 %v1106, %v2360
        %v3001 = vsub.f32 %v1111, %v2361
        %v3002 = vsub.f32 %v1114, %v2362
        %v3003 = vsub.f32 %v1119, %v2363
        %v3004 = vsub.f32 %v1122, %v2364
        %v3005 = vsub.f32 %v1127, %v2365
        %v3006 = vsub.f32 %v1130, %v2366
        %v3007 = vsub.f32 %v1135, %v2367
        %v3008 = vsub.f32 %v1138, %v2368
        %v3009 = vsub.f32 %v1143, %v2369
        %v3010 = vsub.f32 %v1146, %v2370
        %v3011 = vsub.f32 %v1151, %v2371
        %v3012 = vsub.f32 %v1154, %v2372
        %v3013 = vsub.f32 %v1159, %v2373
        %v3014 = vsub.f32 %v1162, %v2374
        %v3015 = vsub.f32 %v1167, %v2375
        %v3016 = vsub.f32 %v1170, %v2376
        %v3017 = vsub.f32 %v1175, %v2377
        %v3018 = vsub.f32 %v1178, %v2378
        %v3019 = vsub.f32 %v1183, %v2379
        %v3020 = vsub.f32 %v1186, %v2380
        %v3021 = vsub.f32 %v1191, %v2381
        %v3022 = vsub.f32 %v1194, %v2382
        %v3023 = vsub.f32 %v1199, %v2383
        %v3024 = vsub.f32 %v1202, %v2384
        %v3025 = vsub.f32 %v1207, %v2385
        %v3026 = vsub.f32 %v1210, %v2386
        %v3027 = vsub.f32 %v1215, %v2387
        %v3028 = vsub.f32 %v1218, %v2388
        %v3029 = vsub.f32 %v1223, %v2389
        %v3030 = vsub.f32 %v1226, %v2390
        %v3031 = vsub.f32 %v1231, %v2391
        %v3032 = vsub.f32 %v1234, %v2392
        %v3033 = vsub.f32 %v1239, %v2393
        %v3034 = vsub.f32 %v1242, %v2394
        %v3035 = vsub.f32 %v1247, %v2395
        %v3036 = vsub.f32 %v1250, %v2396
        %v3037 = vsub.f32 %v1255, %v2397
        %v3038 = vsub.f32 %v1258, %v2398
        %v3039 = vsub.f32 %v1263, %v2399
        %v3040 = vsub.f32 %v1266, %v2400
        %v3041 = vsub.f32 %v1271, %v2401
        %v3042 = vsub.f32 %v1274, %v2402
        %v3043 = vsub.f32 %v1279, %v2403
        %v3044 = vsub.f32 %v1282, %v2404
        %v3045 = vsub.f32 %v1287, %v2405
        %v3046 = vsub.f32 %v1290, %v2406
        %v3047 = vsub.f32 %v1295, %v2407
        %v3048 = vsub.f32 %v1298, %v2408
        %v3049 = vsub.f32 %v1303, %v2409
        %v3050 = vsub.f32 %v1306, %v2410
        %v3051 = vsub.f32 %v1311, %v2411
        %v3052 = vsub.f32 %v1314, %v2412
        %v3053 = vsub.f32 %v1319, %v2413
        %v3054 = vsub.f32 %v1322, %v2414
        %v3055 = vsub.f32 %v1327, %v2415
        %v3056 = vsub.f32 %v1330, %v2416
        %v3057 = vsub.f32 %v1335, %v2417
        %v3058 = vsub.f32 %v1338, %v2418
        %v3059 = vsub.f32 %v1343, %v2419
        %v3060 = vsub.f32 %v1346, %v2420
        %v3061 = vsub.f32 %v1351, %v2421
        %v3062 = vsub.f32 %v1354, %v2422
        %v3063 = vsub.f32 %v1359, %v2423
        %v3064 = vsub.f32 %v1362, %v2424
        %v3065 = vsub.f32 %v1367, %v2425
        %v3066 = vsub.f32 %v1370, %v2426
        %v3067 = vsub.f32 %v1375, %v2427
        %v3068 = vsub.f32 %v1378, %v2428
        %v3069 = vsub.f32 %v1383, %v2429
        %v3070 = vsub.f32 %v1386, %v2430
        %v3071 = vsub.f32 %v1391, %v2431
        %v3072 = vsub.f32 %v1394, %v2432
        %v3073 = vsub.f32 %v1399, %v2433
        %v3074 = vsub.f32 %v1402, %v2434
        %v3075 = vsub.f32 %v1407, %v2435
        %v3076 = vsub.f32 %v1410, %v2436
        %v3077 = vadd.f32 %v2821, 1e-05
        %v3078 = vadd.f32 %v2822, 1e-05
        %v3079 = vadd.f32 %v2823, 1e-05
        %v3080 = vadd.f32 %v2824, 1e-05
        %v3081 = vadd.f32 %v2825, 1e-05
        %v3082 = vadd.f32 %v2826, 1e-05
        %v3083 = vadd.f32 %v2827, 1e-05
        %v3084 = vadd.f32 %v2828, 1e-05
        %v3085 = vadd.f32 %v2829, 1e-05
        %v3086 = vadd.f32 %v2830, 1e-05
        %v3087 = vadd.f32 %v2831, 1e-05
        %v3088 = vadd.f32 %v2832, 1e-05
        %v3089 = vadd.f32 %v2833, 1e-05
        %v3090 = vadd.f32 %v2834, 1e-05
        %v3091 = vadd.f32 %v2835, 1e-05
        %v3092 = vadd.f32 %v2836, 1e-05
        %v3093 = vadd.f32 %v2837, 1e-05
        %v3094 = vadd.f32 %v2838, 1e-05
        %v3095 = vadd.f32 %v2839, 1e-05
        %v3096 = vadd.f32 %v2840, 1e-05
        %v3097 = vadd.f32 %v2841, 1e-05
        %v3098 = vadd.f32 %v2842, 1e-05
        %v3099 = vadd.f32 %v2843, 1e-05
        %v3100 = vadd.f32 %v2844, 1e-05
        %v3101 = vadd.f32 %v2845, 1e-05
        %v3102 = vadd.f32 %v2846, 1e-05
        %v3103 = vadd.f32 %v2847, 1e-05
        %v3104 = vadd.f32 %v2848, 1e-05
        %v3105 = vadd.f32 %v2849, 1e-05
        %v3106 = vadd.f32 %v2850, 1e-05
        %v3107 = vadd.f32 %v2851, 1e-05
        %v3108 = vadd.f32 %v2852, 1e-05
        %v3109 = vadd.f32 %v2853, 1e-05
        %v3110 = vadd.f32 %v2854, 1e-05
        %v3111 = vadd.f32 %v2855, 1e-05
        %v3112 = vadd.f32 %v2856, 1e-05
        %v3113 = vadd.f32 %v2857, 1e-05
        %v3114 = vadd.f32 %v2858, 1e-05
        %v3115 = vadd.f32 %v2859, 1e-05
        %v3116 = vadd.f32 %v2860, 1e-05
        %v3117 = vadd.f32 %v2861, 1e-05
        %v3118 = vadd.f32 %v2862, 1e-05
        %v3119 = vadd.f32 %v2863, 1e-05
        %v3120 = vadd.f32 %v2864, 1e-05
        %v3121 = vadd.f32 %v2865, 1e-05
        %v3122 = vadd.f32 %v2866, 1e-05
        %v3123 = vadd.f32 %v2867, 1e-05
        %v3124 = vadd.f32 %v2868, 1e-05
        %v3125 = vadd.f32 %v2869, 1e-05
        %v3126 = vadd.f32 %v2870, 1e-05
        %v3127 = vadd.f32 %v2871, 1e-05
        %v3128 = vadd.f32 %v2872, 1e-05
        %v3129 = vadd.f32 %v2873, 1e-05
        %v3130 = vadd.f32 %v2874, 1e-05
        %v3131 = vadd.f32 %v2875, 1e-05
        %v3132 = vadd.f32 %v2876, 1e-05
        %v3133 = vadd.f32 %v2877, 1e-05
        %v3134 = vadd.f32 %v2878, 1e-05
        %v3135 = vadd.f32 %v2879, 1e-05
        %v3136 = vadd.f32 %v2880, 1e-05
        %v3137 = vadd.f32 %v2881, 1e-05
        %v3138 = vadd.f32 %v2882, 1e-05
        %v3139 = vadd.f32 %v2883, 1e-05
        %v3140 = vadd.f32 %v2884, 1e-05
        %v3141 = vadd.f32 %v2885, 1e-05
        %v3142 = vadd.f32 %v2886, 1e-05
        %v3143 = vadd.f32 %v2887, 1e-05
        %v3144 = vadd.f32 %v2888, 1e-05
        %v3145 = vadd.f32 %v2889, 1e-05
        %v3146 = vadd.f32 %v2890, 1e-05
        %v3147 = vadd.f32 %v2891, 1e-05
        %v3148 = vadd.f32 %v2892, 1e-05
        %v3149 = vadd.f32 %v2893, 1e-05
        %v3150 = vadd.f32 %v2894, 1e-05
        %v3151 = vadd.f32 %v2895, 1e-05
        %v3152 = vadd.f32 %v2896, 1e-05
        %v3153 = vadd.f32 %v2897, 1e-05
        %v3154 = vadd.f32 %v2898, 1e-05
        %v3155 = vadd.f32 %v2899, 1e-05
        %v3156 = vadd.f32 %v2900, 1e-05
        %v3157 = vadd.f32 %v2901, 1e-05
        %v3158 = vadd.f32 %v2902, 1e-05
        %v3159 = vadd.f32 %v2903, 1e-05
        %v3160 = vadd.f32 %v2904, 1e-05
        %v3161 = vadd.f32 %v2905, 1e-05
        %v3162 = vadd.f32 %v2906, 1e-05
        %v3163 = vadd.f32 %v2907, 1e-05
        %v3164 = vadd.f32 %v2908, 1e-05
        %v3165 = vadd.f32 %v2909, 1e-05
        %v3166 = vadd.f32 %v2910, 1e-05
        %v3167 = vadd.f32 %v2911, 1e-05
        %v3168 = vadd.f32 %v2912, 1e-05
        %v3169 = vadd.f32 %v2913, 1e-05
        %v3170 = vadd.f32 %v2914, 1e-05
        %v3171 = vadd.f32 %v2915, 1e-05
        %v3172 = vadd.f32 %v2916, 1e-05
        %v3173 = vadd.f32 %v2917, 1e-05
        %v3174 = vadd.f32 %v2918, 1e-05
        %v3175 = vadd.f32 %v2919, 1e-05
        %v3176 = vadd.f32 %v2920, 1e-05
        %v3177 = vadd.f32 %v2921, 1e-05
        %v3178 = vadd.f32 %v2922, 1e-05
        %v3179 = vadd.f32 %v2923, 1e-05
        %v3180 = vadd.f32 %v2924, 1e-05
        %v3181 = vadd.f32 %v2925, 1e-05
        %v3182 = vadd.f32 %v2926, 1e-05
        %v3183 = vadd.f32 %v2927, 1e-05
        %v3184 = vadd.f32 %v2928, 1e-05
        %v3185 = vadd.f32 %v2929, 1e-05
        %v3186 = vadd.f32 %v2930, 1e-05
        %v3187 = vadd.f32 %v2931, 1e-05
        %v3188 = vadd.f32 %v2932, 1e-05
        %v3189 = vadd.f32 %v2933, 1e-05
        %v3190 = vadd.f32 %v2934, 1e-05
        %v3191 = vadd.f32 %v2935, 1e-05
        %v3192 = vadd.f32 %v2936, 1e-05
        %v3193 = vadd.f32 %v2937, 1e-05
        %v3194 = vadd.f32 %v2938, 1e-05
        %v3195 = vadd.f32 %v2939, 1e-05
        %v3196 = vadd.f32 %v2940, 1e-05
        %v3197 = vadd.f32 %v2941, 1e-05
        %v3198 = vadd.f32 %v2942, 1e-05
        %v3199 = vadd.f32 %v2943, 1e-05
        %v3200 = vadd.f32 %v2944, 1e-05
        %v3201 = vadd.f32 %v2945, 1e-05
        %v3202 = vadd.f32 %v2946, 1e-05
        %v3203 = vadd.f32 %v2947, 1e-05
        %v3204 = vadd.f32 %v2948, 1e-05
        %v3205 = vrsqrt.pop %v3077
        %v3206 = vrsqrt.pop %v3078
        %v3207 = vrsqrt.pop %v3079
        %v3208 = vrsqrt.pop %v3080
        %v3209 = vrsqrt.pop %v3081
        %v3210 = vrsqrt.pop %v3082
        %v3211 = vrsqrt.pop %v3083
        %v3212 = vrsqrt.pop %v3084
        %v3213 = vrsqrt.pop %v3085
        %v3214 = vrsqrt.pop %v3086
        %v3215 = vrsqrt.pop %v3087
        %v3216 = vrsqrt.pop %v3088
        %v3217 = vrsqrt.pop %v3089
        %v3218 = vrsqrt.pop %v3090
        %v3219 = vrsqrt.pop %v3091
        %v3220 = vrsqrt.pop %v3092
        %v3221 = vrsqrt.pop %v3093
        %v3222 = vrsqrt.pop %v3094
        %v3223 = vrsqrt.pop %v3095
        %v3224 = vrsqrt.pop %v3096
        %v3225 = vrsqrt.pop %v3097
        %v3226 = vrsqrt.pop %v3098
        %v3227 = vrsqrt.pop %v3099
        %v3228 = vrsqrt.pop %v3100
        %v3229 = vrsqrt.pop %v3101
        %v3230 = vrsqrt.pop %v3102
        %v3231 = vrsqrt.pop %v3103
        %v3232 = vrsqrt.pop %v3104
        %v3233 = vrsqrt.pop %v3105
        %v3234 = vrsqrt.pop %v3106
        %v3235 = vrsqrt.pop %v3107
        %v3236 = vrsqrt.pop %v3108
        %v3237 = vrsqrt.pop %v3109
        %v3238 = vrsqrt.pop %v3110
        %v3239 = vrsqrt.pop %v3111
        %v3240 = vrsqrt.pop %v3112
        %v3241 = vrsqrt.pop %v3113
        %v3242 = vrsqrt.pop %v3114
        %v3243 = vrsqrt.pop %v3115
        %v3244 = vrsqrt.pop %v3116
        %v3245 = vrsqrt.pop %v3117
        %v3246 = vrsqrt.pop %v3118
        %v3247 = vrsqrt.pop %v3119
        %v3248 = vrsqrt.pop %v3120
        %v3249 = vrsqrt.pop %v3121
        %v3250 = vrsqrt.pop %v3122
        %v3251 = vrsqrt.pop %v3123
        %v3252 = vrsqrt.pop %v3124
        %v3253 = vrsqrt.pop %v3125
        %v3254 = vrsqrt.pop %v3126
        %v3255 = vrsqrt.pop %v3127
        %v3256 = vrsqrt.pop %v3128
        %v3257 = vrsqrt.pop %v3129
        %v3258 = vrsqrt.pop %v3130
        %v3259 = vrsqrt.pop %v3131
        %v3260 = vrsqrt.pop %v3132
        %v3261 = vrsqrt.pop %v3133
        %v3262 = vrsqrt.pop %v3134
        %v3263 = vrsqrt.pop %v3135
        %v3264 = vrsqrt.pop %v3136
        %v3265 = vrsqrt.pop %v3137
        %v3266 = vrsqrt.pop %v3138
        %v3267 = vrsqrt.pop %v3139
        %v3268 = vrsqrt.pop %v3140
        %v3269 = vrsqrt.pop %v3141
        %v3270 = vrsqrt.pop %v3142
        %v3271 = vrsqrt.pop %v3143
        %v3272 = vrsqrt.pop %v3144
        %v3273 = vrsqrt.pop %v3145
        %v3274 = vrsqrt.pop %v3146
        %v3275 = vrsqrt.pop %v3147
        %v3276 = vrsqrt.pop %v3148
        %v3277 = vrsqrt.pop %v3149
        %v3278 = vrsqrt.pop %v3150
        %v3279 = vrsqrt.pop %v3151
        %v3280 = vrsqrt.pop %v3152
        %v3281 = vrsqrt.pop %v3153
        %v3282 = vrsqrt.pop %v3154
        %v3283 = vrsqrt.pop %v3155
        %v3284 = vrsqrt.pop %v3156
        %v3285 = vrsqrt.pop %v3157
        %v3286 = vrsqrt.pop %v3158
        %v3287 = vrsqrt.pop %v3159
        %v3288 = vrsqrt.pop %v3160
        %v3289 = vrsqrt.pop %v3161
        %v3290 = vrsqrt.pop %v3162
        %v3291 = vrsqrt.pop %v3163
        %v3292 = vrsqrt.pop %v3164
        %v3293 = vrsqrt.pop %v3165
        %v3294 = vrsqrt.pop %v3166
        %v3295 = vrsqrt.pop %v3167
        %v3296 = vrsqrt.pop %v3168
        %v3297 = vrsqrt.pop %v3169
        %v3298 = vrsqrt.pop %v3170
        %v3299 = vrsqrt.pop %v3171
        %v3300 = vrsqrt.pop %v3172
        %v3301 = vrsqrt.pop %v3173
        %v3302 = vrsqrt.pop %v3174
        %v3303 = vrsqrt.pop %v3175
        %v3304 = vrsqrt.pop %v3176
        %v3305 = vrsqrt.pop %v3177
        %v3306 = vrsqrt.pop %v3178
        %v3307 = vrsqrt.pop %v3179
        %v3308 = vrsqrt.pop %v3180
        %v3309 = vrsqrt.pop %v3181
        %v3310 = vrsqrt.pop %v3182
        %v3311 = vrsqrt.pop %v3183
        %v3312 = vrsqrt.pop %v3184
        %v3313 = vrsqrt.pop %v3185
        %v3314 = vrsqrt.pop %v3186
        %v3315 = vrsqrt.pop %v3187
        %v3316 = vrsqrt.pop %v3188
        %v3317 = vrsqrt.pop %v3189
        %v3318 = vrsqrt.pop %v3190
        %v3319 = vrsqrt.pop %v3191
        %v3320 = vrsqrt.pop %v3192
        %v3321 = vrsqrt.pop %v3193
        %v3322 = vrsqrt.pop %v3194
        %v3323 = vrsqrt.pop %v3195
        %v3324 = vrsqrt.pop %v3196
        %v3325 = vrsqrt.pop %v3197
        %v3326 = vrsqrt.pop %v3198
        %v3327 = vrsqrt.pop %v3199
        %v3328 = vrsqrt.pop %v3200
        %v3329 = vrsqrt.pop %v3201
        %v3330 = vrsqrt.pop %v3202
        %v3331 = vrsqrt.pop %v3203
        %v3332 = vrsqrt.pop %v3204
        %v3333 = vmul.f32 %v2949, %v3205
        %v3334 = vmul.f32 %v2950, %v3206
        %v3335 = vmul.f32 %v2951, %v3207
        %v3336 = vmul.f32 %v2952, %v3208
        %v3337 = vmul.f32 %v2953, %v3209
        %v3338 = vmul.f32 %v2954, %v3210
        %v3339 = vmul.f32 %v2955, %v3211
        %v3340 = vmul.f32 %v2956, %v3212
        %v3341 = vmul.f32 %v2957, %v3213
        %v3342 = vmul.f32 %v2958, %v3214
        %v3343 = vmul.f32 %v2959, %v3215
        %v3344 = vmul.f32 %v2960, %v3216
        %v3345 = vmul.f32 %v2961, %v3217
        %v3346 = vmul.f32 %v2962, %v3218
        %v3347 = vmul.f32 %v2963, %v3219
        %v3348 = vmul.f32 %v2964, %v3220
        %v3349 = vmul.f32 %v2965, %v3221
        %v3350 = vmul.f32 %v2966, %v3222
        %v3351 = vmul.f32 %v2967, %v3223
        %v3352 = vmul.f32 %v2968, %v3224
        %v3353 = vmul.f32 %v2969, %v3225
        %v3354 = vmul.f32 %v2970, %v3226
        %v3355 = vmul.f32 %v2971, %v3227
        %v3356 = vmul.f32 %v2972, %v3228
        %v3357 = vmul.f32 %v2973, %v3229
        %v3358 = vmul.f32 %v2974, %v3230
        %v3359 = vmul.f32 %v2975, %v3231
        %v3360 = vmul.f32 %v2976, %v3232
        %v3361 = vmul.f32 %v2977, %v3233
        %v3362 = vmul.f32 %v2978, %v3234
        %v3363 = vmul.f32 %v2979, %v3235
        %v3364 = vmul.f32 %v2980, %v3236
        %v3365 = vmul.f32 %v2981, %v3237
        %v3366 = vmul.f32 %v2982, %v3238
        %v3367 = vmul.f32 %v2983, %v3239
        %v3368 = vmul.f32 %v2984, %v3240
        %v3369 = vmul.f32 %v2985, %v3241
        %v3370 = vmul.f32 %v2986, %v3242
        %v3371 = vmul.f32 %v2987, %v3243
        %v3372 = vmul.f32 %v2988, %v3244
        %v3373 = vmul.f32 %v2989, %v3245
        %v3374 = vmul.f32 %v2990, %v3246
        %v3375 = vmul.f32 %v2991, %v3247
        %v3376 = vmul.f32 %v2992, %v3248
        %v3377 = vmul.f32 %v2993, %v3249
        %v3378 = vmul.f32 %v2994, %v3250
        %v3379 = vmul.f32 %v2995, %v3251
        %v3380 = vmul.f32 %v2996, %v3252
        %v3381 = vmul.f32 %v2997, %v3253
        %v3382 = vmul.f32 %v2998, %v3254
        %v3383 = vmul.f32 %v2999, %v3255
        %v3384 = vmul.f32 %v3000, %v3256
        %v3385 = vmul.f32 %v3001, %v3257
        %v3386 = vmul.f32 %v3002, %v3258
        %v3387 = vmul.f32 %v3003, %v3259
        %v3388 = vmul.f32 %v3004, %v3260
        %v3389 = vmul.f32 %v3005, %v3261
        %v3390 = vmul.f32 %v3006, %v3262
        %v3391 = vmul.f32 %v3007, %v3263
        %v3392 = vmul.f32 %v3008, %v3264
        %v3393 = vmul.f32 %v3009, %v3265
        %v3394 = vmul.f32 %v3010, %v3266
        %v3395 = vmul.f32 %v3011, %v3267
        %v3396 = vmul.f32 %v3012, %v3268
        %v3397 = vmul.f32 %v3013, %v3269
        %v3398 = vmul.f32 %v3014, %v3270
        %v3399 = vmul.f32 %v3015, %v3271
        %v3400 = vmul.f32 %v3016, %v3272
        %v3401 = vmul.f32 %v3017, %v3273
        %v3402 = vmul.f32 %v3018, %v3274
        %v3403 = vmul.f32 %v3019, %v3275
        %v3404 = vmul.f32 %v3020, %v3276
        %v3405 = vmul.f32 %v3021, %v3277
        %v3406 = vmul.f32 %v3022, %v3278
        %v3407 = vmul.f32 %v3023, %v3279
        %v3408 = vmul.f32 %v3024, %v3280
        %v3409 = vmul.f32 %v3025, %v3281
        %v3410 = vmul.f32 %v3026, %v3282
        %v3411 = vmul.f32 %v3027, %v3283
        %v3412 = vmul.f32 %v3028, %v3284
        %v3413 = vmul.f32 %v3029, %v3285
        %v3414 = vmul.f32 %v3030, %v3286
        %v3415 = vmul.f32 %v3031, %v3287
        %v3416 = vmul.f32 %v3032, %v3288
        %v3417 = vmul.f32 %v3033, %v3289
        %v3418 = vmul.f32 %v3034, %v3290
        %v3419 = vmul.f32 %v3035, %v3291
        %v3420 = vmul.f32 %v3036, %v3292
        %v3421 = vmul.f32 %v3037, %v3293
        %v3422 = vmul.f32 %v3038, %v3294
        %v3423 = vmul.f32 %v3039, %v3295
        %v3424 = vmul.f32 %v3040, %v3296
        %v3425 = vmul.f32 %v3041, %v3297
        %v3426 = vmul.f32 %v3042, %v3298
        %v3427 = vmul.f32 %v3043, %v3299
        %v3428 = vmul.f32 %v3044, %v3300
        %v3429 = vmul.f32 %v3045, %v3301
        %v3430 = vmul.f32 %v3046, %v3302
        %v3431 = vmul.f32 %v3047, %v3303
        %v3432 = vmul.f32 %v3048, %v3304
        %v3433 = vmul.f32 %v3049, %v3305
        %v3434 = vmul.f32 %v3050, %v3306
        %v3435 = vmul.f32 %v3051, %v3307
        %v3436 = vmul.f32 %v3052, %v3308
        %v3437 = vmul.f32 %v3053, %v3309
        %v3438 = vmul.f32 %v3054, %v3310
        %v3439 = vmul.f32 %v3055, %v3311
        %v3440 = vmul.f32 %v3056, %v3312
        %v3441 = vmul.f32 %v3057, %v3313
        %v3442 = vmul.f32 %v3058, %v3314
        %v3443 = vmul.f32 %v3059, %v3315
        %v3444 = vmul.f32 %v3060, %v3316
        %v3445 = vmul.f32 %v3061, %v3317
        %v3446 = vmul.f32 %v3062, %v3318
        %v3447 = vmul.f32 %v3063, %v3319
        %v3448 = vmul.f32 %v3064, %v3320
        %v3449 = vmul.f32 %v3065, %v3321
        %v3450 = vmul.f32 %v3066, %v3322
        %v3451 = vmul.f32 %v3067, %v3323
        %v3452 = vmul.f32 %v3068, %v3324
        %v3453 = vmul.f32 %v3069, %v3325
        %v3454 = vmul.f32 %v3070, %v3326
        %v3455 = vmul.f32 %v3071, %v3327
        %v3456 = vmul.f32 %v3072, %v3328
        %v3457 = vmul.f32 %v3073, %v3329
        %v3458 = vmul.f32 %v3074, %v3330
        %v3459 = vmul.f32 %v3075, %v3331
        %v3460 = vmul.f32 %v3076, %v3332
        %s3461 = smul.u32 %s207, 2
        %s3462 = scalar_lea.vmem %s3, %s3461
        %v3463 = vld [vmem:[%s3462] sm:$0x3]
        %v3464 = vlaneseq
        %v3465 = vshrl.u32 %v3464, 7
        %v3466 = vsub.s32 0, %v3465
        %v3467 = vrot.slane %v3463, %v3466
        %v3468 = vmul.f32 %v3333, %v3467
        %v3469 = vmul.f32 %v3334, %v3467
        %v3470 = vmul.f32 %v3335, %v3467
        %v3471 = vmul.f32 %v3336, %v3467
        %v3472 = vmul.f32 %v3337, %v3467
        %v3473 = vmul.f32 %v3338, %v3467
        %v3474 = vmul.f32 %v3339, %v3467
        %v3475 = vmul.f32 %v3340, %v3467
        %v3476 = vmul.f32 %v3341, %v3467
        %v3477 = vmul.f32 %v3342, %v3467
        %v3478 = vmul.f32 %v3343, %v3467
        %v3479 = vmul.f32 %v3344, %v3467
        %v3480 = vmul.f32 %v3345, %v3467
        %v3481 = vmul.f32 %v3346, %v3467
        %v3482 = vmul.f32 %v3347, %v3467
        %v3483 = vmul.f32 %v3348, %v3467
        %v3484 = vmul.f32 %v3349, %v3467
        %v3485 = vmul.f32 %v3350, %v3467
        %v3486 = vmul.f32 %v3351, %v3467
        %v3487 = vmul.f32 %v3352, %v3467
        %v3488 = vmul.f32 %v3353, %v3467
        %v3489 = vmul.f32 %v3354, %v3467
        %v3490 = vmul.f32 %v3355, %v3467
        %v3491 = vmul.f32 %v3356, %v3467
        %v3492 = vmul.f32 %v3357, %v3467
        %v3493 = vmul.f32 %v3358, %v3467
        %v3494 = vmul.f32 %v3359, %v3467
        %v3495 = vmul.f32 %v3360, %v3467
        %v3496 = vmul.f32 %v3361, %v3467
        %v3497 = vmul.f32 %v3362, %v3467
        %v3498 = vmul.f32 %v3363, %v3467
        %v3499 = vmul.f32 %v3364, %v3467
        %v3500 = vmul.f32 %v3365, %v3467
        %v3501 = vmul.f32 %v3366, %v3467
        %v3502 = vmul.f32 %v3367, %v3467
        %v3503 = vmul.f32 %v3368, %v3467
        %v3504 = vmul.f32 %v3369, %v3467
        %v3505 = vmul.f32 %v3370, %v3467
        %v3506 = vmul.f32 %v3371, %v3467
        %v3507 = vmul.f32 %v3372, %v3467
        %v3508 = vmul.f32 %v3373, %v3467
        %v3509 = vmul.f32 %v3374, %v3467
        %v3510 = vmul.f32 %v3375, %v3467
        %v3511 = vmul.f32 %v3376, %v3467
        %v3512 = vmul.f32 %v3377, %v3467
        %v3513 = vmul.f32 %v3378, %v3467
        %v3514 = vmul.f32 %v3379, %v3467
        %v3515 = vmul.f32 %v3380, %v3467
        %v3516 = vmul.f32 %v3381, %v3467
        %v3517 = vmul.f32 %v3382, %v3467
        %v3518 = vmul.f32 %v3383, %v3467
        %v3519 = vmul.f32 %v3384, %v3467
        %v3520 = vmul.f32 %v3385, %v3467
        %v3521 = vmul.f32 %v3386, %v3467
        %v3522 = vmul.f32 %v3387, %v3467
        %v3523 = vmul.f32 %v3388, %v3467
        %v3524 = vmul.f32 %v3389, %v3467
        %v3525 = vmul.f32 %v3390, %v3467
        %v3526 = vmul.f32 %v3391, %v3467
        %v3527 = vmul.f32 %v3392, %v3467
        %v3528 = vmul.f32 %v3393, %v3467
        %v3529 = vmul.f32 %v3394, %v3467
        %v3530 = vmul.f32 %v3395, %v3467
        %v3531 = vmul.f32 %v3396, %v3467
        %v3532 = vmul.f32 %v3397, %v3467
        %v3533 = vmul.f32 %v3398, %v3467
        %v3534 = vmul.f32 %v3399, %v3467
        %v3535 = vmul.f32 %v3400, %v3467
        %v3536 = vmul.f32 %v3401, %v3467
        %v3537 = vmul.f32 %v3402, %v3467
        %v3538 = vmul.f32 %v3403, %v3467
        %v3539 = vmul.f32 %v3404, %v3467
        %v3540 = vmul.f32 %v3405, %v3467
        %v3541 = vmul.f32 %v3406, %v3467
        %v3542 = vmul.f32 %v3407, %v3467
        %v3543 = vmul.f32 %v3408, %v3467
        %v3544 = vmul.f32 %v3409, %v3467
        %v3545 = vmul.f32 %v3410, %v3467
        %v3546 = vmul.f32 %v3411, %v3467
        %v3547 = vmul.f32 %v3412, %v3467
        %v3548 = vmul.f32 %v3413, %v3467
        %v3549 = vmul.f32 %v3414, %v3467
        %v3550 = vmul.f32 %v3415, %v3467
        %v3551 = vmul.f32 %v3416, %v3467
        %v3552 = vmul.f32 %v3417, %v3467
        %v3553 = vmul.f32 %v3418, %v3467
        %v3554 = vmul.f32 %v3419, %v3467
        %v3555 = vmul.f32 %v3420, %v3467
        %v3556 = vmul.f32 %v3421, %v3467
        %v3557 = vmul.f32 %v3422, %v3467
        %v3558 = vmul.f32 %v3423, %v3467
        %v3559 = vmul.f32 %v3424, %v3467
        %v3560 = vmul.f32 %v3425, %v3467
        %v3561 = vmul.f32 %v3426, %v3467
        %v3562 = vmul.f32 %v3427, %v3467
        %v3563 = vmul.f32 %v3428, %v3467
        %v3564 = vmul.f32 %v3429, %v3467
        %v3565 = vmul.f32 %v3430, %v3467
        %v3566 = vmul.f32 %v3431, %v3467
        %v3567 = vmul.f32 %v3432, %v3467
        %v3568 = vmul.f32 %v3433, %v3467
        %v3569 = vmul.f32 %v3434, %v3467
        %v3570 = vmul.f32 %v3435, %v3467
        %v3571 = vmul.f32 %v3436, %v3467
        %v3572 = vmul.f32 %v3437, %v3467
        %v3573 = vmul.f32 %v3438, %v3467
        %v3574 = vmul.f32 %v3439, %v3467
        %v3575 = vmul.f32 %v3440, %v3467
        %v3576 = vmul.f32 %v3441, %v3467
        %v3577 = vmul.f32 %v3442, %v3467
        %v3578 = vmul.f32 %v3443, %v3467
        %v3579 = vmul.f32 %v3444, %v3467
        %v3580 = vmul.f32 %v3445, %v3467
        %v3581 = vmul.f32 %v3446, %v3467
        %v3582 = vmul.f32 %v3447, %v3467
        %v3583 = vmul.f32 %v3448, %v3467
        %v3584 = vmul.f32 %v3449, %v3467
        %v3585 = vmul.f32 %v3450, %v3467
        %v3586 = vmul.f32 %v3451, %v3467
        %v3587 = vmul.f32 %v3452, %v3467
        %v3588 = vmul.f32 %v3453, %v3467
        %v3589 = vmul.f32 %v3454, %v3467
        %v3590 = vmul.f32 %v3455, %v3467
        %v3591 = vmul.f32 %v3456, %v3467
        %v3592 = vmul.f32 %v3457, %v3467
        %v3593 = vmul.f32 %v3458, %v3467
        %v3594 = vmul.f32 %v3459, %v3467
        %v3595 = vmul.f32 %v3460, %v3467
        %v3596 = vlaneseq
        %v3597 = vshrl.u32 %v3596, 7
        %v3598 = vsub.s32 1, %v3597
        %v3599 = vrot.slane %v3463, %v3598
        %v3600 = vadd.f32 %v3468, %v3599
        %v3601 = vadd.f32 %v3469, %v3599
        %v3602 = vadd.f32 %v3470, %v3599
        %v3603 = vadd.f32 %v3471, %v3599
        %v3604 = vadd.f32 %v3472, %v3599
        %v3605 = vadd.f32 %v3473, %v3599
        %v3606 = vadd.f32 %v3474, %v3599
        %v3607 = vadd.f32 %v3475, %v3599
        %v3608 = vadd.f32 %v3476, %v3599
        %v3609 = vadd.f32 %v3477, %v3599
        %v3610 = vadd.f32 %v3478, %v3599
        %v3611 = vadd.f32 %v3479, %v3599
        %v3612 = vadd.f32 %v3480, %v3599
        %v3613 = vadd.f32 %v3481, %v3599
        %v3614 = vadd.f32 %v3482, %v3599
        %v3615 = vadd.f32 %v3483, %v3599
        %v3616 = vadd.f32 %v3484, %v3599
        %v3617 = vadd.f32 %v3485, %v3599
        %v3618 = vadd.f32 %v3486, %v3599
        %v3619 = vadd.f32 %v3487, %v3599
        %v3620 = vadd.f32 %v3488, %v3599
        %v3621 = vadd.f32 %v3489, %v3599
        %v3622 = vadd.f32 %v3490, %v3599
        %v3623 = vadd.f32 %v3491, %v3599
        %v3624 = vadd.f32 %v3492, %v3599
        %v3625 = vadd.f32 %v3493, %v3599
        %v3626 = vadd.f32 %v3494, %v3599
        %v3627 = vadd.f32 %v3495, %v3599
        %v3628 = vadd.f32 %v3496, %v3599
        %v3629 = vadd.f32 %v3497, %v3599
        %v3630 = vadd.f32 %v3498, %v3599
        %v3631 = vadd.f32 %v3499, %v3599
        %v3632 = vadd.f32 %v3500, %v3599
        %v3633 = vadd.f32 %v3501, %v3599
        %v3634 = vadd.f32 %v3502, %v3599
        %v3635 = vadd.f32 %v3503, %v3599
        %v3636 = vadd.f32 %v3504, %v3599
        %v3637 = vadd.f32 %v3505, %v3599
        %v3638 = vadd.f32 %v3506, %v3599
        %v3639 = vadd.f32 %v3507, %v3599
        %v3640 = vadd.f32 %v3508, %v3599
        %v3641 = vadd.f32 %v3509, %v3599
        %v3642 = vadd.f32 %v3510, %v3599
        %v3643 = vadd.f32 %v3511, %v3599
        %v3644 = vadd.f32 %v3512, %v3599
        %v3645 = vadd.f32 %v3513, %v3599
        %v3646 = vadd.f32 %v3514, %v3599
        %v3647 = vadd.f32 %v3515, %v3599
        %v3648 = vadd.f32 %v3516, %v3599
        %v3649 = vadd.f32 %v3517, %v3599
        %v3650 = vadd.f32 %v3518, %v3599
        %v3651 = vadd.f32 %v3519, %v3599
        %v3652 = vadd.f32 %v3520, %v3599
        %v3653 = vadd.f32 %v3521, %v3599
        %v3654 = vadd.f32 %v3522, %v3599
        %v3655 = vadd.f32 %v3523, %v3599
        %v3656 = vadd.f32 %v3524, %v3599
        %v3657 = vadd.f32 %v3525, %v3599
        %v3658 = vadd.f32 %v3526, %v3599
        %v3659 = vadd.f32 %v3527, %v3599
        %v3660 = vadd.f32 %v3528, %v3599
        %v3661 = vadd.f32 %v3529, %v3599
        %v3662 = vadd.f32 %v3530, %v3599
        %v3663 = vadd.f32 %v3531, %v3599
        %v3664 = vadd.f32 %v3532, %v3599
        %v3665 = vadd.f32 %v3533, %v3599
        %v3666 = vadd.f32 %v3534, %v3599
        %v3667 = vadd.f32 %v3535, %v3599
        %v3668 = vadd.f32 %v3536, %v3599
        %v3669 = vadd.f32 %v3537, %v3599
        %v3670 = vadd.f32 %v3538, %v3599
        %v3671 = vadd.f32 %v3539, %v3599
        %v3672 = vadd.f32 %v3540, %v3599
        %v3673 = vadd.f32 %v3541, %v3599
        %v3674 = vadd.f32 %v3542, %v3599
        %v3675 = vadd.f32 %v3543, %v3599
        %v3676 = vadd.f32 %v3544, %v3599
        %v3677 = vadd.f32 %v3545, %v3599
        %v3678 = vadd.f32 %v3546, %v3599
        %v3679 = vadd.f32 %v3547, %v3599
        %v3680 = vadd.f32 %v3548, %v3599
        %v3681 = vadd.f32 %v3549, %v3599
        %v3682 = vadd.f32 %v3550, %v3599
        %v3683 = vadd.f32 %v3551, %v3599
        %v3684 = vadd.f32 %v3552, %v3599
        %v3685 = vadd.f32 %v3553, %v3599
        %v3686 = vadd.f32 %v3554, %v3599
        %v3687 = vadd.f32 %v3555, %v3599
        %v3688 = vadd.f32 %v3556, %v3599
        %v3689 = vadd.f32 %v3557, %v3599
        %v3690 = vadd.f32 %v3558, %v3599
        %v3691 = vadd.f32 %v3559, %v3599
        %v3692 = vadd.f32 %v3560, %v3599
        %v3693 = vadd.f32 %v3561, %v3599
        %v3694 = vadd.f32 %v3562, %v3599
        %v3695 = vadd.f32 %v3563, %v3599
        %v3696 = vadd.f32 %v3564, %v3599
        %v3697 = vadd.f32 %v3565, %v3599
        %v3698 = vadd.f32 %v3566, %v3599
        %v3699 = vadd.f32 %v3567, %v3599
        %v3700 = vadd.f32 %v3568, %v3599
        %v3701 = vadd.f32 %v3569, %v3599
        %v3702 = vadd.f32 %v3570, %v3599
        %v3703 = vadd.f32 %v3571, %v3599
        %v3704 = vadd.f32 %v3572, %v3599
        %v3705 = vadd.f32 %v3573, %v3599
        %v3706 = vadd.f32 %v3574, %v3599
        %v3707 = vadd.f32 %v3575, %v3599
        %v3708 = vadd.f32 %v3576, %v3599
        %v3709 = vadd.f32 %v3577, %v3599
        %v3710 = vadd.f32 %v3578, %v3599
        %v3711 = vadd.f32 %v3579, %v3599
        %v3712 = vadd.f32 %v3580, %v3599
        %v3713 = vadd.f32 %v3581, %v3599
        %v3714 = vadd.f32 %v3582, %v3599
        %v3715 = vadd.f32 %v3583, %v3599
        %v3716 = vadd.f32 %v3584, %v3599
        %v3717 = vadd.f32 %v3585, %v3599
        %v3718 = vadd.f32 %v3586, %v3599
        %v3719 = vadd.f32 %v3587, %v3599
        %v3720 = vadd.f32 %v3588, %v3599
        %v3721 = vadd.f32 %v3589, %v3599
        %v3722 = vadd.f32 %v3590, %v3599
        %v3723 = vadd.f32 %v3591, %v3599
        %v3724 = vadd.f32 %v3592, %v3599
        %v3725 = vadd.f32 %v3593, %v3599
        %v3726 = vadd.f32 %v3594, %v3599
        %v3727 = vadd.f32 %v3595, %v3599
        %v3728 = vmax.f32 %v3600, 0.0
        %v3729 = vmax.f32 %v3601, 0.0
        %v3730 = vmax.f32 %v3602, 0.0
        %v3731 = vmax.f32 %v3603, 0.0
        %v3732 = vmax.f32 %v3604, 0.0
        %v3733 = vmax.f32 %v3605, 0.0
        %v3734 = vmax.f32 %v3606, 0.0
        %v3735 = vmax.f32 %v3607, 0.0
        %v3736 = vmax.f32 %v3608, 0.0
        %v3737 = vmax.f32 %v3609, 0.0
        %v3738 = vmax.f32 %v3610, 0.0
        %v3739 = vmax.f32 %v3611, 0.0
        %v3740 = vmax.f32 %v3612, 0.0
        %v3741 = vmax.f32 %v3613, 0.0
        %v3742 = vmax.f32 %v3614, 0.0
        %v3743 = vmax.f32 %v3615, 0.0
        %v3744 = vmax.f32 %v3616, 0.0
        %v3745 = vmax.f32 %v3617, 0.0
        %v3746 = vmax.f32 %v3618, 0.0
        %v3747 = vmax.f32 %v3619, 0.0
        %v3748 = vmax.f32 %v3620, 0.0
        %v3749 = vmax.f32 %v3621, 0.0
        %v3750 = vmax.f32 %v3622, 0.0
        %v3751 = vmax.f32 %v3623, 0.0
        %v3752 = vmax.f32 %v3624, 0.0
        %v3753 = vmax.f32 %v3625, 0.0
        %v3754 = vmax.f32 %v3626, 0.0
        %v3755 = vmax.f32 %v3627, 0.0
        %v3756 = vmax.f32 %v3628, 0.0
        %v3757 = vmax.f32 %v3629, 0.0
        %v3758 = vmax.f32 %v3630, 0.0
        %v3759 = vmax.f32 %v3631, 0.0
        %v3760 = vmax.f32 %v3632, 0.0
        %v3761 = vmax.f32 %v3633, 0.0
        %v3762 = vmax.f32 %v3634, 0.0
        %v3763 = vmax.f32 %v3635, 0.0
        %v3764 = vmax.f32 %v3636, 0.0
        %v3765 = vmax.f32 %v3637, 0.0
        %v3766 = vmax.f32 %v3638, 0.0
        %v3767 = vmax.f32 %v3639, 0.0
        %v3768 = vmax.f32 %v3640, 0.0
        %v3769 = vmax.f32 %v3641, 0.0
        %v3770 = vmax.f32 %v3642, 0.0
        %v3771 = vmax.f32 %v3643, 0.0
        %v3772 = vmax.f32 %v3644, 0.0
        %v3773 = vmax.f32 %v3645, 0.0
        %v3774 = vmax.f32 %v3646, 0.0
        %v3775 = vmax.f32 %v3647, 0.0
        %v3776 = vmax.f32 %v3648, 0.0
        %v3777 = vmax.f32 %v3649, 0.0
        %v3778 = vmax.f32 %v3650, 0.0
        %v3779 = vmax.f32 %v3651, 0.0
        %v3780 = vmax.f32 %v3652, 0.0
        %v3781 = vmax.f32 %v3653, 0.0
        %v3782 = vmax.f32 %v3654, 0.0
        %v3783 = vmax.f32 %v3655, 0.0
        %v3784 = vmax.f32 %v3656, 0.0
        %v3785 = vmax.f32 %v3657, 0.0
        %v3786 = vmax.f32 %v3658, 0.0
        %v3787 = vmax.f32 %v3659, 0.0
        %v3788 = vmax.f32 %v3660, 0.0
        %v3789 = vmax.f32 %v3661, 0.0
        %v3790 = vmax.f32 %v3662, 0.0
        %v3791 = vmax.f32 %v3663, 0.0
        %v3792 = vmax.f32 %v3664, 0.0
        %v3793 = vmax.f32 %v3665, 0.0
        %v3794 = vmax.f32 %v3666, 0.0
        %v3795 = vmax.f32 %v3667, 0.0
        %v3796 = vmax.f32 %v3668, 0.0
        %v3797 = vmax.f32 %v3669, 0.0
        %v3798 = vmax.f32 %v3670, 0.0
        %v3799 = vmax.f32 %v3671, 0.0
        %v3800 = vmax.f32 %v3672, 0.0
        %v3801 = vmax.f32 %v3673, 0.0
        %v3802 = vmax.f32 %v3674, 0.0
        %v3803 = vmax.f32 %v3675, 0.0
        %v3804 = vmax.f32 %v3676, 0.0
        %v3805 = vmax.f32 %v3677, 0.0
        %v3806 = vmax.f32 %v3678, 0.0
        %v3807 = vmax.f32 %v3679, 0.0
        %v3808 = vmax.f32 %v3680, 0.0
        %v3809 = vmax.f32 %v3681, 0.0
        %v3810 = vmax.f32 %v3682, 0.0
        %v3811 = vmax.f32 %v3683, 0.0
        %v3812 = vmax.f32 %v3684, 0.0
        %v3813 = vmax.f32 %v3685, 0.0
        %v3814 = vmax.f32 %v3686, 0.0
        %v3815 = vmax.f32 %v3687, 0.0
        %v3816 = vmax.f32 %v3688, 0.0
        %v3817 = vmax.f32 %v3689, 0.0
        %v3818 = vmax.f32 %v3690, 0.0
        %v3819 = vmax.f32 %v3691, 0.0
        %v3820 = vmax.f32 %v3692, 0.0
        %v3821 = vmax.f32 %v3693, 0.0
        %v3822 = vmax.f32 %v3694, 0.0
        %v3823 = vmax.f32 %v3695, 0.0
        %v3824 = vmax.f32 %v3696, 0.0
        %v3825 = vmax.f32 %v3697, 0.0
        %v3826 = vmax.f32 %v3698, 0.0
        %v3827 = vmax.f32 %v3699, 0.0
        %v3828 = vmax.f32 %v3700, 0.0
        %v3829 = vmax.f32 %v3701, 0.0
        %v3830 = vmax.f32 %v3702, 0.0
        %v3831 = vmax.f32 %v3703, 0.0
        %v3832 = vmax.f32 %v3704, 0.0
        %v3833 = vmax.f32 %v3705, 0.0
        %v3834 = vmax.f32 %v3706, 0.0
        %v3835 = vmax.f32 %v3707, 0.0
        %v3836 = vmax.f32 %v3708, 0.0
        %v3837 = vmax.f32 %v3709, 0.0
        %v3838 = vmax.f32 %v3710, 0.0
        %v3839 = vmax.f32 %v3711, 0.0
        %v3840 = vmax.f32 %v3712, 0.0
        %v3841 = vmax.f32 %v3713, 0.0
        %v3842 = vmax.f32 %v3714, 0.0
        %v3843 = vmax.f32 %v3715, 0.0
        %v3844 = vmax.f32 %v3716, 0.0
        %v3845 = vmax.f32 %v3717, 0.0
        %v3846 = vmax.f32 %v3718, 0.0
        %v3847 = vmax.f32 %v3719, 0.0
        %v3848 = vmax.f32 %v3720, 0.0
        %v3849 = vmax.f32 %v3721, 0.0
        %v3850 = vmax.f32 %v3722, 0.0
        %v3851 = vmax.f32 %v3723, 0.0
        %v3852 = vmax.f32 %v3724, 0.0
        %v3853 = vmax.f32 %v3725, 0.0
        %v3854 = vmax.f32 %v3726, 0.0
        %v3855 = vmax.f32 %v3727, 0.0
        %s3856 = smul.addr %s336, 4
        %s3857 = scalar_lea.vmem %s4, %s3856
        %v3858 = vld [vmem:[%s3857] sm:$0xf]
        %v3859 = vld [vmem:[%s3857 + $0x4] sm:$0xf]
        %v3860 = vld [vmem:[%s3857 + $0x8] sm:$0xf]
        %v3861 = vld [vmem:[%s3857 + $0xc] sm:$0xf]
        %v3862 = vpack.c.bf16 %v3729, %v3728
        %v3863 = vpack.c.bf16 %v3731, %v3730
        %v3864 = vpack.c.bf16 %v3733, %v3732
        %v3865 = vpack.c.bf16 %v3735, %v3734
        %v3866 = vpack.c.bf16 %v3737, %v3736
        %v3867 = vpack.c.bf16 %v3739, %v3738
        %v3868 = vpack.c.bf16 %v3741, %v3740
        %v3869 = vpack.c.bf16 %v3743, %v3742
        %v3870 = vpack.c.bf16 %v3745, %v3744
        %v3871 = vpack.c.bf16 %v3747, %v3746
        %v3872 = vpack.c.bf16 %v3749, %v3748
        %v3873 = vpack.c.bf16 %v3751, %v3750
        %v3874 = vpack.c.bf16 %v3753, %v3752
        %v3875 = vpack.c.bf16 %v3755, %v3754
        %v3876 = vpack.c.bf16 %v3757, %v3756
        %v3877 = vpack.c.bf16 %v3759, %v3758
        %v3878 = vpack.c.bf16 %v3761, %v3760
        %v3879 = vpack.c.bf16 %v3763, %v3762
        %v3880 = vpack.c.bf16 %v3765, %v3764
        %v3881 = vpack.c.bf16 %v3767, %v3766
        %v3882 = vpack.c.bf16 %v3769, %v3768
        %v3883 = vpack.c.bf16 %v3771, %v3770
        %v3884 = vpack.c.bf16 %v3773, %v3772
        %v3885 = vpack.c.bf16 %v3775, %v3774
        %v3886 = vpack.c.bf16 %v3777, %v3776
        %v3887 = vpack.c.bf16 %v3779, %v3778
        %v3888 = vpack.c.bf16 %v3781, %v3780
        %v3889 = vpack.c.bf16 %v3783, %v3782
        %v3890 = vpack.c.bf16 %v3785, %v3784
        %v3891 = vpack.c.bf16 %v3787, %v3786
        %v3892 = vpack.c.bf16 %v3789, %v3788
        %v3893 = vpack.c.bf16 %v3791, %v3790
        %v3894 = vpack.c.bf16 %v3793, %v3792
        %v3895 = vpack.c.bf16 %v3795, %v3794
        %v3896 = vpack.c.bf16 %v3797, %v3796
        %v3897 = vpack.c.bf16 %v3799, %v3798
        %v3898 = vpack.c.bf16 %v3801, %v3800
        %v3899 = vpack.c.bf16 %v3803, %v3802
        %v3900 = vpack.c.bf16 %v3805, %v3804
        %v3901 = vpack.c.bf16 %v3807, %v3806
        %v3902 = vpack.c.bf16 %v3809, %v3808
        %v3903 = vpack.c.bf16 %v3811, %v3810
        %v3904 = vpack.c.bf16 %v3813, %v3812
        %v3905 = vpack.c.bf16 %v3815, %v3814
        %v3906 = vpack.c.bf16 %v3817, %v3816
        %v3907 = vpack.c.bf16 %v3819, %v3818
        %v3908 = vpack.c.bf16 %v3821, %v3820
        %v3909 = vpack.c.bf16 %v3823, %v3822
        %v3910 = vpack.c.bf16 %v3825, %v3824
        %v3911 = vpack.c.bf16 %v3827, %v3826
        %v3912 = vpack.c.bf16 %v3829, %v3828
        %v3913 = vpack.c.bf16 %v3831, %v3830
        %v3914 = vpack.c.bf16 %v3833, %v3832
        %v3915 = vpack.c.bf16 %v3835, %v3834
        %v3916 = vpack.c.bf16 %v3837, %v3836
        %v3917 = vpack.c.bf16 %v3839, %v3838
        %v3918 = vpack.c.bf16 %v3841, %v3840
        %v3919 = vpack.c.bf16 %v3843, %v3842
        %v3920 = vpack.c.bf16 %v3845, %v3844
        %v3921 = vpack.c.bf16 %v3847, %v3846
        %v3922 = vpack.c.bf16 %v3849, %v3848
        %v3923 = vpack.c.bf16 %v3851, %v3850
        %v3924 = vpack.c.bf16 %v3853, %v3852
        %v3925 = vpack.c.bf16 %v3855, %v3854
        %v3930 = vunpack.c.l.b16 %v3858
        %v3931 = vunpack.c.l.b16 %v3859
        %v3932 = vunpack.c.l.b16 %v3860
        %v3933 = vunpack.c.l.b16 %v3861
        %v3934 = vpack.c.b16 %v3931, %v3930
        %v3935 = vpack.c.b16 %v3933, %v3932
        %v3939 = vsel %vm675, %v3862, 0
        %v3942 = vsel %vm675, %v3863, 0
        %v3945 = vsel %vm675, %v3864, 0
        %v3948 = vsel %vm675, %v3865, 0
        %v3951 = vsel %vm675, %v3866, 0
        %v3954 = vsel %vm675, %v3867, 0
        %v3957 = vsel %vm675, %v3868, 0
        %v3960 = vsel %vm675, %v3869, 0
        %v3963 = vsel %vm675, %v3870, 0
        %v3966 = vsel %vm675, %v3871, 0
        %v3969 = vsel %vm675, %v3872, 0
        %v3972 = vsel %vm675, %v3873, 0
        %v3975 = vsel %vm675, %v3874, 0
        %v3978 = vsel %vm675, %v3875, 0
        %v3981 = vsel %vm675, %v3876, 0
        %v3984 = vsel %vm675, %v3877, 0
        %v3987 = vsel %vm675, %v3878, 0
        %v3990 = vsel %vm675, %v3879, 0
        %v3993 = vsel %vm675, %v3880, 0
        %v3996 = vsel %vm675, %v3881, 0
        %v3999 = vsel %vm675, %v3882, 0
        %v4002 = vsel %vm675, %v3883, 0
        %v4005 = vsel %vm675, %v3884, 0
        %v4008 = vsel %vm675, %v3885, 0
        %v4011 = vsel %vm675, %v3886, 0
        %v4014 = vsel %vm675, %v3887, 0
        %v4017 = vsel %vm675, %v3888, 0
        %v4020 = vsel %vm675, %v3889, 0
        %v4023 = vsel %vm675, %v3890, 0
        %v4026 = vsel %vm675, %v3891, 0
        %v4029 = vsel %vm675, %v3892, 0
        %v4032 = vsel %vm675, %v3893, 0
        %v4035 = vsel %vm675, %v3894, 0
        %v4038 = vsel %vm675, %v3895, 0
        %v4041 = vsel %vm675, %v3896, 0
        %v4044 = vsel %vm675, %v3897, 0
        %v4047 = vsel %vm675, %v3898, 0
        %v4050 = vsel %vm675, %v3899, 0
        %v4053 = vsel %vm675, %v3900, 0
        %v4056 = vsel %vm675, %v3901, 0
        %v4059 = vsel %vm675, %v3902, 0
        %v4062 = vsel %vm675, %v3903, 0
        %v4065 = vsel %vm675, %v3904, 0
        %v4068 = vsel %vm675, %v3905, 0
        %v4071 = vsel %vm675, %v3906, 0
        %v4074 = vsel %vm675, %v3907, 0
        %v4077 = vsel %vm675, %v3908, 0
        %v4080 = vsel %vm675, %v3909, 0
        %v4083 = vsel %vm675, %v3910, 0
        %v4086 = vsel %vm675, %v3911, 0
        %v4089 = vsel %vm675, %v3912, 0
        %v4092 = vsel %vm675, %v3913, 0
        %v4095 = vsel %vm675, %v3914, 0
        %v4098 = vsel %vm675, %v3915, 0
        %v4101 = vsel %vm675, %v3916, 0
        %v4104 = vsel %vm675, %v3917, 0
        %v4107 = vsel %vm675, %v3918, 0
        %v4110 = vsel %vm675, %v3919, 0
        %v4113 = vsel %vm675, %v3920, 0
        %v4116 = vsel %vm675, %v3921, 0
        %v4119 = vsel %vm675, %v3922, 0
        %v4122 = vsel %vm675, %v3923, 0
        %v4125 = vsel %vm675, %v3924, 0
        %v4128 = vsel %vm675, %v3925, 0
        %4130 = vmatprep.subr.bf16.mxu0 0
        %4131 = vmatpush1.bf16.msra.mxu0 %v3934
        %4132 = vmatprep.subr.bf16.mxu0 0
        %4133 = vmatpush1.bf16.msra.mxu0 %v3935
        %4134 = vmatprep.subr.bf16.mxu0 0
        %4135 = vmatpush1.bf16.msra.mxu0 0
        %4136 = vmatprep.subr.bf16.mxu0 0
        %4137 = vmatpush1.bf16.msra.mxu0 0
        %4138 = vmatprep.subr.bf16.mxu0 0
        %4139 = vmatpush1.bf16.msra.mxu0 0
        %4140 = vmatprep.subr.bf16.mxu0 0
        %4141 = vmatpush1.bf16.msra.mxu0 0
        %4142 = vmatprep.subr.bf16.mxu0 0
        %4143 = vmatpush1.bf16.msra.mxu0 0
        %4144 = vmatprep.subr.bf16.mxu0 0
        %4145 = vmatpush1.bf16.msra.mxu0 0
        %4146 = vmatprep.subr.bf16.mxu0 0
        %4147 = vmatpush1.bf16.msra.mxu0 0
        %4148 = vmatprep.subr.bf16.mxu0 0
        %4149 = vmatpush1.bf16.msra.mxu0 0
        %4150 = vmatprep.subr.bf16.mxu0 0
        %4151 = vmatpush1.bf16.msra.mxu0 0
        %4152 = vmatprep.subr.bf16.mxu0 0
        %4153 = vmatpush1.bf16.msra.mxu0 0
        %4154 = vmatprep.subr.bf16.mxu0 0
        %4155 = vmatpush1.bf16.msra.mxu0 0
        %4156 = vmatprep.subr.bf16.mxu0 0
        %4157 = vmatpush1.bf16.msra.mxu0 0
        %4158 = vmatprep.subr.bf16.mxu0 0
        %4159 = vmatpush1.bf16.msra.mxu0 0
        %4160 = vmatprep.subr.bf16.mxu0 0
        %4161 = vmatpush1.bf16.msra.mxu0 0
        %4162 = vmatprep.mubr.bf16.mxu0 0
        %4163 = vmatmul.mubr.bf16.gmra.mrb[0].mxu0 %v3939
        %v4164 = vpop.f32.mrb[0].mxu0
        %v4165 = vadd.f32 0.0, %v4164
        %v4166 = vpop.f32.mrb[0].mxu0
        %v4167 = vpop.f32.mrb[0].mxu0
        %v4168 = vadd.f32 0.0, %v4167
        %v4169 = vpop.f32.mrb[0].mxu0
        %4170 = vmatprep.mubr.bf16.mxu0 0
        %4171 = vmatmul.mubr.bf16.gmra.mrb[0].mxu0 %v3942
        %v4172 = vpop.f32.mrb[0].mxu0
        %v4173 = vadd.f32 0.0, %v4172
        %v4174 = vpop.f32.mrb[0].mxu0
        %v4175 = vpop.f32.mrb[0].mxu0
        %v4176 = vadd.f32 0.0, %v4175
        %v4177 = vpop.f32.mrb[0].mxu0
        %4178 = vmatprep.mubr.bf16.mxu0 0
        %4179 = vmatmul.mubr.bf16.gmra.mrb[0].mxu0 %v3945
        %v4180 = vpop.f32.mrb[0].mxu0
        %v4181 = vadd.f32 0.0, %v4180
        %v4182 = vpop.f32.mrb[0].mxu0
        %v4183 = vpop.f32.mrb[0].mxu0
        %v4184 = vadd.f32 0.0, %v4183
        %v4185 = vpop.f32.mrb[0].mxu0
        %4186 = vmatprep.mubr.bf16.mxu0 0
        %4187 = vmatmul.mubr.bf16.gmra.mrb[0].mxu0 %v3948
        %v4188 = vpop.f32.mrb[0].mxu0
        %v4189 = vadd.f32 0.0, %v4188
        %v4190 = vpop.f32.mrb[0].mxu0
        %v4191 = vpop.f32.mrb[0].mxu0
        %v4192 = vadd.f32 0.0, %v4191
        %v4193 = vpop.f32.mrb[0].mxu0
        %4194 = vmatprep.mubr.bf16.mxu0 0
        %4195 = vmatmul.mubr.bf16.gmra.mrb[0].mxu0 %v3951
        %v4196 = vpop.f32.mrb[0].mxu0
        %v4197 = vadd.f32 0.0, %v4196
        %v4198 = vpop.f32.mrb[0].mxu0
        %v4199 = vpop.f32.mrb[0].mxu0
        %v4200 = vadd.f32 0.0, %v4199
        %v4201 = vpop.f32.mrb[0].mxu0
        %4202 = vmatprep.mubr.bf16.mxu0 0
        %4203 = vmatmul.mubr.bf16.gmra.mrb[0].mxu0 %v3954
        %v4204 = vpop.f32.mrb[0].mxu0
        %v4205 = vadd.f32 0.0, %v4204
        %v4206 = vpop.f32.mrb[0].mxu0
        %v4207 = vpop.f32.mrb[0].mxu0
        %v4208 = vadd.f32 0.0, %v4207
        %v4209 = vpop.f32.mrb[0].mxu0
        %4210 = vmatprep.mubr.bf16.mxu0 0
        %4211 = vmatmul.mubr.bf16.gmra.mrb[0].mxu0 %v3957
        %v4212 = vpop.f32.mrb[0].mxu0
        %v4213 = vadd.f32 0.0, %v4212
        %v4214 = vpop.f32.mrb[0].mxu0
        %v4215 = vpop.f32.mrb[0].mxu0
        %v4216 = vadd.f32 0.0, %v4215
        %v4217 = vpop.f32.mrb[0].mxu0
        %4218 = vmatprep.mubr.bf16.mxu0 0
        %4219 = vmatmul.mubr.bf16.gmra.mrb[0].mxu0 %v3960
        %v4220 = vpop.f32.mrb[0].mxu0
        %v4221 = vadd.f32 0.0, %v4220
        %v4222 = vpop.f32.mrb[0].mxu0
        %v4223 = vpop.f32.mrb[0].mxu0
        %v4224 = vadd.f32 0.0, %v4223
        %v4225 = vpop.f32.mrb[0].mxu0
        %4226 = vmatprep.mubr.bf16.mxu0 0
        %4227 = vmatmul.mubr.bf16.gmra.mrb[0].mxu0 %v3963
        %v4228 = vpop.f32.mrb[0].mxu0
        %v4229 = vadd.f32 0.0, %v4228
        %v4230 = vpop.f32.mrb[0].mxu0
        %v4231 = vpop.f32.mrb[0].mxu0
        %v4232 = vadd.f32 0.0, %v4231
        %v4233 = vpop.f32.mrb[0].mxu0
        %4234 = vmatprep.mubr.bf16.mxu0 0
        %4235 = vmatmul.mubr.bf16.gmra.mrb[0].mxu0 %v3966
        %v4236 = vpop.f32.mrb[0].mxu0
        %v4237 = vadd.f32 0.0, %v4236
        %v4238 = vpop.f32.mrb[0].mxu0
        %v4239 = vpop.f32.mrb[0].mxu0
        %v4240 = vadd.f32 0.0, %v4239
        %v4241 = vpop.f32.mrb[0].mxu0
        %4242 = vmatprep.mubr.bf16.mxu0 0
        %4243 = vmatmul.mubr.bf16.gmra.mrb[0].mxu0 %v3969
        %v4244 = vpop.f32.mrb[0].mxu0
        %v4245 = vadd.f32 0.0, %v4244
        %v4246 = vpop.f32.mrb[0].mxu0
        %v4247 = vpop.f32.mrb[0].mxu0
        %v4248 = vadd.f32 0.0, %v4247
        %v4249 = vpop.f32.mrb[0].mxu0
        %4250 = vmatprep.mubr.bf16.mxu0 0
        %4251 = vmatmul.mubr.bf16.gmra.mrb[0].mxu0 %v3972
        %v4252 = vpop.f32.mrb[0].mxu0
        %v4253 = vadd.f32 0.0, %v4252
        %v4254 = vpop.f32.mrb[0].mxu0
        %v4255 = vpop.f32.mrb[0].mxu0
        %v4256 = vadd.f32 0.0, %v4255
        %v4257 = vpop.f32.mrb[0].mxu0
        %4258 = vmatprep.mubr.bf16.mxu0 0
        %4259 = vmatmul.mubr.bf16.gmra.mrb[0].mxu0 %v3975
        %v4260 = vpop.f32.mrb[0].mxu0
        %v4261 = vadd.f32 0.0, %v4260
        %v4262 = vpop.f32.mrb[0].mxu0
        %v4263 = vpop.f32.mrb[0].mxu0
        %v4264 = vadd.f32 0.0, %v4263
        %v4265 = vpop.f32.mrb[0].mxu0
        %4266 = vmatprep.mubr.bf16.mxu0 0
        %4267 = vmatmul.mubr.bf16.gmra.mrb[0].mxu0 %v3978
        %v4268 = vpop.f32.mrb[0].mxu0
        %v4269 = vadd.f32 0.0, %v4268
        %v4270 = vpop.f32.mrb[0].mxu0
        %v4271 = vpop.f32.mrb[0].mxu0
        %v4272 = vadd.f32 0.0, %v4271
        %v4273 = vpop.f32.mrb[0].mxu0
        %4274 = vmatprep.mubr.bf16.mxu0 0
        %4275 = vmatmul.mubr.bf16.gmra.mrb[0].mxu0 %v3981
        %v4276 = vpop.f32.mrb[0].mxu0
        %v4277 = vadd.f32 0.0, %v4276
        %v4278 = vpop.f32.mrb[0].mxu0
        %v4279 = vpop.f32.mrb[0].mxu0
        %v4280 = vadd.f32 0.0, %v4279
        %v4281 = vpop.f32.mrb[0].mxu0
        %4282 = vmatprep.mubr.bf16.mxu0 0
        %4283 = vmatmul.mubr.bf16.gmra.mrb[0].mxu0 %v3984
        %v4284 = vpop.f32.mrb[0].mxu0
        %v4285 = vadd.f32 0.0, %v4284
        %v4286 = vpop.f32.mrb[0].mxu0
        %v4287 = vpop.f32.mrb[0].mxu0
        %v4288 = vadd.f32 0.0, %v4287
        %v4289 = vpop.f32.mrb[0].mxu0
        %4290 = vmatprep.mubr.bf16.mxu0 0
        %4291 = vmatmul.mubr.bf16.gmra.mrb[0].mxu0 %v3987
        %v4292 = vpop.f32.mrb[0].mxu0
        %v4293 = vadd.f32 0.0, %v4292
        %v4294 = vpop.f32.mrb[0].mxu0
        %v4295 = vpop.f32.mrb[0].mxu0
        %v4296 = vadd.f32 0.0, %v4295
        %v4297 = vpop.f32.mrb[0].mxu0
        %4298 = vmatprep.mubr.bf16.mxu0 0
        %4299 = vmatmul.mubr.bf16.gmra.mrb[0].mxu0 %v3990
        %v4300 = vpop.f32.mrb[0].mxu0
        %v4301 = vadd.f32 0.0, %v4300
        %v4302 = vpop.f32.mrb[0].mxu0
        %v4303 = vpop.f32.mrb[0].mxu0
        %v4304 = vadd.f32 0.0, %v4303
        %v4305 = vpop.f32.mrb[0].mxu0
        %4306 = vmatprep.mubr.bf16.mxu0 0
        %4307 = vmatmul.mubr.bf16.gmra.mrb[0].mxu0 %v3993
        %v4308 = vpop.f32.mrb[0].mxu0
        %v4309 = vadd.f32 0.0, %v4308
        %v4310 = vpop.f32.mrb[0].mxu0
        %v4311 = vpop.f32.mrb[0].mxu0
        %v4312 = vadd.f32 0.0, %v4311
        %v4313 = vpop.f32.mrb[0].mxu0
        %4314 = vmatprep.mubr.bf16.mxu0 0
        %4315 = vmatmul.mubr.bf16.gmra.mrb[0].mxu0 %v3996
        %v4316 = vpop.f32.mrb[0].mxu0
        %v4317 = vadd.f32 0.0, %v4316
        %v4318 = vpop.f32.mrb[0].mxu0
        %v4319 = vpop.f32.mrb[0].mxu0
        %v4320 = vadd.f32 0.0, %v4319
        %v4321 = vpop.f32.mrb[0].mxu0
        %4322 = vmatprep.mubr.bf16.mxu0 0
        %4323 = vmatmul.mubr.bf16.gmra.mrb[0].mxu0 %v3999
        %v4324 = vpop.f32.mrb[0].mxu0
        %v4325 = vadd.f32 0.0, %v4324
        %v4326 = vpop.f32.mrb[0].mxu0
        %v4327 = vpop.f32.mrb[0].mxu0
        %v4328 = vadd.f32 0.0, %v4327
        %v4329 = vpop.f32.mrb[0].mxu0
        %4330 = vmatprep.mubr.bf16.mxu0 0
        %4331 = vmatmul.mubr.bf16.gmra.mrb[0].mxu0 %v4002
        %v4332 = vpop.f32.mrb[0].mxu0
        %v4333 = vadd.f32 0.0, %v4332
        %v4334 = vpop.f32.mrb[0].mxu0
        %v4335 = vpop.f32.mrb[0].mxu0
        %v4336 = vadd.f32 0.0, %v4335
        %v4337 = vpop.f32.mrb[0].mxu0
        %4338 = vmatprep.mubr.bf16.mxu0 0
        %4339 = vmatmul.mubr.bf16.gmra.mrb[0].mxu0 %v4005
        %v4340 = vpop.f32.mrb[0].mxu0
        %v4341 = vadd.f32 0.0, %v4340
        %v4342 = vpop.f32.mrb[0].mxu0
        %v4343 = vpop.f32.mrb[0].mxu0
        %v4344 = vadd.f32 0.0, %v4343
        %v4345 = vpop.f32.mrb[0].mxu0
        %4346 = vmatprep.mubr.bf16.mxu0 0
        %4347 = vmatmul.mubr.bf16.gmra.mrb[0].mxu0 %v4008
        %v4348 = vpop.f32.mrb[0].mxu0
        %v4349 = vadd.f32 0.0, %v4348
        %v4350 = vpop.f32.mrb[0].mxu0
        %v4351 = vpop.f32.mrb[0].mxu0
        %v4352 = vadd.f32 0.0, %v4351
        %v4353 = vpop.f32.mrb[0].mxu0
        %4354 = vmatprep.mubr.bf16.mxu0 0
        %4355 = vmatmul.mubr.bf16.gmra.mrb[0].mxu0 %v4011
        %v4356 = vpop.f32.mrb[0].mxu0
        %v4357 = vadd.f32 0.0, %v4356
        %v4358 = vpop.f32.mrb[0].mxu0
        %v4359 = vpop.f32.mrb[0].mxu0
        %v4360 = vadd.f32 0.0, %v4359
        %v4361 = vpop.f32.mrb[0].mxu0
        %4362 = vmatprep.mubr.bf16.mxu0 0
        %4363 = vmatmul.mubr.bf16.gmra.mrb[0].mxu0 %v4014
        %v4364 = vpop.f32.mrb[0].mxu0
        %v4365 = vadd.f32 0.0, %v4364
        %v4366 = vpop.f32.mrb[0].mxu0
        %v4367 = vpop.f32.mrb[0].mxu0
        %v4368 = vadd.f32 0.0, %v4367
        %v4369 = vpop.f32.mrb[0].mxu0
        %4370 = vmatprep.mubr.bf16.mxu0 0
        %4371 = vmatmul.mubr.bf16.gmra.mrb[0].mxu0 %v4017
        %v4372 = vpop.f32.mrb[0].mxu0
        %v4373 = vadd.f32 0.0, %v4372
        %v4374 = vpop.f32.mrb[0].mxu0
        %v4375 = vpop.f32.mrb[0].mxu0
        %v4376 = vadd.f32 0.0, %v4375
        %v4377 = vpop.f32.mrb[0].mxu0
        %4378 = vmatprep.mubr.bf16.mxu0 0
        %4379 = vmatmul.mubr.bf16.gmra.mrb[0].mxu0 %v4020
        %v4380 = vpop.f32.mrb[0].mxu0
        %v4381 = vadd.f32 0.0, %v4380
        %v4382 = vpop.f32.mrb[0].mxu0
        %v4383 = vpop.f32.mrb[0].mxu0
        %v4384 = vadd.f32 0.0, %v4383
        %v4385 = vpop.f32.mrb[0].mxu0
        %4386 = vmatprep.mubr.bf16.mxu0 0
        %4387 = vmatmul.mubr.bf16.gmra.mrb[0].mxu0 %v4023
        %v4388 = vpop.f32.mrb[0].mxu0
        %v4389 = vadd.f32 0.0, %v4388
        %v4390 = vpop.f32.mrb[0].mxu0
        %v4391 = vpop.f32.mrb[0].mxu0
        %v4392 = vadd.f32 0.0, %v4391
        %v4393 = vpop.f32.mrb[0].mxu0
        %4394 = vmatprep.mubr.bf16.mxu0 0
        %4395 = vmatmul.mubr.bf16.gmra.mrb[0].mxu0 %v4026
        %v4396 = vpop.f32.mrb[0].mxu0
        %v4397 = vadd.f32 0.0, %v4396
        %v4398 = vpop.f32.mrb[0].mxu0
        %v4399 = vpop.f32.mrb[0].mxu0
        %v4400 = vadd.f32 0.0, %v4399
        %v4401 = vpop.f32.mrb[0].mxu0
        %4402 = vmatprep.mubr.bf16.mxu0 0
        %4403 = vmatmul.mubr.bf16.gmra.mrb[0].mxu0 %v4029
        %v4404 = vpop.f32.mrb[0].mxu0
        %v4405 = vadd.f32 0.0, %v4404
        %v4406 = vpop.f32.mrb[0].mxu0
        %v4407 = vpop.f32.mrb[0].mxu0
        %v4408 = vadd.f32 0.0, %v4407
        %v4409 = vpop.f32.mrb[0].mxu0
        %4410 = vmatprep.mubr.bf16.mxu0 0
        %4411 = vmatmul.mubr.bf16.gmra.mrb[0].mxu0 %v4032
        %v4412 = vpop.f32.mrb[0].mxu0
        %v4413 = vadd.f32 0.0, %v4412
        %v4414 = vpop.f32.mrb[0].mxu0
        %v4415 = vpop.f32.mrb[0].mxu0
        %v4416 = vadd.f32 0.0, %v4415
        %v4417 = vpop.f32.mrb[0].mxu0
        %4418 = vmatprep.mubr.bf16.mxu0 0
        %4419 = vmatmul.mubr.bf16.gmra.mrb[0].mxu0 %v4035
        %v4420 = vpop.f32.mrb[0].mxu0
        %v4421 = vadd.f32 0.0, %v4420
        %v4422 = vpop.f32.mrb[0].mxu0
        %v4423 = vpop.f32.mrb[0].mxu0
        %v4424 = vadd.f32 0.0, %v4423
        %v4425 = vpop.f32.mrb[0].mxu0
        %4426 = vmatprep.mubr.bf16.mxu0 0
        %4427 = vmatmul.mubr.bf16.gmra.mrb[0].mxu0 %v4038
        %v4428 = vpop.f32.mrb[0].mxu0
        %v4429 = vadd.f32 0.0, %v4428
        %v4430 = vpop.f32.mrb[0].mxu0
        %v4431 = vpop.f32.mrb[0].mxu0
        %v4432 = vadd.f32 0.0, %v4431
        %v4433 = vpop.f32.mrb[0].mxu0
        %4434 = vmatprep.mubr.bf16.mxu0 0
        %4435 = vmatmul.mubr.bf16.gmra.mrb[0].mxu0 %v4041
        %v4436 = vpop.f32.mrb[0].mxu0
        %v4437 = vadd.f32 0.0, %v4436
        %v4438 = vpop.f32.mrb[0].mxu0
        %v4439 = vpop.f32.mrb[0].mxu0
        %v4440 = vadd.f32 0.0, %v4439
        %v4441 = vpop.f32.mrb[0].mxu0
        %4442 = vmatprep.mubr.bf16.mxu0 0
        %4443 = vmatmul.mubr.bf16.gmra.mrb[0].mxu0 %v4044
        %v4444 = vpop.f32.mrb[0].mxu0
        %v4445 = vadd.f32 0.0, %v4444
        %v4446 = vpop.f32.mrb[0].mxu0
        %v4447 = vpop.f32.mrb[0].mxu0
        %v4448 = vadd.f32 0.0, %v4447
        %v4449 = vpop.f32.mrb[0].mxu0
        %4450 = vmatprep.mubr.bf16.mxu0 0
        %4451 = vmatmul.mubr.bf16.gmra.mrb[0].mxu0 %v4047
        %v4452 = vpop.f32.mrb[0].mxu0
        %v4453 = vadd.f32 0.0, %v4452
        %v4454 = vpop.f32.mrb[0].mxu0
        %v4455 = vpop.f32.mrb[0].mxu0
        %v4456 = vadd.f32 0.0, %v4455
        %v4457 = vpop.f32.mrb[0].mxu0
        %4458 = vmatprep.mubr.bf16.mxu0 0
        %4459 = vmatmul.mubr.bf16.gmra.mrb[0].mxu0 %v4050
        %v4460 = vpop.f32.mrb[0].mxu0
        %v4461 = vadd.f32 0.0, %v4460
        %v4462 = vpop.f32.mrb[0].mxu0
        %v4463 = vpop.f32.mrb[0].mxu0
        %v4464 = vadd.f32 0.0, %v4463
        %v4465 = vpop.f32.mrb[0].mxu0
        %4466 = vmatprep.mubr.bf16.mxu0 0
        %4467 = vmatmul.mubr.bf16.gmra.mrb[0].mxu0 %v4053
        %v4468 = vpop.f32.mrb[0].mxu0
        %v4469 = vadd.f32 0.0, %v4468
        %v4470 = vpop.f32.mrb[0].mxu0
        %v4471 = vpop.f32.mrb[0].mxu0
        %v4472 = vadd.f32 0.0, %v4471
        %v4473 = vpop.f32.mrb[0].mxu0
        %4474 = vmatprep.mubr.bf16.mxu0 0
        %4475 = vmatmul.mubr.bf16.gmra.mrb[0].mxu0 %v4056
        %v4476 = vpop.f32.mrb[0].mxu0
        %v4477 = vadd.f32 0.0, %v4476
        %v4478 = vpop.f32.mrb[0].mxu0
        %v4479 = vpop.f32.mrb[0].mxu0
        %v4480 = vadd.f32 0.0, %v4479
        %v4481 = vpop.f32.mrb[0].mxu0
        %4482 = vmatprep.mubr.bf16.mxu0 0
        %4483 = vmatmul.mubr.bf16.gmra.mrb[0].mxu0 %v4059
        %v4484 = vpop.f32.mrb[0].mxu0
        %v4485 = vadd.f32 0.0, %v4484
        %v4486 = vpop.f32.mrb[0].mxu0
        %v4487 = vpop.f32.mrb[0].mxu0
        %v4488 = vadd.f32 0.0, %v4487
        %v4489 = vpop.f32.mrb[0].mxu0
        %4490 = vmatprep.mubr.bf16.mxu0 0
        %4491 = vmatmul.mubr.bf16.gmra.mrb[0].mxu0 %v4062
        %v4492 = vpop.f32.mrb[0].mxu0
        %v4493 = vadd.f32 0.0, %v4492
        %v4494 = vpop.f32.mrb[0].mxu0
        %v4495 = vpop.f32.mrb[0].mxu0
        %v4496 = vadd.f32 0.0, %v4495
        %v4497 = vpop.f32.mrb[0].mxu0
        %4498 = vmatprep.mubr.bf16.mxu0 0
        %4499 = vmatmul.mubr.bf16.gmra.mrb[0].mxu0 %v4065
        %v4500 = vpop.f32.mrb[0].mxu0
        %v4501 = vadd.f32 0.0, %v4500
        %v4502 = vpop.f32.mrb[0].mxu0
        %v4503 = vpop.f32.mrb[0].mxu0
        %v4504 = vadd.f32 0.0, %v4503
        %v4505 = vpop.f32.mrb[0].mxu0
        %4506 = vmatprep.mubr.bf16.mxu0 0
        %4507 = vmatmul.mubr.bf16.gmra.mrb[0].mxu0 %v4068
        %v4508 = vpop.f32.mrb[0].mxu0
        %v4509 = vadd.f32 0.0, %v4508
        %v4510 = vpop.f32.mrb[0].mxu0
        %v4511 = vpop.f32.mrb[0].mxu0
        %v4512 = vadd.f32 0.0, %v4511
        %v4513 = vpop.f32.mrb[0].mxu0
        %4514 = vmatprep.mubr.bf16.mxu0 0
        %4515 = vmatmul.mubr.bf16.gmra.mrb[0].mxu0 %v4071
        %v4516 = vpop.f32.mrb[0].mxu0
        %v4517 = vadd.f32 0.0, %v4516
        %v4518 = vpop.f32.mrb[0].mxu0
        %v4519 = vpop.f32.mrb[0].mxu0
        %v4520 = vadd.f32 0.0, %v4519
        %v4521 = vpop.f32.mrb[0].mxu0
        %4522 = vmatprep.mubr.bf16.mxu0 0
        %4523 = vmatmul.mubr.bf16.gmra.mrb[0].mxu0 %v4074
        %v4524 = vpop.f32.mrb[0].mxu0
        %v4525 = vadd.f32 0.0, %v4524
        %v4526 = vpop.f32.mrb[0].mxu0
        %v4527 = vpop.f32.mrb[0].mxu0
        %v4528 = vadd.f32 0.0, %v4527
        %v4529 = vpop.f32.mrb[0].mxu0
        %4530 = vmatprep.mubr.bf16.mxu0 0
        %4531 = vmatmul.mubr.bf16.gmra.mrb[0].mxu0 %v4077
        %v4532 = vpop.f32.mrb[0].mxu0
        %v4533 = vadd.f32 0.0, %v4532
        %v4534 = vpop.f32.mrb[0].mxu0
        %v4535 = vpop.f32.mrb[0].mxu0
        %v4536 = vadd.f32 0.0, %v4535
        %v4537 = vpop.f32.mrb[0].mxu0
        %4538 = vmatprep.mubr.bf16.mxu0 0
        %4539 = vmatmul.mubr.bf16.gmra.mrb[0].mxu0 %v4080
        %v4540 = vpop.f32.mrb[0].mxu0
        %v4541 = vadd.f32 0.0, %v4540
        %v4542 = vpop.f32.mrb[0].mxu0
        %v4543 = vpop.f32.mrb[0].mxu0
        %v4544 = vadd.f32 0.0, %v4543
        %v4545 = vpop.f32.mrb[0].mxu0
        %4546 = vmatprep.mubr.bf16.mxu0 0
        %4547 = vmatmul.mubr.bf16.gmra.mrb[0].mxu0 %v4083
        %v4548 = vpop.f32.mrb[0].mxu0
        %v4549 = vadd.f32 0.0, %v4548
        %v4550 = vpop.f32.mrb[0].mxu0
        %v4551 = vpop.f32.mrb[0].mxu0
        %v4552 = vadd.f32 0.0, %v4551
        %v4553 = vpop.f32.mrb[0].mxu0
        %4554 = vmatprep.mubr.bf16.mxu0 0
        %4555 = vmatmul.mubr.bf16.gmra.mrb[0].mxu0 %v4086
        %v4556 = vpop.f32.mrb[0].mxu0
        %v4557 = vadd.f32 0.0, %v4556
        %v4558 = vpop.f32.mrb[0].mxu0
        %v4559 = vpop.f32.mrb[0].mxu0
        %v4560 = vadd.f32 0.0, %v4559
        %v4561 = vpop.f32.mrb[0].mxu0
        %4562 = vmatprep.mubr.bf16.mxu0 0
        %4563 = vmatmul.mubr.bf16.gmra.mrb[0].mxu0 %v4089
        %v4564 = vpop.f32.mrb[0].mxu0
        %v4565 = vadd.f32 0.0, %v4564
        %v4566 = vpop.f32.mrb[0].mxu0
        %v4567 = vpop.f32.mrb[0].mxu0
        %v4568 = vadd.f32 0.0, %v4567
        %v4569 = vpop.f32.mrb[0].mxu0
        %4570 = vmatprep.mubr.bf16.mxu0 0
        %4571 = vmatmul.mubr.bf16.gmra.mrb[0].mxu0 %v4092
        %v4572 = vpop.f32.mrb[0].mxu0
        %v4573 = vadd.f32 0.0, %v4572
        %v4574 = vpop.f32.mrb[0].mxu0
        %v4575 = vpop.f32.mrb[0].mxu0
        %v4576 = vadd.f32 0.0, %v4575
        %v4577 = vpop.f32.mrb[0].mxu0
        %4578 = vmatprep.mubr.bf16.mxu0 0
        %4579 = vmatmul.mubr.bf16.gmra.mrb[0].mxu0 %v4095
        %v4580 = vpop.f32.mrb[0].mxu0
        %v4581 = vadd.f32 0.0, %v4580
        %v4582 = vpop.f32.mrb[0].mxu0
        %v4583 = vpop.f32.mrb[0].mxu0
        %v4584 = vadd.f32 0.0, %v4583
        %v4585 = vpop.f32.mrb[0].mxu0
        %4586 = vmatprep.mubr.bf16.mxu0 0
        %4587 = vmatmul.mubr.bf16.gmra.mrb[0].mxu0 %v4098
        %v4588 = vpop.f32.mrb[0].mxu0
        %v4589 = vadd.f32 0.0, %v4588
        %v4590 = vpop.f32.mrb[0].mxu0
        %v4591 = vpop.f32.mrb[0].mxu0
        %v4592 = vadd.f32 0.0, %v4591
        %v4593 = vpop.f32.mrb[0].mxu0
        %4594 = vmatprep.mubr.bf16.mxu0 0
        %4595 = vmatmul.mubr.bf16.gmra.mrb[0].mxu0 %v4101
        %v4596 = vpop.f32.mrb[0].mxu0
        %v4597 = vadd.f32 0.0, %v4596
        %v4598 = vpop.f32.mrb[0].mxu0
        %v4599 = vpop.f32.mrb[0].mxu0
        %v4600 = vadd.f32 0.0, %v4599
        %v4601 = vpop.f32.mrb[0].mxu0
        %4602 = vmatprep.mubr.bf16.mxu0 0
        %4603 = vmatmul.mubr.bf16.gmra.mrb[0].mxu0 %v4104
        %v4604 = vpop.f32.mrb[0].mxu0
        %v4605 = vadd.f32 0.0, %v4604
        %v4606 = vpop.f32.mrb[0].mxu0
        %v4607 = vpop.f32.mrb[0].mxu0
        %v4608 = vadd.f32 0.0, %v4607
        %v4609 = vpop.f32.mrb[0].mxu0
        %4610 = vmatprep.mubr.bf16.mxu0 0
        %4611 = vmatmul.mubr.bf16.gmra.mrb[0].mxu0 %v4107
        %v4612 = vpop.f32.mrb[0].mxu0
        %v4613 = vadd.f32 0.0, %v4612
        %v4614 = vpop.f32.mrb[0].mxu0
        %v4615 = vpop.f32.mrb[0].mxu0
        %v4616 = vadd.f32 0.0, %v4615
        %v4617 = vpop.f32.mrb[0].mxu0
        %4618 = vmatprep.mubr.bf16.mxu0 0
        %4619 = vmatmul.mubr.bf16.gmra.mrb[0].mxu0 %v4110
        %v4620 = vpop.f32.mrb[0].mxu0
        %v4621 = vadd.f32 0.0, %v4620
        %v4622 = vpop.f32.mrb[0].mxu0
        %v4623 = vpop.f32.mrb[0].mxu0
        %v4624 = vadd.f32 0.0, %v4623
        %v4625 = vpop.f32.mrb[0].mxu0
        %4626 = vmatprep.mubr.bf16.mxu0 0
        %4627 = vmatmul.mubr.bf16.gmra.mrb[0].mxu0 %v4113
        %v4628 = vpop.f32.mrb[0].mxu0
        %v4629 = vadd.f32 0.0, %v4628
        %v4630 = vpop.f32.mrb[0].mxu0
        %v4631 = vpop.f32.mrb[0].mxu0
        %v4632 = vadd.f32 0.0, %v4631
        %v4633 = vpop.f32.mrb[0].mxu0
        %4634 = vmatprep.mubr.bf16.mxu0 0
        %4635 = vmatmul.mubr.bf16.gmra.mrb[0].mxu0 %v4116
        %v4636 = vpop.f32.mrb[0].mxu0
        %v4637 = vadd.f32 0.0, %v4636
        %v4638 = vpop.f32.mrb[0].mxu0
        %v4639 = vpop.f32.mrb[0].mxu0
        %v4640 = vadd.f32 0.0, %v4639
        %v4641 = vpop.f32.mrb[0].mxu0
        %4642 = vmatprep.mubr.bf16.mxu0 0
        %4643 = vmatmul.mubr.bf16.gmra.mrb[0].mxu0 %v4119
        %v4644 = vpop.f32.mrb[0].mxu0
        %v4645 = vadd.f32 0.0, %v4644
        %v4646 = vpop.f32.mrb[0].mxu0
        %v4647 = vpop.f32.mrb[0].mxu0
        %v4648 = vadd.f32 0.0, %v4647
        %v4649 = vpop.f32.mrb[0].mxu0
        %4650 = vmatprep.mubr.bf16.mxu0 0
        %4651 = vmatmul.mubr.bf16.gmra.mrb[0].mxu0 %v4122
        %v4652 = vpop.f32.mrb[0].mxu0
        %v4653 = vadd.f32 0.0, %v4652
        %v4654 = vpop.f32.mrb[0].mxu0
        %v4655 = vpop.f32.mrb[0].mxu0
        %v4656 = vadd.f32 0.0, %v4655
        %v4657 = vpop.f32.mrb[0].mxu0
        %4658 = vmatprep.mubr.bf16.mxu0 0
        %4659 = vmatmul.mubr.bf16.gmra.mrb[0].mxu0 %v4125
        %v4660 = vpop.f32.mrb[0].mxu0
        %v4661 = vadd.f32 0.0, %v4660
        %v4662 = vpop.f32.mrb[0].mxu0
        %v4663 = vpop.f32.mrb[0].mxu0
        %v4664 = vadd.f32 0.0, %v4663
        %v4665 = vpop.f32.mrb[0].mxu0
        %4666 = vmatprep.mubr.bf16.mxu0 0
        %4667 = vmatmul.mubr.bf16.gmra.mrb[0].mxu0 %v4128
        %v4668 = vpop.f32.mrb[0].mxu0
        %v4669 = vadd.f32 0.0, %v4668
        %v4670 = vpop.f32.mrb[0].mxu0
        %v4671 = vpop.f32.mrb[0].mxu0
        %v4672 = vadd.f32 0.0, %v4671
        %v4673 = vpop.f32.mrb[0].mxu0
        %4674 = vdwg.mxu0
        %v4675 = vpack.c.bf16 %v4168, %v4165
        %v4676 = vpack.c.bf16 %v4176, %v4173
        %v4677 = vpack.c.bf16 %v4184, %v4181
        %v4678 = vpack.c.bf16 %v4192, %v4189
        %v4679 = vpack.c.bf16 %v4200, %v4197
        %v4680 = vpack.c.bf16 %v4208, %v4205
        %v4681 = vpack.c.bf16 %v4216, %v4213
        %v4682 = vpack.c.bf16 %v4224, %v4221
        %v4683 = vpack.c.bf16 %v4232, %v4229
        %v4684 = vpack.c.bf16 %v4240, %v4237
        %v4685 = vpack.c.bf16 %v4248, %v4245
        %v4686 = vpack.c.bf16 %v4256, %v4253
        %v4687 = vpack.c.bf16 %v4264, %v4261
        %v4688 = vpack.c.bf16 %v4272, %v4269
        %v4689 = vpack.c.bf16 %v4280, %v4277
        %v4690 = vpack.c.bf16 %v4288, %v4285
        %v4691 = vpack.c.bf16 %v4296, %v4293
        %v4692 = vpack.c.bf16 %v4304, %v4301
        %v4693 = vpack.c.bf16 %v4312, %v4309
        %v4694 = vpack.c.bf16 %v4320, %v4317
        %v4695 = vpack.c.bf16 %v4328, %v4325
        %v4696 = vpack.c.bf16 %v4336, %v4333
        %v4697 = vpack.c.bf16 %v4344, %v4341
        %v4698 = vpack.c.bf16 %v4352, %v4349
        %v4699 = vpack.c.bf16 %v4360, %v4357
        %v4700 = vpack.c.bf16 %v4368, %v4365
        %v4701 = vpack.c.bf16 %v4376, %v4373
        %v4702 = vpack.c.bf16 %v4384, %v4381
        %v4703 = vpack.c.bf16 %v4392, %v4389
        %v4704 = vpack.c.bf16 %v4400, %v4397
        %v4705 = vpack.c.bf16 %v4408, %v4405
        %v4706 = vpack.c.bf16 %v4416, %v4413
        %v4707 = vpack.c.bf16 %v4424, %v4421
        %v4708 = vpack.c.bf16 %v4432, %v4429
        %v4709 = vpack.c.bf16 %v4440, %v4437
        %v4710 = vpack.c.bf16 %v4448, %v4445
        %v4711 = vpack.c.bf16 %v4456, %v4453
        %v4712 = vpack.c.bf16 %v4464, %v4461
        %v4713 = vpack.c.bf16 %v4472, %v4469
        %v4714 = vpack.c.bf16 %v4480, %v4477
        %v4715 = vpack.c.bf16 %v4488, %v4485
        %v4716 = vpack.c.bf16 %v4496, %v4493
        %v4717 = vpack.c.bf16 %v4504, %v4501
        %v4718 = vpack.c.bf16 %v4512, %v4509
        %v4719 = vpack.c.bf16 %v4520, %v4517
        %v4720 = vpack.c.bf16 %v4528, %v4525
        %v4721 = vpack.c.bf16 %v4536, %v4533
        %v4722 = vpack.c.bf16 %v4544, %v4541
        %v4723 = vpack.c.bf16 %v4552, %v4549
        %v4724 = vpack.c.bf16 %v4560, %v4557
        %v4725 = vpack.c.bf16 %v4568, %v4565
        %v4726 = vpack.c.bf16 %v4576, %v4573
        %v4727 = vpack.c.bf16 %v4584, %v4581
        %v4728 = vpack.c.bf16 %v4592, %v4589
        %v4729 = vpack.c.bf16 %v4600, %v4597
        %v4730 = vpack.c.bf16 %v4608, %v4605
        %v4731 = vpack.c.bf16 %v4616, %v4613
        %v4732 = vpack.c.bf16 %v4624, %v4621
        %v4733 = vpack.c.bf16 %v4632, %v4629
        %v4734 = vpack.c.bf16 %v4640, %v4637
        %v4735 = vpack.c.bf16 %v4648, %v4645
        %v4736 = vpack.c.bf16 %v4656, %v4653
        %v4737 = vpack.c.bf16 %v4664, %v4661
        %v4738 = vpack.c.bf16 %v4672, %v4669
        %v4803 = vunpack.c.l.b16 %v4675
        %v4804 = vunpack.c.h.b16 %v4675
        %v4805 = vunpack.c.l.b16 %v4676
        %v4806 = vunpack.c.h.b16 %v4676
        %v4807 = vunpack.c.l.b16 %v4677
        %v4808 = vunpack.c.h.b16 %v4677
        %v4809 = vunpack.c.l.b16 %v4678
        %v4810 = vunpack.c.h.b16 %v4678
        %v4811 = vunpack.c.l.b16 %v4679
        %v4812 = vunpack.c.h.b16 %v4679
        %v4813 = vunpack.c.l.b16 %v4680
        %v4814 = vunpack.c.h.b16 %v4680
        %v4815 = vunpack.c.l.b16 %v4681
        %v4816 = vunpack.c.h.b16 %v4681
        %v4817 = vunpack.c.l.b16 %v4682
        %v4818 = vunpack.c.h.b16 %v4682
        %v4819 = vunpack.c.l.b16 %v4683
        %v4820 = vunpack.c.h.b16 %v4683
        %v4821 = vunpack.c.l.b16 %v4684
        %v4822 = vunpack.c.h.b16 %v4684
        %v4823 = vunpack.c.l.b16 %v4685
        %v4824 = vunpack.c.h.b16 %v4685
        %v4825 = vunpack.c.l.b16 %v4686
        %v4826 = vunpack.c.h.b16 %v4686
        %v4827 = vunpack.c.l.b16 %v4687
        %v4828 = vunpack.c.h.b16 %v4687
        %v4829 = vunpack.c.l.b16 %v4688
        %v4830 = vunpack.c.h.b16 %v4688
        %v4831 = vunpack.c.l.b16 %v4689
        %v4832 = vunpack.c.h.b16 %v4689
        %v4833 = vunpack.c.l.b16 %v4690
        %v4834 = vunpack.c.h.b16 %v4690
        %v4835 = vunpack.c.l.b16 %v4691
        %v4836 = vunpack.c.h.b16 %v4691
        %v4837 = vunpack.c.l.b16 %v4692
        %v4838 = vunpack.c.h.b16 %v4692
        %v4839 = vunpack.c.l.b16 %v4693
        %v4840 = vunpack.c.h.b16 %v4693
        %v4841 = vunpack.c.l.b16 %v4694
        %v4842 = vunpack.c.h.b16 %v4694
        %v4843 = vunpack.c.l.b16 %v4695
        %v4844 = vunpack.c.h.b16 %v4695
        %v4845 = vunpack.c.l.b16 %v4696
        %v4846 = vunpack.c.h.b16 %v4696
        %v4847 = vunpack.c.l.b16 %v4697
        %v4848 = vunpack.c.h.b16 %v4697
        %v4849 = vunpack.c.l.b16 %v4698
        %v4850 = vunpack.c.h.b16 %v4698
        %v4851 = vunpack.c.l.b16 %v4699
        %v4852 = vunpack.c.h.b16 %v4699
        %v4853 = vunpack.c.l.b16 %v4700
        %v4854 = vunpack.c.h.b16 %v4700
        %v4855 = vunpack.c.l.b16 %v4701
        %v4856 = vunpack.c.h.b16 %v4701
        %v4857 = vunpack.c.l.b16 %v4702
        %v4858 = vunpack.c.h.b16 %v4702
        %v4859 = vunpack.c.l.b16 %v4703
        %v4860 = vunpack.c.h.b16 %v4703
        %v4861 = vunpack.c.l.b16 %v4704
        %v4862 = vunpack.c.h.b16 %v4704
        %v4863 = vunpack.c.l.b16 %v4705
        %v4864 = vunpack.c.h.b16 %v4705
        %v4865 = vunpack.c.l.b16 %v4706
        %v4866 = vunpack.c.h.b16 %v4706
        %v4867 = vunpack.c.l.b16 %v4707
        %v4868 = vunpack.c.h.b16 %v4707
        %v4869 = vunpack.c.l.b16 %v4708
        %v4870 = vunpack.c.h.b16 %v4708
        %v4871 = vunpack.c.l.b16 %v4709
        %v4872 = vunpack.c.h.b16 %v4709
        %v4873 = vunpack.c.l.b16 %v4710
        %v4874 = vunpack.c.h.b16 %v4710
        %v4875 = vunpack.c.l.b16 %v4711
        %v4876 = vunpack.c.h.b16 %v4711
        %v4877 = vunpack.c.l.b16 %v4712
        %v4878 = vunpack.c.h.b16 %v4712
        %v4879 = vunpack.c.l.b16 %v4713
        %v4880 = vunpack.c.h.b16 %v4713
        %v4881 = vunpack.c.l.b16 %v4714
        %v4882 = vunpack.c.h.b16 %v4714
        %v4883 = vunpack.c.l.b16 %v4715
        %v4884 = vunpack.c.h.b16 %v4715
        %v4885 = vunpack.c.l.b16 %v4716
        %v4886 = vunpack.c.h.b16 %v4716
        %v4887 = vunpack.c.l.b16 %v4717
        %v4888 = vunpack.c.h.b16 %v4717
        %v4889 = vunpack.c.l.b16 %v4718
        %v4890 = vunpack.c.h.b16 %v4718
        %v4891 = vunpack.c.l.b16 %v4719
        %v4892 = vunpack.c.h.b16 %v4719
        %v4893 = vunpack.c.l.b16 %v4720
        %v4894 = vunpack.c.h.b16 %v4720
        %v4895 = vunpack.c.l.b16 %v4721
        %v4896 = vunpack.c.h.b16 %v4721
        %v4897 = vunpack.c.l.b16 %v4722
        %v4898 = vunpack.c.h.b16 %v4722
        %v4899 = vunpack.c.l.b16 %v4723
        %v4900 = vunpack.c.h.b16 %v4723
        %v4901 = vunpack.c.l.b16 %v4724
        %v4902 = vunpack.c.h.b16 %v4724
        %v4903 = vunpack.c.l.b16 %v4725
        %v4904 = vunpack.c.h.b16 %v4725
        %v4905 = vunpack.c.l.b16 %v4726
        %v4906 = vunpack.c.h.b16 %v4726
        %v4907 = vunpack.c.l.b16 %v4727
        %v4908 = vunpack.c.h.b16 %v4727
        %v4909 = vunpack.c.l.b16 %v4728
        %v4910 = vunpack.c.h.b16 %v4728
        %v4911 = vunpack.c.l.b16 %v4729
        %v4912 = vunpack.c.h.b16 %v4729
        %v4913 = vunpack.c.l.b16 %v4730
        %v4914 = vunpack.c.h.b16 %v4730
        %v4915 = vunpack.c.l.b16 %v4731
        %v4916 = vunpack.c.h.b16 %v4731
        %v4917 = vunpack.c.l.b16 %v4732
        %v4918 = vunpack.c.h.b16 %v4732
        %v4919 = vunpack.c.l.b16 %v4733
        %v4920 = vunpack.c.h.b16 %v4733
        %v4921 = vunpack.c.l.b16 %v4734
        %v4922 = vunpack.c.h.b16 %v4734
        %v4923 = vunpack.c.l.b16 %v4735
        %v4924 = vunpack.c.h.b16 %v4735
        %v4925 = vunpack.c.l.b16 %v4736
        %v4926 = vunpack.c.h.b16 %v4736
        %v4927 = vunpack.c.l.b16 %v4737
        %v4928 = vunpack.c.h.b16 %v4737
        %v4929 = vunpack.c.l.b16 %v4738
        %v4930 = vunpack.c.h.b16 %v4738
        %v4931 = vpack.c.b16 %v4803, %v4803
        %v4932 = vpack.c.b16 %v4804, %v4804
        %v4933 = vpack.c.b16 %v4805, %v4805
        %v4934 = vpack.c.b16 %v4806, %v4806
        %v4935 = vpack.c.b16 %v4807, %v4807
        %v4936 = vpack.c.b16 %v4808, %v4808
        %v4937 = vpack.c.b16 %v4809, %v4809
        %v4938 = vpack.c.b16 %v4810, %v4810
        %v4939 = vpack.c.b16 %v4811, %v4811
        %v4940 = vpack.c.b16 %v4812, %v4812
        %v4941 = vpack.c.b16 %v4813, %v4813
        %v4942 = vpack.c.b16 %v4814, %v4814
        %v4943 = vpack.c.b16 %v4815, %v4815
        %v4944 = vpack.c.b16 %v4816, %v4816
        %v4945 = vpack.c.b16 %v4817, %v4817
        %v4946 = vpack.c.b16 %v4818, %v4818
        %v4947 = vpack.c.b16 %v4819, %v4819
        %v4948 = vpack.c.b16 %v4820, %v4820
        %v4949 = vpack.c.b16 %v4821, %v4821
        %v4950 = vpack.c.b16 %v4822, %v4822
        %v4951 = vpack.c.b16 %v4823, %v4823
        %v4952 = vpack.c.b16 %v4824, %v4824
        %v4953 = vpack.c.b16 %v4825, %v4825
        %v4954 = vpack.c.b16 %v4826, %v4826
        %v4955 = vpack.c.b16 %v4827, %v4827
        %v4956 = vpack.c.b16 %v4828, %v4828
        %v4957 = vpack.c.b16 %v4829, %v4829
        %v4958 = vpack.c.b16 %v4830, %v4830
        %v4959 = vpack.c.b16 %v4831, %v4831
        %v4960 = vpack.c.b16 %v4832, %v4832
        %v4961 = vpack.c.b16 %v4833, %v4833
        %v4962 = vpack.c.b16 %v4834, %v4834
        %v4963 = vpack.c.b16 %v4835, %v4835
        %v4964 = vpack.c.b16 %v4836, %v4836
        %v4965 = vpack.c.b16 %v4837, %v4837
        %v4966 = vpack.c.b16 %v4838, %v4838
        %v4967 = vpack.c.b16 %v4839, %v4839
        %v4968 = vpack.c.b16 %v4840, %v4840
        %v4969 = vpack.c.b16 %v4841, %v4841
        %v4970 = vpack.c.b16 %v4842, %v4842
        %v4971 = vpack.c.b16 %v4843, %v4843
        %v4972 = vpack.c.b16 %v4844, %v4844
        %v4973 = vpack.c.b16 %v4845, %v4845
        %v4974 = vpack.c.b16 %v4846, %v4846
        %v4975 = vpack.c.b16 %v4847, %v4847
        %v4976 = vpack.c.b16 %v4848, %v4848
        %v4977 = vpack.c.b16 %v4849, %v4849
        %v4978 = vpack.c.b16 %v4850, %v4850
        %v4979 = vpack.c.b16 %v4851, %v4851
        %v4980 = vpack.c.b16 %v4852, %v4852
        %v4981 = vpack.c.b16 %v4853, %v4853
        %v4982 = vpack.c.b16 %v4854, %v4854
        %v4983 = vpack.c.b16 %v4855, %v4855
        %v4984 = vpack.c.b16 %v4856, %v4856
        %v4985 = vpack.c.b16 %v4857, %v4857
        %v4986 = vpack.c.b16 %v4858, %v4858
        %v4987 = vpack.c.b16 %v4859, %v4859
        %v4988 = vpack.c.b16 %v4860, %v4860
        %v4989 = vpack.c.b16 %v4861, %v4861
        %v4990 = vpack.c.b16 %v4862, %v4862
        %v4991 = vpack.c.b16 %v4863, %v4863
        %v4992 = vpack.c.b16 %v4864, %v4864
        %v4993 = vpack.c.b16 %v4865, %v4865
        %v4994 = vpack.c.b16 %v4866, %v4866
        %v4995 = vpack.c.b16 %v4867, %v4867
        %v4996 = vpack.c.b16 %v4868, %v4868
        %v4997 = vpack.c.b16 %v4869, %v4869
        %v4998 = vpack.c.b16 %v4870, %v4870
        %v4999 = vpack.c.b16 %v4871, %v4871
        %v5000 = vpack.c.b16 %v4872, %v4872
        %v5001 = vpack.c.b16 %v4873, %v4873
        %v5002 = vpack.c.b16 %v4874, %v4874
        %v5003 = vpack.c.b16 %v4875, %v4875
        %v5004 = vpack.c.b16 %v4876, %v4876
        %v5005 = vpack.c.b16 %v4877, %v4877
        %v5006 = vpack.c.b16 %v4878, %v4878
        %v5007 = vpack.c.b16 %v4879, %v4879
        %v5008 = vpack.c.b16 %v4880, %v4880
        %v5009 = vpack.c.b16 %v4881, %v4881
        %v5010 = vpack.c.b16 %v4882, %v4882
        %v5011 = vpack.c.b16 %v4883, %v4883
        %v5012 = vpack.c.b16 %v4884, %v4884
        %v5013 = vpack.c.b16 %v4885, %v4885
        %v5014 = vpack.c.b16 %v4886, %v4886
        %v5015 = vpack.c.b16 %v4887, %v4887
        %v5016 = vpack.c.b16 %v4888, %v4888
        %v5017 = vpack.c.b16 %v4889, %v4889
        %v5018 = vpack.c.b16 %v4890, %v4890
        %v5019 = vpack.c.b16 %v4891, %v4891
        %v5020 = vpack.c.b16 %v4892, %v4892
        %v5021 = vpack.c.b16 %v4893, %v4893
        %v5022 = vpack.c.b16 %v4894, %v4894
        %v5023 = vpack.c.b16 %v4895, %v4895
        %v5024 = vpack.c.b16 %v4896, %v4896
        %v5025 = vpack.c.b16 %v4897, %v4897
        %v5026 = vpack.c.b16 %v4898, %v4898
        %v5027 = vpack.c.b16 %v4899, %v4899
        %v5028 = vpack.c.b16 %v4900, %v4900
        %v5029 = vpack.c.b16 %v4901, %v4901
        %v5030 = vpack.c.b16 %v4902, %v4902
        %v5031 = vpack.c.b16 %v4903, %v4903
        %v5032 = vpack.c.b16 %v4904, %v4904
        %v5033 = vpack.c.b16 %v4905, %v4905
        %v5034 = vpack.c.b16 %v4906, %v4906
        %v5035 = vpack.c.b16 %v4907, %v4907
        %v5036 = vpack.c.b16 %v4908, %v4908
        %v5037 = vpack.c.b16 %v4909, %v4909
        %v5038 = vpack.c.b16 %v4910, %v4910
        %v5039 = vpack.c.b16 %v4911, %v4911
        %v5040 = vpack.c.b16 %v4912, %v4912
        %v5041 = vpack.c.b16 %v4913, %v4913
        %v5042 = vpack.c.b16 %v4914, %v4914
        %v5043 = vpack.c.b16 %v4915, %v4915
        %v5044 = vpack.c.b16 %v4916, %v4916
        %v5045 = vpack.c.b16 %v4917, %v4917
        %v5046 = vpack.c.b16 %v4918, %v4918
        %v5047 = vpack.c.b16 %v4919, %v4919
        %v5048 = vpack.c.b16 %v4920, %v4920
        %v5049 = vpack.c.b16 %v4921, %v4921
        %v5050 = vpack.c.b16 %v4922, %v4922
        %v5051 = vpack.c.b16 %v4923, %v4923
        %v5052 = vpack.c.b16 %v4924, %v4924
        %v5053 = vpack.c.b16 %v4925, %v4925
        %v5054 = vpack.c.b16 %v4926, %v4926
        %v5055 = vpack.c.b16 %v4927, %v4927
        %v5056 = vpack.c.b16 %v4928, %v4928
        %v5057 = vpack.c.b16 %v4929, %v4929
        %v5058 = vpack.c.b16 %v4930, %v4930
        %5187 = vst [vmem:[%s198] sm:$0xf] %v4931
        %5188 = vst [vmem:[%s198 + $0x4] sm:$0xf] %v4932
        %5189 = vst [vmem:[%s198 + $0x8] sm:$0xf] %v4933
        %5190 = vst [vmem:[%s198 + $0xc] sm:$0xf] %v4934
        %5191 = vst [vmem:[%s198 + $0x10] sm:$0xf] %v4935
        %5192 = vst [vmem:[%s198 + $0x14] sm:$0xf] %v4936
        %5193 = vst [vmem:[%s198 + $0x18] sm:$0xf] %v4937
        %5194 = vst [vmem:[%s198 + $0x1c] sm:$0xf] %v4938
        %5195 = vst [vmem:[%s198 + $0x20] sm:$0xf] %v4939
        %5196 = vst [vmem:[%s198 + $0x24] sm:$0xf] %v4940
        %5197 = vst [vmem:[%s198 + $0x28] sm:$0xf] %v4941
        %5198 = vst [vmem:[%s198 + $0x2c] sm:$0xf] %v4942
        %5199 = vst [vmem:[%s198 + $0x30] sm:$0xf] %v4943
        %5200 = vst [vmem:[%s198 + $0x34] sm:$0xf] %v4944
        %5201 = vst [vmem:[%s198 + $0x38] sm:$0xf] %v4945
        %5202 = vst [vmem:[%s198 + $0x3c] sm:$0xf] %v4946
        %5203 = vst [vmem:[%s198 + $0x40] sm:$0xf] %v4947
        %5204 = vst [vmem:[%s198 + $0x44] sm:$0xf] %v4948
        %5205 = vst [vmem:[%s198 + $0x48] sm:$0xf] %v4949
        %5206 = vst [vmem:[%s198 + $0x4c] sm:$0xf] %v4950
        %5207 = vst [vmem:[%s198 + $0x50] sm:$0xf] %v4951
        %5208 = vst [vmem:[%s198 + $0x54] sm:$0xf] %v4952
        %5209 = vst [vmem:[%s198 + $0x58] sm:$0xf] %v4953
        %5210 = vst [vmem:[%s198 + $0x5c] sm:$0xf] %v4954
        %5211 = vst [vmem:[%s198 + $0x60] sm:$0xf] %v4955
        %5212 = vst [vmem:[%s198 + $0x64] sm:$0xf] %v4956
        %5213 = vst [vmem:[%s198 + $0x68] sm:$0xf] %v4957
        %5214 = vst [vmem:[%s198 + $0x6c] sm:$0xf] %v4958
        %5215 = vst [vmem:[%s198 + $0x70] sm:$0xf] %v4959
        %5216 = vst [vmem:[%s198 + $0x74] sm:$0xf] %v4960
        %5217 = vst [vmem:[%s198 + $0x78] sm:$0xf] %v4961
        %5218 = vst [vmem:[%s198 + $0x7c] sm:$0xf] %v4962
        %5219 = vst [vmem:[%s198 + $0x80] sm:$0xf] %v4963
        %5220 = vst [vmem:[%s198 + $0x84] sm:$0xf] %v4964
        %5221 = vst [vmem:[%s198 + $0x88] sm:$0xf] %v4965
        %5222 = vst [vmem:[%s198 + $0x8c] sm:$0xf] %v4966
        %5223 = vst [vmem:[%s198 + $0x90] sm:$0xf] %v4967
        %5224 = vst [vmem:[%s198 + $0x94] sm:$0xf] %v4968
        %5225 = vst [vmem:[%s198 + $0x98] sm:$0xf] %v4969
        %5226 = vst [vmem:[%s198 + $0x9c] sm:$0xf] %v4970
        %5227 = vst [vmem:[%s198 + $0xa0] sm:$0xf] %v4971
        %5228 = vst [vmem:[%s198 + $0xa4] sm:$0xf] %v4972
        %5229 = vst [vmem:[%s198 + $0xa8] sm:$0xf] %v4973
        %5230 = vst [vmem:[%s198 + $0xac] sm:$0xf] %v4974
        %5231 = vst [vmem:[%s198 + $0xb0] sm:$0xf] %v4975
        %5232 = vst [vmem:[%s198 + $0xb4] sm:$0xf] %v4976
        %5233 = vst [vmem:[%s198 + $0xb8] sm:$0xf] %v4977
        %5234 = vst [vmem:[%s198 + $0xbc] sm:$0xf] %v4978
        %5235 = vst [vmem:[%s198 + $0xc0] sm:$0xf] %v4979
        %5236 = vst [vmem:[%s198 + $0xc4] sm:$0xf] %v4980
        %5237 = vst [vmem:[%s198 + $0xc8] sm:$0xf] %v4981
        %5238 = vst [vmem:[%s198 + $0xcc] sm:$0xf] %v4982
        %5239 = vst [vmem:[%s198 + $0xd0] sm:$0xf] %v4983
        %5240 = vst [vmem:[%s198 + $0xd4] sm:$0xf] %v4984
        %5241 = vst [vmem:[%s198 + $0xd8] sm:$0xf] %v4985
        %5242 = vst [vmem:[%s198 + $0xdc] sm:$0xf] %v4986
        %5243 = vst [vmem:[%s198 + $0xe0] sm:$0xf] %v4987
        %5244 = vst [vmem:[%s198 + $0xe4] sm:$0xf] %v4988
        %5245 = vst [vmem:[%s198 + $0xe8] sm:$0xf] %v4989
        %5246 = vst [vmem:[%s198 + $0xec] sm:$0xf] %v4990
        %5247 = vst [vmem:[%s198 + $0xf0] sm:$0xf] %v4991
        %5248 = vst [vmem:[%s198 + $0xf4] sm:$0xf] %v4992
        %5249 = vst [vmem:[%s198 + $0xf8] sm:$0xf] %v4993
        %5250 = vst [vmem:[%s198 + $0xfc] sm:$0xf] %v4994
        %5251 = vst [vmem:[%s198 + $0x100] sm:$0xf] %v4995
        %5252 = vst [vmem:[%s198 + $0x104] sm:$0xf] %v4996
        %5253 = vst [vmem:[%s198 + $0x108] sm:$0xf] %v4997
        %5254 = vst [vmem:[%s198 + $0x10c] sm:$0xf] %v4998
        %5255 = vst [vmem:[%s198 + $0x110] sm:$0xf] %v4999
        %5256 = vst [vmem:[%s198 + $0x114] sm:$0xf] %v5000
        %5257 = vst [vmem:[%s198 + $0x118] sm:$0xf] %v5001
        %5258 = vst [vmem:[%s198 + $0x11c] sm:$0xf] %v5002
        %5259 = vst [vmem:[%s198 + $0x120] sm:$0xf] %v5003
        %5260 = vst [vmem:[%s198 + $0x124] sm:$0xf] %v5004
        %5261 = vst [vmem:[%s198 + $0x128] sm:$0xf] %v5005
        %5262 = vst [vmem:[%s198 + $0x12c] sm:$0xf] %v5006
        %5263 = vst [vmem:[%s198 + $0x130] sm:$0xf] %v5007
        %5264 = vst [vmem:[%s198 + $0x134] sm:$0xf] %v5008
        %5265 = vst [vmem:[%s198 + $0x138] sm:$0xf] %v5009
        %5266 = vst [vmem:[%s198 + $0x13c] sm:$0xf] %v5010
        %5267 = vst [vmem:[%s198 + $0x140] sm:$0xf] %v5011
        %5268 = vst [vmem:[%s198 + $0x144] sm:$0xf] %v5012
        %5269 = vst [vmem:[%s198 + $0x148] sm:$0xf] %v5013
        %5270 = vst [vmem:[%s198 + $0x14c] sm:$0xf] %v5014
        %5271 = vst [vmem:[%s198 + $0x150] sm:$0xf] %v5015
        %5272 = vst [vmem:[%s198 + $0x154] sm:$0xf] %v5016
        %5273 = vst [vmem:[%s198 + $0x158] sm:$0xf] %v5017
        %5274 = vst [vmem:[%s198 + $0x15c] sm:$0xf] %v5018
        %5275 = vst [vmem:[%s198 + $0x160] sm:$0xf] %v5019
        %5276 = vst [vmem:[%s198 + $0x164] sm:$0xf] %v5020
        %5277 = vst [vmem:[%s198 + $0x168] sm:$0xf] %v5021
        %5278 = vst [vmem:[%s198 + $0x16c] sm:$0xf] %v5022
        %5279 = vst [vmem:[%s198 + $0x170] sm:$0xf] %v5023
        %5280 = vst [vmem:[%s198 + $0x174] sm:$0xf] %v5024
        %5281 = vst [vmem:[%s198 + $0x178] sm:$0xf] %v5025
        %5282 = vst [vmem:[%s198 + $0x17c] sm:$0xf] %v5026
        %5283 = vst [vmem:[%s198 + $0x180] sm:$0xf] %v5027
        %5284 = vst [vmem:[%s198 + $0x184] sm:$0xf] %v5028
        %5285 = vst [vmem:[%s198 + $0x188] sm:$0xf] %v5029
        %5286 = vst [vmem:[%s198 + $0x18c] sm:$0xf] %v5030
        %5287 = vst [vmem:[%s198 + $0x190] sm:$0xf] %v5031
        %5288 = vst [vmem:[%s198 + $0x194] sm:$0xf] %v5032
        %5289 = vst [vmem:[%s198 + $0x198] sm:$0xf] %v5033
        %5290 = vst [vmem:[%s198 + $0x19c] sm:$0xf] %v5034
        %5291 = vst [vmem:[%s198 + $0x1a0] sm:$0xf] %v5035
        %5292 = vst [vmem:[%s198 + $0x1a4] sm:$0xf] %v5036
        %5293 = vst [vmem:[%s198 + $0x1a8] sm:$0xf] %v5037
        %5294 = vst [vmem:[%s198 + $0x1ac] sm:$0xf] %v5038
        %5295 = vst [vmem:[%s198 + $0x1b0] sm:$0xf] %v5039
        %5296 = vst [vmem:[%s198 + $0x1b4] sm:$0xf] %v5040
        %5297 = vst [vmem:[%s198 + $0x1b8] sm:$0xf] %v5041
        %5298 = vst [vmem:[%s198 + $0x1bc] sm:$0xf] %v5042
        %5299 = vst [vmem:[%s198 + $0x1c0] sm:$0xf] %v5043
        %5300 = vst [vmem:[%s198 + $0x1c4] sm:$0xf] %v5044
        %5301 = vst [vmem:[%s198 + $0x1c8] sm:$0xf] %v5045
        %5302 = vst [vmem:[%s198 + $0x1cc] sm:$0xf] %v5046
        %5303 = vst [vmem:[%s198 + $0x1d0] sm:$0xf] %v5047
        %5304 = vst [vmem:[%s198 + $0x1d4] sm:$0xf] %v5048
        %5305 = vst [vmem:[%s198 + $0x1d8] sm:$0xf] %v5049
        %5306 = vst [vmem:[%s198 + $0x1dc] sm:$0xf] %v5050
        %5307 = vst [vmem:[%s198 + $0x1e0] sm:$0xf] %v5051
        %5308 = vst [vmem:[%s198 + $0x1e4] sm:$0xf] %v5052
        %5309 = vst [vmem:[%s198 + $0x1e8] sm:$0xf] %v5053
        %5310 = vst [vmem:[%s198 + $0x1ec] sm:$0xf] %v5054
        %5311 = vst [vmem:[%s198 + $0x1f0] sm:$0xf] %v5055
        %5312 = vst [vmem:[%s198 + $0x1f4] sm:$0xf] %v5056
        %5313 = vst [vmem:[%s198 + $0x1f8] sm:$0xf] %v5057
        %5314 = vst [vmem:[%s198 + $0x1fc] sm:$0xf] %v5058
        %s5315 = sand.u32 %s122, 1
        %s5316 = scalar_lea.sflag [#allocation5], %s5315
        %s5317 = sand.u32 %s122, 1
        %s5318 = smul.addr %s5317, 512
        %s5319 = scalar_lea.vmem [#allocation4], %s5318
        // Predicated region
        $region37: #{tpu_custom_call.1} parent=35 // pred_check
          %p5320 = pneg %p132
        $region38: #{tpu_custom_call.1} parent=35 // pred_check_branch
          %5322 = sbr.rel (%p5320) target = $region40
        $region39: #{tpu_custom_call.1} parent=35 // pred_region
          %s5323 = smul.u32 128, %s25
          %s5325 = ssub.s32 8192, 8192
          %5326 = vsyncadd %s5316, %s5325
          %s5327 = smul.addr %s5323, 64
          %s5328 = scalar_lea.hbm %s5, %s5327
          %s5329 = sshll.u32 %s5319, 4
          %s5330 = int_to_ptr.vmem [resolvable:$true] %s5329
          %5335 = dma.vmem_to_hbm [thread:$0]  %s5330, 8192, %s5328, %s5316, 64, 64, 4
        $region40: #{tpu_custom_call.1} parent=35 // pred_fallthru
          _
      $region36: #{tpu_custom_call.1} parent=5 // pred_fallthru
        _
      %p5336 = scmp.le.s32.totalorder 2, %s20
      // Predicated region
      $region41: #{tpu_custom_call.1} parent=5 // pred_check
        %p5337 = pneg %p5336
      $region42: #{tpu_custom_call.1} parent=5 // pred_check_branch
        %5339 = sbr.rel (%p5337) target = $region44
      $region43: #{tpu_custom_call.1} parent=5 // pred_region
        %s5340 = ssub.s32 %s20, 2
        // Predicated region
        $region45: #{tpu_custom_call.1} parent=43 // pred_check
          %p5341 = pneg %p138
        $region46: #{tpu_custom_call.1} parent=43 // pred_check_branch
          %5343 = sbr.rel (%p5341) target = $region48
        $region47: #{tpu_custom_call.1} parent=43 // pred_region
          %s5344 = sand.u32 %s123, 1
          %s5345 = scalar_lea.sflag [#allocation5], %s5344
          %s5346 = sand.u32 %s123, 1
          %s5347 = smul.addr %s5346, 512
          %s5348 = scalar_lea.vmem [#allocation4], %s5347
          %5349 = dma.done %s5345, 8192
        $region48: #{tpu_custom_call.1} parent=43 // pred_fallthru
          _
      $region44: #{tpu_custom_call.1} parent=5 // pred_fallthru
        _
    $region6: #{tpu_custom_call.1} parent=1 // loop_footer
      %s24 = sadd.s32 1, %s20
    $region7: #{tpu_custom_call.1} parent=1 // loop_footer_branch
      %19 = sbr.rel target = $region3
    $region8: #{tpu_custom_call.1} parent=1 // loop_exit
      _
    %5350 = vsyncpa [#allocation5], 1
    %s5351 = scalar_lea.sflag [#allocation5], 1
    %5352 = vsyncpa %s5351, 1

</llo_original>
